<compile_context>
chip_gen: v5e
topology: v5e:2x2
jax: 0.10.0
libtpu: 0.0.40
codegen_flags: <defaults>
</compile_context>

<pallas_src>
import functools

import jax
import jax.numpy as jnp
from jax.experimental import pallas as pl
from jax.experimental.pallas import tpu as pltpu


def _mlp_kernel(x_ref, *refs):
    """Whole-MLP kernel for one tile of rows (batch on the lane axis).

    refs = (w0, b0, w1, b1, ..., wL, bL, out_ref). Weights are (out, in),
    biases are (out, 1); x_ref is (input_dim, tile_n); out_ref is
    (output_dim, tile_n).
    """
    out_ref = refs[-1]
    wb = refs[:-1]
    n_layers = len(wb) // 2

    x = x_ref[...].astype(jnp.float32)            # (in_dim, tile_n)
    in_dim = x.shape[0]

    # ---- Layer 0: contraction K = in_dim (tiny, e.g. 4). Do it on the VPU as
    # a broadcast outer-product accumulation instead of a K=4 MXU pass.
    w0 = wb[0][...]                               # (hidden, in_dim)
    b0 = wb[1][...]                               # (hidden, 1)
    h = w0[:, 0:1] * x[0:1, :]                    # (hidden, tile_n)
    for k in range(1, in_dim):
        h = h + w0[:, k:k + 1] * x[k:k + 1, :]
    h = h + b0
    if n_layers > 1:
        h = jnp.tanh(h)

    # ---- Hidden + output layers on the MXU: h = W @ h + b (lanes = batch).
    # Default MXU precision (bf16 operand rounding); pass precision=HIGHEST
    # here if the PINN's higher-order autodiff needs true f32 (3x MXU cost).
    for i in range(1, n_layers):
        w = wb[2 * i][...]                        # (out_i, in_i)
        b = wb[2 * i + 1][...]                    # (out_i, 1)
        h = jnp.dot(w, h, preferred_element_type=jnp.float32) + b
        if i < n_layers - 1:                      # tanh on all but final layer
            h = jnp.tanh(h)

    out_ref[...] = h.astype(out_ref.dtype)        # lane-dense store


def _default_tile_n(n):
    """One grid step per TensorCore (v5e/v6e: 1 TC, v7x: 2 TCs), rounded up to
    a lane-friendly multiple of 256 and capped so per-tile VMEM stays small."""
    try:
        kind = jax.devices()[0].device_kind.lower()
        n_tc = 2 if ("v7" in kind or "7x" in kind) else 1
    except Exception:  # pragma: no cover - conservative fallback
        n_tc = 1
    t = -(-n // n_tc)                  # cdiv(n, n_tc)
    t = -(-t // 256) * 256             # round up to multiple of 256
    return max(256, min(t, 8192))


def mlp_forward(x, weights, biases, *, tile_n=None):
    """Run the MLP on x of shape (N, input_dim); returns (N, output_dim).

    No batch padding: the grid is pl.cdiv(N, tile_n) and the ragged last block
    is masked by Pallas. Weights must be in PyTorch layout (out, in).
    """
    n, in_dim = x.shape
    hidden = weights[0].shape[0]
    out_dim = weights[-1].shape[0]
    depth = len(weights) - 1                      # number of hidden layers

    if tile_n is None:
        tile_n = _default_tile_n(n)

    # One transpose (batch -> lanes); fused into this single jit dispatch.
    x_t = x.T                                     # (in_dim, n)

    # Interleave params as (w0, b0, w1, b1, ...); biases reshaped to (out, 1)
    # so they broadcast over the lane (batch) axis. Constant index_maps mean
    # the params are DMA'd once and stay resident across grid steps.
    params = []
    in_specs = [pl.BlockSpec((in_dim, tile_n), lambda i: (0, i))]
    for w, b in zip(weights, biases):
        b2 = b.reshape(-1, 1)
        params.extend([w, b2])
        in_specs.append(pl.BlockSpec(w.shape, lambda i: (0, 0)))
        in_specs.append(pl.BlockSpec(b2.shape, lambda i: (0, 0)))

    flops = 2 * n * (in_dim * hidden
                     + (depth - 1) * hidden * hidden
                     + hidden * out_dim)
    transcendentals = depth * hidden * n
    param_bytes = 4 * sum(int(w.size) + int(b.size)
                          for w, b in zip(weights, biases))
    bytes_accessed = 4 * n * (in_dim + out_dim) + param_bytes

    out_t = pl.pallas_call(
        _mlp_kernel,
        out_shape=jax.ShapeDtypeStruct((out_dim, n), jnp.float32),
        grid_spec=pltpu.PrefetchScalarGridSpec(
            num_scalar_prefetch=0,
            grid=(pl.cdiv(n, tile_n),),
            in_specs=in_specs,
            out_specs=pl.BlockSpec((out_dim, tile_n), lambda i: (0, i)),
        ),
        compiler_params=pltpu.CompilerParams(
            dimension_semantics=("parallel",),
            vmem_limit_bytes=32 * 1024 * 1024,
        ),
        cost_estimate=pl.CostEstimate(
            flops=int(flops),
            transcendentals=int(transcendentals),
            bytes_accessed=int(bytes_accessed),
        ),
    )(x_t, *params)

    return out_t.T                                # back to (N, output_dim)


# Single-dispatch entry point: pad-free transpose + pallas_call + transpose
# all compile into one executable.
mlp_forward_jit = jax.jit(mlp_forward, static_argnames=("tile_n",))


def init_mlp_params(key, input_dim=4, hidden_dim=64, output_dim=2, depth=4):
    """Xavier-normal weights in PyTorch layout (out, in), zero biases —
    matches the module's _initialize_weights()."""
    dims = [input_dim] + [hidden_dim] * depth + [output_dim]
    weights, biases = [], []
    for i in range(len(dims) - 1):
        fan_in, fan_out = dims[i], dims[i + 1]
        key, sub = jax.random.split(key)
        std = (2.0 / (fan_in + fan_out)) ** 0.5
        w = std * jax.random.normal(sub, (fan_out, fan_in), dtype=jnp.float32)
        b = jnp.zeros((fan_out,), dtype=jnp.float32)
        weights.append(w)
        biases.append(b)
    return weights, biases


def mlp_reference(x, weights, biases):
    """Pure-JAX reference. Layer 0 mirrors the kernel's exact-f32 VPU path
    (highest precision); remaining layers use default-precision matmuls like
    the kernel's MXU dots."""
    w0, b0 = weights[0], biases[0]
    h = jnp.dot(x, w0.T, precision=jax.lax.Precision.HIGHEST) + b0
    if len(weights) > 1:
        h = jnp.tanh(h)
    for i in range(1, len(weights)):
        w, b = weights[i], biases[i]
        h = h @ w.T + b
        if i < len(weights) - 1:
            h = jnp.tanh(h)
    return h


if __name__ == "__main__":
    key = jax.random.PRNGKey(0)
    k_x, k_p = jax.random.split(key)

    # Module defaults: input_dim=4, hidden_dim=64, output_dim=2, depth=4.
    # Batch of 2000 collocation points; not a multiple of tile_n, so the
    # ragged-last-block (masked) path is exercised. tile_n auto-selects to
    # 2048 on v5e/v6e (grid=1) and 1024 on v7x (grid=2, one step per TC).
    input_dim, hidden_dim, output_dim, depth = 4, 64, 2, 4
    batch = 2000

    x = jax.random.normal(k_x, (batch, input_dim), dtype=jnp.float32)
    weights, biases = init_mlp_params(
        k_p, input_dim=input_dim, hidden_dim=hidden_dim,
        output_dim=output_dim, depth=depth)

    out = mlp_forward_jit(x, weights, biases)
    out = jax.block_until_ready(out)

    ref = mlp_reference(x, weights, biases)
    assert out.shape == (batch, output_dim)
    # Tolerance accounts for TPU default matmul precision (bf16 operand
    # rounding on the MXU) interacting with the transposed accumulation order.
    assert jnp.allclose(out, ref, atol=2e-3, rtol=2e-3), "mismatch vs reference"

    print("KERNEL_OK")
</pallas_src>

<mosaic_0001>
module attributes {stable_mosaic.version = 11 : i64} {
  func.func @_mlp_kernel(%arg0: i32, %arg1: memref<4x2048xf32, #tpu.memory_space<vmem>>, %arg2: memref<64x4xf32, #tpu.memory_space<vmem>>, %arg3: memref<64x1xf32, #tpu.memory_space<vmem>>, %arg4: memref<64x64xf32, #tpu.memory_space<vmem>>, %arg5: memref<64x1xf32, #tpu.memory_space<vmem>>, %arg6: memref<64x64xf32, #tpu.memory_space<vmem>>, %arg7: memref<64x1xf32, #tpu.memory_space<vmem>>, %arg8: memref<64x64xf32, #tpu.memory_space<vmem>>, %arg9: memref<64x1xf32, #tpu.memory_space<vmem>>, %arg10: memref<2x64xf32, #tpu.memory_space<vmem>>, %arg11: memref<2x1xf32, #tpu.memory_space<vmem>>, %arg12: memref<2x2048xf32, #tpu.memory_space<vmem>>) attributes {dimension_semantics = [#tpu.dimension_semantics<parallel>], iteration_bounds = array<i64: 1>, scalar_prefetch = 0 : i64, scratch_operands = 0 : i64, tpu.core_type = #tpu.core_type<tc>, window_params = [{transform_indices = @transform_0, window_bounds = array<i64: 4, 2048>}, {pipeline_mode = #tpu.pipeline_mode<synchronous>, transform_indices = @transform_1, window_bounds = array<i64: 64, 4>}, {pipeline_mode = #tpu.pipeline_mode<synchronous>, transform_indices = @transform_2, window_bounds = array<i64: 64, 1>}, {pipeline_mode = #tpu.pipeline_mode<synchronous>, transform_indices = @transform_3, window_bounds = array<i64: 64, 64>}, {pipeline_mode = #tpu.pipeline_mode<synchronous>, transform_indices = @transform_4, window_bounds = array<i64: 64, 1>}, {pipeline_mode = #tpu.pipeline_mode<synchronous>, transform_indices = @transform_5, window_bounds = array<i64: 64, 64>}, {pipeline_mode = #tpu.pipeline_mode<synchronous>, transform_indices = @transform_6, window_bounds = array<i64: 64, 1>}, {pipeline_mode = #tpu.pipeline_mode<synchronous>, transform_indices = @transform_7, window_bounds = array<i64: 64, 64>}, {pipeline_mode = #tpu.pipeline_mode<synchronous>, transform_indices = @transform_8, window_bounds = array<i64: 64, 1>}, {pipeline_mode = #tpu.pipeline_mode<synchronous>, transform_indices = @transform_9, window_bounds = array<i64: 2, 64>}, {pipeline_mode = #tpu.pipeline_mode<synchronous>, transform_indices = @transform_10, window_bounds = array<i64: 2, 1>}, {transform_indices = @transform_11, window_bounds = array<i64: 2, 2048>}]} {
    %c0 = arith.constant 0 : index
    %c0_0 = arith.constant 0 : index
    %0 = vector.load %arg1[%c0, %c0_0] : memref<4x2048xf32, #tpu.memory_space<vmem>>, vector<4x2048xf32>
    %c0_1 = arith.constant 0 : index
    %c0_2 = arith.constant 0 : index
    %1 = vector.load %arg2[%c0_1, %c0_2] : memref<64x4xf32, #tpu.memory_space<vmem>>, vector<64x4xf32>
    %c0_3 = arith.constant 0 : index
    %c0_4 = arith.constant 0 : index
    %2 = vector.load %arg3[%c0_3, %c0_4] : memref<64x1xf32, #tpu.memory_space<vmem>>, vector<64x1xf32>
    %3 = vector.extract_strided_slice %1 {offsets = [0, 0], sizes = [64, 1], strides = [1, 1]} : vector<64x4xf32> to vector<64x1xf32>
    %4 = vector.extract_strided_slice %0 {offsets = [0, 0], sizes = [1, 2048], strides = [1, 1]} : vector<4x2048xf32> to vector<1x2048xf32>
    %5 = vector.broadcast %3 : vector<64x1xf32> to vector<64x2048xf32>
    %6 = vector.broadcast %4 : vector<1x2048xf32> to vector<64x2048xf32>
    %7 = arith.mulf %5, %6 : vector<64x2048xf32>
    %8 = vector.extract_strided_slice %1 {offsets = [0, 1], sizes = [64, 1], strides = [1, 1]} : vector<64x4xf32> to vector<64x1xf32>
    %9 = vector.extract_strided_slice %0 {offsets = [1, 0], sizes = [1, 2048], strides = [1, 1]} : vector<4x2048xf32> to vector<1x2048xf32>
    %10 = vector.broadcast %8 : vector<64x1xf32> to vector<64x2048xf32>
    %11 = vector.broadcast %9 : vector<1x2048xf32> to vector<64x2048xf32>
    %12 = arith.mulf %10, %11 : vector<64x2048xf32>
    %13 = arith.addf %7, %12 : vector<64x2048xf32>
    %14 = vector.extract_strided_slice %1 {offsets = [0, 2], sizes = [64, 1], strides = [1, 1]} : vector<64x4xf32> to vector<64x1xf32>
    %15 = vector.extract_strided_slice %0 {offsets = [2, 0], sizes = [1, 2048], strides = [1, 1]} : vector<4x2048xf32> to vector<1x2048xf32>
    %16 = vector.broadcast %14 : vector<64x1xf32> to vector<64x2048xf32>
    %17 = vector.broadcast %15 : vector<1x2048xf32> to vector<64x2048xf32>
    %18 = arith.mulf %16, %17 : vector<64x2048xf32>
    %19 = arith.addf %13, %18 : vector<64x2048xf32>
    %20 = vector.extract_strided_slice %1 {offsets = [0, 3], sizes = [64, 1], strides = [1, 1]} : vector<64x4xf32> to vector<64x1xf32>
    %21 = vector.extract_strided_slice %0 {offsets = [3, 0], sizes = [1, 2048], strides = [1, 1]} : vector<4x2048xf32> to vector<1x2048xf32>
    %22 = vector.broadcast %20 : vector<64x1xf32> to vector<64x2048xf32>
    %23 = vector.broadcast %21 : vector<1x2048xf32> to vector<64x2048xf32>
    %24 = arith.mulf %22, %23 : vector<64x2048xf32>
    %25 = arith.addf %19, %24 : vector<64x2048xf32>
    %26 = vector.broadcast %2 : vector<64x1xf32> to vector<64x2048xf32>
    %27 = arith.addf %25, %26 : vector<64x2048xf32>
    %28 = math.tanh %27 : vector<64x2048xf32>
    %c0_5 = arith.constant 0 : index
    %c0_6 = arith.constant 0 : index
    %29 = vector.load %arg4[%c0_5, %c0_6] : memref<64x64xf32, #tpu.memory_space<vmem>>, vector<64x64xf32>
    %c0_7 = arith.constant 0 : index
    %c0_8 = arith.constant 0 : index
    %30 = vector.load %arg5[%c0_7, %c0_8] : memref<64x1xf32, #tpu.memory_space<vmem>>, vector<64x1xf32>
    %cst = arith.constant dense<0.000000e+00> : vector<64x2048xf32>
    %31 = tpu.matmul %29, %28, %cst {dimension_numbers = #tpu.dot_dimension_numbers<[1], [0], [0], [1], [0, 0, 1, 1], [], []>} : vector<64x64xf32>, vector<64x2048xf32>, vector<64x2048xf32> -> vector<64x2048xf32>
    %32 = vector.broadcast %30 : vector<64x1xf32> to vector<64x2048xf32>
    %33 = arith.addf %31, %32 : vector<64x2048xf32>
    %34 = math.tanh %33 : vector<64x2048xf32>
    %c0_9 = arith.constant 0 : index
    %c0_10 = arith.constant 0 : index
    %35 = vector.load %arg6[%c0_9, %c0_10] : memref<64x64xf32, #tpu.memory_space<vmem>>, vector<64x64xf32>
    %c0_11 = arith.constant 0 : index
    %c0_12 = arith.constant 0 : index
    %36 = vector.load %arg7[%c0_11, %c0_12] : memref<64x1xf32, #tpu.memory_space<vmem>>, vector<64x1xf32>
    %cst_13 = arith.constant dense<0.000000e+00> : vector<64x2048xf32>
    %37 = tpu.matmul %35, %34, %cst_13 {dimension_numbers = #tpu.dot_dimension_numbers<[1], [0], [0], [1], [0, 0, 1, 1], [], []>} : vector<64x64xf32>, vector<64x2048xf32>, vector<64x2048xf32> -> vector<64x2048xf32>
    %38 = vector.broadcast %36 : vector<64x1xf32> to vector<64x2048xf32>
    %39 = arith.addf %37, %38 : vector<64x2048xf32>
    %40 = math.tanh %39 : vector<64x2048xf32>
    %c0_14 = arith.constant 0 : index
    %c0_15 = arith.constant 0 : index
    %41 = vector.load %arg8[%c0_14, %c0_15] : memref<64x64xf32, #tpu.memory_space<vmem>>, vector<64x64xf32>
    %c0_16 = arith.constant 0 : index
    %c0_17 = arith.constant 0 : index
    %42 = vector.load %arg9[%c0_16, %c0_17] : memref<64x1xf32, #tpu.memory_space<vmem>>, vector<64x1xf32>
    %cst_18 = arith.constant dense<0.000000e+00> : vector<64x2048xf32>
    %43 = tpu.matmul %41, %40, %cst_18 {dimension_numbers = #tpu.dot_dimension_numbers<[1], [0], [0], [1], [0, 0, 1, 1], [], []>} : vector<64x64xf32>, vector<64x2048xf32>, vector<64x2048xf32> -> vector<64x2048xf32>
    %44 = vector.broadcast %42 : vector<64x1xf32> to vector<64x2048xf32>
    %45 = arith.addf %43, %44 : vector<64x2048xf32>
    %46 = math.tanh %45 : vector<64x2048xf32>
    %c0_19 = arith.constant 0 : index
    %c0_20 = arith.constant 0 : index
    %47 = vector.load %arg10[%c0_19, %c0_20] : memref<2x64xf32, #tpu.memory_space<vmem>>, vector<2x64xf32>
    %c0_21 = arith.constant 0 : index
    %c0_22 = arith.constant 0 : index
    %48 = vector.load %arg11[%c0_21, %c0_22] : memref<2x1xf32, #tpu.memory_space<vmem>>, vector<2x1xf32>
    %cst_23 = arith.constant dense<0.000000e+00> : vector<2x2048xf32>
    %49 = tpu.matmul %47, %46, %cst_23 {dimension_numbers = #tpu.dot_dimension_numbers<[1], [0], [0], [1], [0, 0, 1, 1], [], []>} : vector<2x64xf32>, vector<64x2048xf32>, vector<2x2048xf32> -> vector<2x2048xf32>
    %50 = vector.broadcast %48 : vector<2x1xf32> to vector<2x2048xf32>
    %51 = arith.addf %49, %50 : vector<2x2048xf32>
    %c0_24 = arith.constant 0 : index
    %c0_25 = arith.constant 0 : index
    %52 = vector.load %arg12[%c0_24, %c0_25] : memref<2x2048xf32, #tpu.memory_space<vmem>>, vector<2x2048xf32>
    tpu.vector_store %arg12[%c0_24, %c0_25], %51 {strides = array<i32>} : memref<2x2048xf32, #tpu.memory_space<vmem>>, vector<2x2048xf32>,
    return
  }
  func.func @transform_0(%arg0: i32) -> (i32, i32) {
    %c0_i32 = arith.constant 0 : i32
    %c0_i32_0 = arith.constant 0 : i32
    return %c0_i32, %arg0 : i32, i32
  }
  func.func @transform_1(%arg0: i32) -> (i32, i32) {
    %c0_i32 = arith.constant 0 : i32
    %c0_i32_0 = arith.constant 0 : i32
    %c0_i32_1 = arith.constant 0 : i32
    return %c0_i32, %c0_i32_0 : i32, i32
  }
  func.func @transform_2(%arg0: i32) -> (i32, i32) {
    %c0_i32 = arith.constant 0 : i32
    %c0_i32_0 = arith.constant 0 : i32
    %c0_i32_1 = arith.constant 0 : i32
    return %c0_i32, %c0_i32_0 : i32, i32
  }
  func.func @transform_3(%arg0: i32) -> (i32, i32) {
    %c0_i32 = arith.constant 0 : i32
    %c0_i32_0 = arith.constant 0 : i32
    %c0_i32_1 = arith.constant 0 : i32
    return %c0_i32, %c0_i32_0 : i32, i32
  }
  func.func @transform_4(%arg0: i32) -> (i32, i32) {
    %c0_i32 = arith.constant 0 : i32
    %c0_i32_0 = arith.constant 0 : i32
    %c0_i32_1 = arith.constant 0 : i32
    return %c0_i32, %c0_i32_0 : i32, i32
  }
  func.func @transform_5(%arg0: i32) -> (i32, i32) {
    %c0_i32 = arith.constant 0 : i32
    %c0_i32_0 = arith.constant 0 : i32
    %c0_i32_1 = arith.constant 0 : i32
    return %c0_i32, %c0_i32_0 : i32, i32
  }
  func.func @transform_6(%arg0: i32) -> (i32, i32) {
    %c0_i32 = arith.constant 0 : i32
    %c0_i32_0 = arith.constant 0 : i32
    %c0_i32_1 = arith.constant 0 : i32
    return %c0_i32, %c0_i32_0 : i32, i32
  }
  func.func @transform_7(%arg0: i32) -> (i32, i32) {
    %c0_i32 = arith.constant 0 : i32
    %c0_i32_0 = arith.constant 0 : i32
    %c0_i32_1 = arith.constant 0 : i32
    return %c0_i32, %c0_i32_0 : i32, i32
  }
  func.func @transform_8(%arg0: i32) -> (i32, i32) {
    %c0_i32 = arith.constant 0 : i32
    %c0_i32_0 = arith.constant 0 : i32
    %c0_i32_1 = arith.constant 0 : i32
    return %c0_i32, %c0_i32_0 : i32, i32
  }
  func.func @transform_9(%arg0: i32) -> (i32, i32) {
    %c0_i32 = arith.constant 0 : i32
    %c0_i32_0 = arith.constant 0 : i32
    %c0_i32_1 = arith.constant 0 : i32
    return %c0_i32, %c0_i32_0 : i32, i32
  }
  func.func @transform_10(%arg0: i32) -> (i32, i32) {
    %c0_i32 = arith.constant 0 : i32
    %c0_i32_0 = arith.constant 0 : i32
    %c0_i32_1 = arith.constant 0 : i32
    return %c0_i32, %c0_i32_0 : i32, i32
  }
  func.func @transform_11(%arg0: i32) -> (i32, i32) {
    %c0_i32 = arith.constant 0 : i32
    %c0_i32_0 = arith.constant 0 : i32
    return %c0_i32, %arg0 : i32, i32
  }
}

</mosaic_0001>

<llo_original>
// kernel: mlp_forward.1
$region0: #{mlp_forward.1}
  #allocation0 [shape = 'u32[]', space=smem, size = 0x4, offset = 0x4, fixed_abs, tag = 'smem constant byte address 0x4 - core index']
  #allocation1 [shape = 'u32[72,128]{1,0:T(1,128)}', space=vmem, size = 0x9000, scoped, tag = 'internal scratch']
  %s0 = inlined_call_operand.vmem [shape: f32[4,2000], index: 0, kind: input, shape index: {}]
  %s1 = inlined_call_operand.vmem [shape: f32[64,4], index: 1, kind: input, shape index: {}]
  %s2 = inlined_call_operand.vmem [shape: f32[64,1], index: 2, kind: input, shape index: {}]
  %s3 = inlined_call_operand.vmem [shape: f32[64,64], index: 3, kind: input, shape index: {}]
  %s4 = inlined_call_operand.vmem [shape: f32[64,1], index: 4, kind: input, shape index: {}]
  %s5 = inlined_call_operand.vmem [shape: f32[64,64], index: 5, kind: input, shape index: {}]
  %s6 = inlined_call_operand.vmem [shape: f32[64,1], index: 6, kind: input, shape index: {}]
  %s7 = inlined_call_operand.vmem [shape: f32[64,64], index: 7, kind: input, shape index: {}]
  %s8 = inlined_call_operand.vmem [shape: f32[64,1], index: 8, kind: input, shape index: {}]
  %s9 = inlined_call_operand.vmem [shape: f32[2,64], index: 9, kind: input, shape index: {}]
  %s10 = inlined_call_operand.vmem [shape: f32[2,1], index: 10, kind: input, shape index: {}]
  %s11 = inlined_call_operand.hbm [shape: f32[2,2000], index: 11, kind: output, shape index: {}]
  %s12 = sld [smem:[#allocation0]]
  $region54: #{mlp_forward.1} parent=0
    _
  %s14 = ssub.s32 1, %s12
  %s15 = scalar_select 0, %s14, %s12
  $region1: #{mlp_forward.1} parent=0
    #allocation2 [shape = 'u8[16384]{0}', space=vmem, size = 0x4000, scoped, tag = 'output window, operand 0, single buffered']
    #allocation3 [shape = 's32[1]{0}', space=sflag, size = 0x4, scoped, tag = 'scoped memory for mlp_forward.1']
    %16 = vsyncpa [#allocation3], 0
    // Predicated region
    $region2: #{mlp_forward.1} parent=1 // pred_check
      _
    $region3: #{mlp_forward.1} parent=1 // pred_check_branch
      %18 = sbr.rel (0) target = $region5
    $region4: #{mlp_forward.1} parent=1 // pred_region
      _
    $region5: #{mlp_forward.1} parent=1 // pred_fallthru
      _
    // Predicated region
    $region6: #{mlp_forward.1} parent=1 // pred_check
      _
    $region7: #{mlp_forward.1} parent=1 // pred_check_branch
      %20 = sbr.rel (0) target = $region9
    $region8: #{mlp_forward.1} parent=1 // pred_region
      _
    $region9: #{mlp_forward.1} parent=1 // pred_fallthru
      _
    // Predicated region
    $region10: #{mlp_forward.1} parent=1 // pred_check
      _
    $region11: #{mlp_forward.1} parent=1 // pred_check_branch
      %22 = sbr.rel (0) target = $region13
    $region12: #{mlp_forward.1} parent=1 // pred_region
      _
    $region13: #{mlp_forward.1} parent=1 // pred_fallthru
      _
    // Predicated region
    $region14: #{mlp_forward.1} parent=1 // pred_check
      _
    $region15: #{mlp_forward.1} parent=1 // pred_check_branch
      %24 = sbr.rel (0) target = $region17
    $region16: #{mlp_forward.1} parent=1 // pred_region
      _
    $region17: #{mlp_forward.1} parent=1 // pred_fallthru
      _
    // Predicated region
    $region18: #{mlp_forward.1} parent=1 // pred_check
      _
    $region19: #{mlp_forward.1} parent=1 // pred_check_branch
      %26 = sbr.rel (0) target = $region21
    $region20: #{mlp_forward.1} parent=1 // pred_region
      _
    $region21: #{mlp_forward.1} parent=1 // pred_fallthru
      _
    // Predicated region
    $region22: #{mlp_forward.1} parent=1 // pred_check
      _
    $region23: #{mlp_forward.1} parent=1 // pred_check_branch
      %28 = sbr.rel (0) target = $region25
    $region24: #{mlp_forward.1} parent=1 // pred_region
      _
    $region25: #{mlp_forward.1} parent=1 // pred_fallthru
      _
    // Predicated region
    $region26: #{mlp_forward.1} parent=1 // pred_check
      _
    $region27: #{mlp_forward.1} parent=1 // pred_check_branch
      %30 = sbr.rel (0) target = $region29
    $region28: #{mlp_forward.1} parent=1 // pred_region
      _
    $region29: #{mlp_forward.1} parent=1 // pred_fallthru
      _
    // Predicated region
    $region30: #{mlp_forward.1} parent=1 // pred_check
      _
    $region31: #{mlp_forward.1} parent=1 // pred_check_branch
      %32 = sbr.rel (0) target = $region33
    $region32: #{mlp_forward.1} parent=1 // pred_region
      _
    $region33: #{mlp_forward.1} parent=1 // pred_fallthru
      _
    // Predicated region
    $region34: #{mlp_forward.1} parent=1 // pred_check
      _
    $region35: #{mlp_forward.1} parent=1 // pred_check_branch
      %34 = sbr.rel (0) target = $region37
    $region36: #{mlp_forward.1} parent=1 // pred_region
      _
    $region37: #{mlp_forward.1} parent=1 // pred_fallthru
      _
    // Predicated region
    $region38: #{mlp_forward.1} parent=1 // pred_check
      _
    $region39: #{mlp_forward.1} parent=1 // pred_check_branch
      %36 = sbr.rel (0) target = $region41
    $region40: #{mlp_forward.1} parent=1 // pred_region
      _
    $region41: #{mlp_forward.1} parent=1 // pred_fallthru
      _
    // Predicated region
    $region42: #{mlp_forward.1} parent=1 // pred_check
      _
    $region43: #{mlp_forward.1} parent=1 // pred_check_branch
      %38 = sbr.rel (0) target = $region45
    $region44: #{mlp_forward.1} parent=1 // pred_region
      _
    $region45: #{mlp_forward.1} parent=1 // pred_fallthru
      _
    %v39 = vld [vmem:[%s0] sm:$0xff]
    %v40 = vld [vmem:[%s0 + $0x8] sm:$0xff]
    %v41 = vld [vmem:[%s0 + $0x10] sm:$0xff]
    %v42 = vld [vmem:[%s0 + $0x18] sm:$0xff]
    %v43 = vld [vmem:[%s0 + $0x20] sm:$0xff]
    %v44 = vld [vmem:[%s0 + $0x28] sm:$0xff]
    %v45 = vld [vmem:[%s0 + $0x30] sm:$0xff]
    %v46 = vld [vmem:[%s0 + $0x38] sm:$0xff]
    %v47 = vld [vmem:[%s1] sm:$0xff]
    %v48 = vld [vmem:[%s1 + $0x8] sm:$0xff]
    %v49 = vld [vmem:[%s1 + $0x10] sm:$0xff]
    %v50 = vld [vmem:[%s1 + $0x18] sm:$0xff]
    %v51 = vld [vmem:[%s1 + $0x20] sm:$0xff]
    %v52 = vld [vmem:[%s1 + $0x28] sm:$0xff]
    %v53 = vld [vmem:[%s1 + $0x30] sm:$0xff]
    %v54 = vld [vmem:[%s1 + $0x38] sm:$0xff]
    %v55 = vld [vmem:[%s2] sm:$0xff]
    %v56 = vld [vmem:[%s2 + $0x8] sm:$0xff]
    %v57 = vld [vmem:[%s2 + $0x10] sm:$0xff]
    %v58 = vld [vmem:[%s2 + $0x18] sm:$0xff]
    %v59 = vld [vmem:[%s2 + $0x20] sm:$0xff]
    %v60 = vld [vmem:[%s2 + $0x28] sm:$0xff]
    %v61 = vld [vmem:[%s2 + $0x30] sm:$0xff]
    %v62 = vld [vmem:[%s2 + $0x38] sm:$0xff]
    %64 = vset.pattern.permute.xlu0 0
    %65 = vperm.xlu0 %64, %v47
    %v66 = vpop.permute.xlu0 %65
    %69 = vset.pattern.permute.xlu0 0
    %70 = vperm.xlu0 %69, %v48
    %v71 = vpop.permute.xlu0 %70
    %74 = vset.pattern.permute.xlu0 0
    %75 = vperm.xlu0 %74, %v49
    %v76 = vpop.permute.xlu0 %75
    %79 = vset.pattern.permute.xlu0 0
    %80 = vperm.xlu0 %79, %v50
    %v81 = vpop.permute.xlu0 %80
    %84 = vset.pattern.permute.xlu0 0
    %85 = vperm.xlu0 %84, %v51
    %v86 = vpop.permute.xlu0 %85
    %89 = vset.pattern.permute.xlu0 0
    %90 = vperm.xlu0 %89, %v52
    %v91 = vpop.permute.xlu0 %90
    %94 = vset.pattern.permute.xlu0 0
    %95 = vperm.xlu0 %94, %v53
    %v96 = vpop.permute.xlu0 %95
    %99 = vset.pattern.permute.xlu0 0
    %100 = vperm.xlu0 %99, %v54
    %v101 = vpop.permute.xlu0 %100
    %v111 = vperm.slane %v39, 0
    %v112 = vperm.slane %v39, 4
    %v113 = vperm.slane %v40, 0
    %v114 = vperm.slane %v40, 4
    %v115 = vperm.slane %v41, 0
    %v116 = vperm.slane %v41, 4
    %v117 = vperm.slane %v42, 0
    %v118 = vperm.slane %v42, 4
    %v119 = vperm.slane %v43, 0
    %v120 = vperm.slane %v43, 4
    %v121 = vperm.slane %v44, 0
    %v122 = vperm.slane %v44, 4
    %v123 = vperm.slane %v45, 0
    %v124 = vperm.slane %v45, 4
    %v125 = vperm.slane %v46, 0
    %v126 = vperm.slane %v46, 4
    %v143 = vperm.slane %v111, 0
    %v144 = vperm.slane %v112, 0
    %v145 = vperm.slane %v113, 0
    %v146 = vperm.slane %v114, 0
    %v147 = vperm.slane %v115, 0
    %v148 = vperm.slane %v116, 0
    %v149 = vperm.slane %v117, 0
    %v150 = vperm.slane %v118, 0
    %v151 = vperm.slane %v119, 0
    %v152 = vperm.slane %v120, 0
    %v153 = vperm.slane %v121, 0
    %v154 = vperm.slane %v122, 0
    %v155 = vperm.slane %v123, 0
    %v156 = vperm.slane %v124, 0
    %v157 = vperm.slane %v125, 0
    %v158 = vperm.slane %v126, 0
    %v159 = vmul.f32 %v66, %v143
    %v160 = vmul.f32 %v66, %v144
    %v161 = vmul.f32 %v66, %v145
    %v162 = vmul.f32 %v66, %v146
    %v163 = vmul.f32 %v66, %v147
    %v164 = vmul.f32 %v66, %v148
    %v165 = vmul.f32 %v66, %v149
    %v166 = vmul.f32 %v66, %v150
    %v167 = vmul.f32 %v66, %v151
    %v168 = vmul.f32 %v66, %v152
    %v169 = vmul.f32 %v66, %v153
    %v170 = vmul.f32 %v66, %v154
    %v171 = vmul.f32 %v66, %v155
    %v172 = vmul.f32 %v66, %v156
    %v173 = vmul.f32 %v66, %v157
    %v174 = vmul.f32 %v66, %v158
    %v175 = vmul.f32 %v71, %v143
    %v176 = vmul.f32 %v71, %v144
    %v177 = vmul.f32 %v71, %v145
    %v178 = vmul.f32 %v71, %v146
    %v179 = vmul.f32 %v71, %v147
    %v180 = vmul.f32 %v71, %v148
    %v181 = vmul.f32 %v71, %v149
    %v182 = vmul.f32 %v71, %v150
    %v183 = vmul.f32 %v71, %v151
    %v184 = vmul.f32 %v71, %v152
    %v185 = vmul.f32 %v71, %v153
    %v186 = vmul.f32 %v71, %v154
    %v187 = vmul.f32 %v71, %v155
    %v188 = vmul.f32 %v71, %v156
    %v189 = vmul.f32 %v71, %v157
    %v190 = vmul.f32 %v71, %v158
    %v191 = vmul.f32 %v76, %v143
    %v192 = vmul.f32 %v76, %v144
    %v193 = vmul.f32 %v76, %v145
    %v194 = vmul.f32 %v76, %v146
    %v195 = vmul.f32 %v76, %v147
    %v196 = vmul.f32 %v76, %v148
    %v197 = vmul.f32 %v76, %v149
    %v198 = vmul.f32 %v76, %v150
    %v199 = vmul.f32 %v76, %v151
    %v200 = vmul.f32 %v76, %v152
    %v201 = vmul.f32 %v76, %v153
    %v202 = vmul.f32 %v76, %v154
    %v203 = vmul.f32 %v76, %v155
    %v204 = vmul.f32 %v76, %v156
    %v205 = vmul.f32 %v76, %v157
    %v206 = vmul.f32 %v76, %v158
    %v207 = vmul.f32 %v81, %v143
    %v208 = vmul.f32 %v81, %v144
    %v209 = vmul.f32 %v81, %v145
    %v210 = vmul.f32 %v81, %v146
    %v211 = vmul.f32 %v81, %v147
    %v212 = vmul.f32 %v81, %v148
    %v213 = vmul.f32 %v81, %v149
    %v214 = vmul.f32 %v81, %v150
    %v215 = vmul.f32 %v81, %v151
    %v216 = vmul.f32 %v81, %v152
    %v217 = vmul.f32 %v81, %v153
    %v218 = vmul.f32 %v81, %v154
    %v219 = vmul.f32 %v81, %v155
    %v220 = vmul.f32 %v81, %v156
    %v221 = vmul.f32 %v81, %v157
    %v222 = vmul.f32 %v81, %v158
    %v223 = vmul.f32 %v86, %v143
    %v224 = vmul.f32 %v86, %v144
    %v225 = vmul.f32 %v86, %v145
    %v226 = vmul.f32 %v86, %v146
    %v227 = vmul.f32 %v86, %v147
    %v228 = vmul.f32 %v86, %v148
    %v229 = vmul.f32 %v86, %v149
    %v230 = vmul.f32 %v86, %v150
    %v231 = vmul.f32 %v86, %v151
    %v232 = vmul.f32 %v86, %v152
    %v233 = vmul.f32 %v86, %v153
    %v234 = vmul.f32 %v86, %v154
    %v235 = vmul.f32 %v86, %v155
    %v236 = vmul.f32 %v86, %v156
    %v237 = vmul.f32 %v86, %v157
    %v238 = vmul.f32 %v86, %v158
    %v239 = vmul.f32 %v91, %v143
    %v240 = vmul.f32 %v91, %v144
    %v241 = vmul.f32 %v91, %v145
    %v242 = vmul.f32 %v91, %v146
    %v243 = vmul.f32 %v91, %v147
    %v244 = vmul.f32 %v91, %v148
    %v245 = vmul.f32 %v91, %v149
    %v246 = vmul.f32 %v91, %v150
    %v247 = vmul.f32 %v91, %v151
    %v248 = vmul.f32 %v91, %v152
    %v249 = vmul.f32 %v91, %v153
    %v250 = vmul.f32 %v91, %v154
    %v251 = vmul.f32 %v91, %v155
    %v252 = vmul.f32 %v91, %v156
    %v253 = vmul.f32 %v91, %v157
    %v254 = vmul.f32 %v91, %v158
    %v255 = vmul.f32 %v96, %v143
    %v256 = vmul.f32 %v96, %v144
    %v257 = vmul.f32 %v96, %v145
    %v258 = vmul.f32 %v96, %v146
    %v259 = vmul.f32 %v96, %v147
    %v260 = vmul.f32 %v96, %v148
    %v261 = vmul.f32 %v96, %v149
    %v262 = vmul.f32 %v96, %v150
    %v263 = vmul.f32 %v96, %v151
    %v264 = vmul.f32 %v96, %v152
    %v265 = vmul.f32 %v96, %v153
    %v266 = vmul.f32 %v96, %v154
    %v267 = vmul.f32 %v96, %v155
    %v268 = vmul.f32 %v96, %v156
    %v269 = vmul.f32 %v96, %v157
    %v270 = vmul.f32 %v96, %v158
    %v271 = vmul.f32 %v101, %v143
    %v272 = vmul.f32 %v101, %v144
    %v273 = vmul.f32 %v101, %v145
    %v274 = vmul.f32 %v101, %v146
    %v275 = vmul.f32 %v101, %v147
    %v276 = vmul.f32 %v101, %v148
    %v277 = vmul.f32 %v101, %v149
    %v278 = vmul.f32 %v101, %v150
    %v279 = vmul.f32 %v101, %v151
    %v280 = vmul.f32 %v101, %v152
    %v281 = vmul.f32 %v101, %v153
    %v282 = vmul.f32 %v101, %v154
    %v283 = vmul.f32 %v101, %v155
    %v284 = vmul.f32 %v101, %v156
    %v285 = vmul.f32 %v101, %v157
    %v286 = vmul.f32 %v101, %v158
    %287 = vset.pattern.permute.xlu0 1
    %288 = vperm.xlu0 %287, %v47
    %v289 = vpop.permute.xlu0 %288
    %291 = vset.pattern.permute.xlu0 1
    %292 = vperm.xlu0 %291, %v48
    %v293 = vpop.permute.xlu0 %292
    %295 = vset.pattern.permute.xlu0 1
    %296 = vperm.xlu0 %295, %v49
    %v297 = vpop.permute.xlu0 %296
    %299 = vset.pattern.permute.xlu0 1
    %300 = vperm.xlu0 %299, %v50
    %v301 = vpop.permute.xlu0 %300
    %303 = vset.pattern.permute.xlu0 1
    %304 = vperm.xlu0 %303, %v51
    %v305 = vpop.permute.xlu0 %304
    %307 = vset.pattern.permute.xlu0 1
    %308 = vperm.xlu0 %307, %v52
    %v309 = vpop.permute.xlu0 %308
    %311 = vset.pattern.permute.xlu0 1
    %312 = vperm.xlu0 %311, %v53
    %v313 = vpop.permute.xlu0 %312
    %315 = vset.pattern.permute.xlu0 1
    %316 = vperm.xlu0 %315, %v54
    %v317 = vpop.permute.xlu0 %316
    %v319 = vperm.slane %v39, 1
    %v320 = vperm.slane %v39, 5
    %v321 = vperm.slane %v40, 1
    %v322 = vperm.slane %v40, 5
    %v323 = vperm.slane %v41, 1
    %v324 = vperm.slane %v41, 5
    %v325 = vperm.slane %v42, 1
    %v326 = vperm.slane %v42, 5
    %v327 = vperm.slane %v43, 1
    %v328 = vperm.slane %v43, 5
    %v329 = vperm.slane %v44, 1
    %v330 = vperm.slane %v44, 5
    %v331 = vperm.slane %v45, 1
    %v332 = vperm.slane %v45, 5
    %v333 = vperm.slane %v46, 1
    %v334 = vperm.slane %v46, 5
    %v351 = vperm.slane %v319, 1
    %v352 = vperm.slane %v320, 1
    %v353 = vperm.slane %v321, 1
    %v354 = vperm.slane %v322, 1
    %v355 = vperm.slane %v323, 1
    %v356 = vperm.slane %v324, 1
    %v357 = vperm.slane %v325, 1
    %v358 = vperm.slane %v326, 1
    %v359 = vperm.slane %v327, 1
    %v360 = vperm.slane %v328, 1
    %v361 = vperm.slane %v329, 1
    %v362 = vperm.slane %v330, 1
    %v363 = vperm.slane %v331, 1
    %v364 = vperm.slane %v332, 1
    %v365 = vperm.slane %v333, 1
    %v366 = vperm.slane %v334, 1
    %v367 = vmul.f32 %v289, %v351
    %v368 = vmul.f32 %v289, %v352
    %v369 = vmul.f32 %v289, %v353
    %v370 = vmul.f32 %v289, %v354
    %v371 = vmul.f32 %v289, %v355
    %v372 = vmul.f32 %v289, %v356
    %v373 = vmul.f32 %v289, %v357
    %v374 = vmul.f32 %v289, %v358
    %v375 = vmul.f32 %v289, %v359
    %v376 = vmul.f32 %v289, %v360
    %v377 = vmul.f32 %v289, %v361
    %v378 = vmul.f32 %v289, %v362
    %v379 = vmul.f32 %v289, %v363
    %v380 = vmul.f32 %v289, %v364
    %v381 = vmul.f32 %v289, %v365
    %v382 = vmul.f32 %v289, %v366
    %v383 = vmul.f32 %v293, %v351
    %v384 = vmul.f32 %v293, %v352
    %v385 = vmul.f32 %v293, %v353
    %v386 = vmul.f32 %v293, %v354
    %v387 = vmul.f32 %v293, %v355
    %v388 = vmul.f32 %v293, %v356
    %v389 = vmul.f32 %v293, %v357
    %v390 = vmul.f32 %v293, %v358
    %v391 = vmul.f32 %v293, %v359
    %v392 = vmul.f32 %v293, %v360
    %v393 = vmul.f32 %v293, %v361
    %v394 = vmul.f32 %v293, %v362
    %v395 = vmul.f32 %v293, %v363
    %v396 = vmul.f32 %v293, %v364
    %v397 = vmul.f32 %v293, %v365
    %v398 = vmul.f32 %v293, %v366
    %v399 = vmul.f32 %v297, %v351
    %v400 = vmul.f32 %v297, %v352
    %v401 = vmul.f32 %v297, %v353
    %v402 = vmul.f32 %v297, %v354
    %v403 = vmul.f32 %v297, %v355
    %v404 = vmul.f32 %v297, %v356
    %v405 = vmul.f32 %v297, %v357
    %v406 = vmul.f32 %v297, %v358
    %v407 = vmul.f32 %v297, %v359
    %v408 = vmul.f32 %v297, %v360
    %v409 = vmul.f32 %v297, %v361
    %v410 = vmul.f32 %v297, %v362
    %v411 = vmul.f32 %v297, %v363
    %v412 = vmul.f32 %v297, %v364
    %v413 = vmul.f32 %v297, %v365
    %v414 = vmul.f32 %v297, %v366
    %v415 = vmul.f32 %v301, %v351
    %v416 = vmul.f32 %v301, %v352
    %v417 = vmul.f32 %v301, %v353
    %v418 = vmul.f32 %v301, %v354
    %v419 = vmul.f32 %v301, %v355
    %v420 = vmul.f32 %v301, %v356
    %v421 = vmul.f32 %v301, %v357
    %v422 = vmul.f32 %v301, %v358
    %v423 = vmul.f32 %v301, %v359
    %v424 = vmul.f32 %v301, %v360
    %v425 = vmul.f32 %v301, %v361
    %v426 = vmul.f32 %v301, %v362
    %v427 = vmul.f32 %v301, %v363
    %v428 = vmul.f32 %v301, %v364
    %v429 = vmul.f32 %v301, %v365
    %v430 = vmul.f32 %v301, %v366
    %v431 = vmul.f32 %v305, %v351
    %v432 = vmul.f32 %v305, %v352
    %v433 = vmul.f32 %v305, %v353
    %v434 = vmul.f32 %v305, %v354
    %v435 = vmul.f32 %v305, %v355
    %v436 = vmul.f32 %v305, %v356
    %v437 = vmul.f32 %v305, %v357
    %v438 = vmul.f32 %v305, %v358
    %v439 = vmul.f32 %v305, %v359
    %v440 = vmul.f32 %v305, %v360
    %v441 = vmul.f32 %v305, %v361
    %v442 = vmul.f32 %v305, %v362
    %v443 = vmul.f32 %v305, %v363
    %v444 = vmul.f32 %v305, %v364
    %v445 = vmul.f32 %v305, %v365
    %v446 = vmul.f32 %v305, %v366
    %v447 = vmul.f32 %v309, %v351
    %v448 = vmul.f32 %v309, %v352
    %v449 = vmul.f32 %v309, %v353
    %v450 = vmul.f32 %v309, %v354
    %v451 = vmul.f32 %v309, %v355
    %v452 = vmul.f32 %v309, %v356
    %v453 = vmul.f32 %v309, %v357
    %v454 = vmul.f32 %v309, %v358
    %v455 = vmul.f32 %v309, %v359
    %v456 = vmul.f32 %v309, %v360
    %v457 = vmul.f32 %v309, %v361
    %v458 = vmul.f32 %v309, %v362
    %v459 = vmul.f32 %v309, %v363
    %v460 = vmul.f32 %v309, %v364
    %v461 = vmul.f32 %v309, %v365
    %v462 = vmul.f32 %v309, %v366
    %v463 = vmul.f32 %v313, %v351
    %v464 = vmul.f32 %v313, %v352
    %v465 = vmul.f32 %v313, %v353
    %v466 = vmul.f32 %v313, %v354
    %v467 = vmul.f32 %v313, %v355
    %v468 = vmul.f32 %v313, %v356
    %v469 = vmul.f32 %v313, %v357
    %v470 = vmul.f32 %v313, %v358
    %v471 = vmul.f32 %v313, %v359
    %v472 = vmul.f32 %v313, %v360
    %v473 = vmul.f32 %v313, %v361
    %v474 = vmul.f32 %v313, %v362
    %v475 = vmul.f32 %v313, %v363
    %v476 = vmul.f32 %v313, %v364
    %v477 = vmul.f32 %v313, %v365
    %v478 = vmul.f32 %v313, %v366
    %v479 = vmul.f32 %v317, %v351
    %v480 = vmul.f32 %v317, %v352
    %v481 = vmul.f32 %v317, %v353
    %v482 = vmul.f32 %v317, %v354
    %v483 = vmul.f32 %v317, %v355
    %v484 = vmul.f32 %v317, %v356
    %v485 = vmul.f32 %v317, %v357
    %v486 = vmul.f32 %v317, %v358
    %v487 = vmul.f32 %v317, %v359
    %v488 = vmul.f32 %v317, %v360
    %v489 = vmul.f32 %v317, %v361
    %v490 = vmul.f32 %v317, %v362
    %v491 = vmul.f32 %v317, %v363
    %v492 = vmul.f32 %v317, %v364
    %v493 = vmul.f32 %v317, %v365
    %v494 = vmul.f32 %v317, %v366
    %v495 = vadd.f32 %v159, %v367
    %v496 = vadd.f32 %v160, %v368
    %v497 = vadd.f32 %v161, %v369
    %v498 = vadd.f32 %v162, %v370
    %v499 = vadd.f32 %v163, %v371
    %v500 = vadd.f32 %v164, %v372
    %v501 = vadd.f32 %v165, %v373
    %v502 = vadd.f32 %v166, %v374
    %v503 = vadd.f32 %v167, %v375
    %v504 = vadd.f32 %v168, %v376
    %v505 = vadd.f32 %v169, %v377
    %v506 = vadd.f32 %v170, %v378
    %v507 = vadd.f32 %v171, %v379
    %v508 = vadd.f32 %v172, %v380
    %v509 = vadd.f32 %v173, %v381
    %v510 = vadd.f32 %v174, %v382
    %v511 = vadd.f32 %v175, %v383
    %v512 = vadd.f32 %v176, %v384
    %v513 = vadd.f32 %v177, %v385
    %v514 = vadd.f32 %v178, %v386
    %v515 = vadd.f32 %v179, %v387
    %v516 = vadd.f32 %v180, %v388
    %v517 = vadd.f32 %v181, %v389
    %v518 = vadd.f32 %v182, %v390
    %v519 = vadd.f32 %v183, %v391
    %v520 = vadd.f32 %v184, %v392
    %v521 = vadd.f32 %v185, %v393
    %v522 = vadd.f32 %v186, %v394
    %v523 = vadd.f32 %v187, %v395
    %v524 = vadd.f32 %v188, %v396
    %v525 = vadd.f32 %v189, %v397
    %v526 = vadd.f32 %v190, %v398
    %v527 = vadd.f32 %v191, %v399
    %v528 = vadd.f32 %v192, %v400
    %v529 = vadd.f32 %v193, %v401
    %v530 = vadd.f32 %v194, %v402
    %v531 = vadd.f32 %v195, %v403
    %v532 = vadd.f32 %v196, %v404
    %v533 = vadd.f32 %v197, %v405
    %v534 = vadd.f32 %v198, %v406
    %v535 = vadd.f32 %v199, %v407
    %v536 = vadd.f32 %v200, %v408
    %v537 = vadd.f32 %v201, %v409
    %v538 = vadd.f32 %v202, %v410
    %v539 = vadd.f32 %v203, %v411
    %v540 = vadd.f32 %v204, %v412
    %v541 = vadd.f32 %v205, %v413
    %v542 = vadd.f32 %v206, %v414
    %v543 = vadd.f32 %v207, %v415
    %v544 = vadd.f32 %v208, %v416
    %v545 = vadd.f32 %v209, %v417
    %v546 = vadd.f32 %v210, %v418
    %v547 = vadd.f32 %v211, %v419
    %v548 = vadd.f32 %v212, %v420
    %v549 = vadd.f32 %v213, %v421
    %v550 = vadd.f32 %v214, %v422
    %v551 = vadd.f32 %v215, %v423
    %v552 = vadd.f32 %v216, %v424
    %v553 = vadd.f32 %v217, %v425
    %v554 = vadd.f32 %v218, %v426
    %v555 = vadd.f32 %v219, %v427
    %v556 = vadd.f32 %v220, %v428
    %v557 = vadd.f32 %v221, %v429
    %v558 = vadd.f32 %v222, %v430
    %v559 = vadd.f32 %v223, %v431
    %v560 = vadd.f32 %v224, %v432
    %v561 = vadd.f32 %v225, %v433
    %v562 = vadd.f32 %v226, %v434
    %v563 = vadd.f32 %v227, %v435
    %v564 = vadd.f32 %v228, %v436
    %v565 = vadd.f32 %v229, %v437
    %v566 = vadd.f32 %v230, %v438
    %v567 = vadd.f32 %v231, %v439
    %v568 = vadd.f32 %v232, %v440
    %v569 = vadd.f32 %v233, %v441
    %v570 = vadd.f32 %v234, %v442
    %v571 = vadd.f32 %v235, %v443
    %v572 = vadd.f32 %v236, %v444
    %v573 = vadd.f32 %v237, %v445
    %v574 = vadd.f32 %v238, %v446
    %v575 = vadd.f32 %v239, %v447
    %v576 = vadd.f32 %v240, %v448
    %v577 = vadd.f32 %v241, %v449
    %v578 = vadd.f32 %v242, %v450
    %v579 = vadd.f32 %v243, %v451
    %v580 = vadd.f32 %v244, %v452
    %v581 = vadd.f32 %v245, %v453
    %v582 = vadd.f32 %v246, %v454
    %v583 = vadd.f32 %v247, %v455
    %v584 = vadd.f32 %v248, %v456
    %v585 = vadd.f32 %v249, %v457
    %v586 = vadd.f32 %v250, %v458
    %v587 = vadd.f32 %v251, %v459
    %v588 = vadd.f32 %v252, %v460
    %v589 = vadd.f32 %v253, %v461
    %v590 = vadd.f32 %v254, %v462
    %v591 = vadd.f32 %v255, %v463
    %v592 = vadd.f32 %v256, %v464
    %v593 = vadd.f32 %v257, %v465
    %v594 = vadd.f32 %v258, %v466
    %v595 = vadd.f32 %v259, %v467
    %v596 = vadd.f32 %v260, %v468
    %v597 = vadd.f32 %v261, %v469
    %v598 = vadd.f32 %v262, %v470
    %v599 = vadd.f32 %v263, %v471
    %v600 = vadd.f32 %v264, %v472
    %v601 = vadd.f32 %v265, %v473
    %v602 = vadd.f32 %v266, %v474
    %v603 = vadd.f32 %v267, %v475
    %v604 = vadd.f32 %v268, %v476
    %v605 = vadd.f32 %v269, %v477
    %v606 = vadd.f32 %v270, %v478
    %v607 = vadd.f32 %v271, %v479
    %v608 = vadd.f32 %v272, %v480
    %v609 = vadd.f32 %v273, %v481
    %v610 = vadd.f32 %v274, %v482
    %v611 = vadd.f32 %v275, %v483
    %v612 = vadd.f32 %v276, %v484
    %v613 = vadd.f32 %v277, %v485
    %v614 = vadd.f32 %v278, %v486
    %v615 = vadd.f32 %v279, %v487
    %v616 = vadd.f32 %v280, %v488
    %v617 = vadd.f32 %v281, %v489
    %v618 = vadd.f32 %v282, %v490
    %v619 = vadd.f32 %v283, %v491
    %v620 = vadd.f32 %v284, %v492
    %v621 = vadd.f32 %v285, %v493
    %v622 = vadd.f32 %v286, %v494
    %623 = vset.pattern.permute.xlu0 2
    %624 = vperm.xlu0 %623, %v47
    %v625 = vpop.permute.xlu0 %624
    %627 = vset.pattern.permute.xlu0 2
    %628 = vperm.xlu0 %627, %v48
    %v629 = vpop.permute.xlu0 %628
    %631 = vset.pattern.permute.xlu0 2
    %632 = vperm.xlu0 %631, %v49
    %v633 = vpop.permute.xlu0 %632
    %635 = vset.pattern.permute.xlu0 2
    %636 = vperm.xlu0 %635, %v50
    %v637 = vpop.permute.xlu0 %636
    %639 = vset.pattern.permute.xlu0 2
    %640 = vperm.xlu0 %639, %v51
    %v641 = vpop.permute.xlu0 %640
    %643 = vset.pattern.permute.xlu0 2
    %644 = vperm.xlu0 %643, %v52
    %v645 = vpop.permute.xlu0 %644
    %647 = vset.pattern.permute.xlu0 2
    %648 = vperm.xlu0 %647, %v53
    %v649 = vpop.permute.xlu0 %648
    %651 = vset.pattern.permute.xlu0 2
    %652 = vperm.xlu0 %651, %v54
    %v653 = vpop.permute.xlu0 %652
    %v655 = vperm.slane %v39, 2
    %v656 = vperm.slane %v39, 6
    %v657 = vperm.slane %v40, 2
    %v658 = vperm.slane %v40, 6
    %v659 = vperm.slane %v41, 2
    %v660 = vperm.slane %v41, 6
    %v661 = vperm.slane %v42, 2
    %v662 = vperm.slane %v42, 6
    %v663 = vperm.slane %v43, 2
    %v664 = vperm.slane %v43, 6
    %v665 = vperm.slane %v44, 2
    %v666 = vperm.slane %v44, 6
    %v667 = vperm.slane %v45, 2
    %v668 = vperm.slane %v45, 6
    %v669 = vperm.slane %v46, 2
    %v670 = vperm.slane %v46, 6
    %v687 = vperm.slane %v655, 2
    %v688 = vperm.slane %v656, 2
    %v689 = vperm.slane %v657, 2
    %v690 = vperm.slane %v658, 2
    %v691 = vperm.slane %v659, 2
    %v692 = vperm.slane %v660, 2
    %v693 = vperm.slane %v661, 2
    %v694 = vperm.slane %v662, 2
    %v695 = vperm.slane %v663, 2
    %v696 = vperm.slane %v664, 2
    %v697 = vperm.slane %v665, 2
    %v698 = vperm.slane %v666, 2
    %v699 = vperm.slane %v667, 2
    %v700 = vperm.slane %v668, 2
    %v701 = vperm.slane %v669, 2
    %v702 = vperm.slane %v670, 2
    %v703 = vmul.f32 %v625, %v687
    %v704 = vmul.f32 %v625, %v688
    %v705 = vmul.f32 %v625, %v689
    %v706 = vmul.f32 %v625, %v690
    %v707 = vmul.f32 %v625, %v691
    %v708 = vmul.f32 %v625, %v692
    %v709 = vmul.f32 %v625, %v693
    %v710 = vmul.f32 %v625, %v694
    %v711 = vmul.f32 %v625, %v695
    %v712 = vmul.f32 %v625, %v696
    %v713 = vmul.f32 %v625, %v697
    %v714 = vmul.f32 %v625, %v698
    %v715 = vmul.f32 %v625, %v699
    %v716 = vmul.f32 %v625, %v700
    %v717 = vmul.f32 %v625, %v701
    %v718 = vmul.f32 %v625, %v702
    %v719 = vmul.f32 %v629, %v687
    %v720 = vmul.f32 %v629, %v688
    %v721 = vmul.f32 %v629, %v689
    %v722 = vmul.f32 %v629, %v690
    %v723 = vmul.f32 %v629, %v691
    %v724 = vmul.f32 %v629, %v692
    %v725 = vmul.f32 %v629, %v693
    %v726 = vmul.f32 %v629, %v694
    %v727 = vmul.f32 %v629, %v695
    %v728 = vmul.f32 %v629, %v696
    %v729 = vmul.f32 %v629, %v697
    %v730 = vmul.f32 %v629, %v698
    %v731 = vmul.f32 %v629, %v699
    %v732 = vmul.f32 %v629, %v700
    %v733 = vmul.f32 %v629, %v701
    %v734 = vmul.f32 %v629, %v702
    %v735 = vmul.f32 %v633, %v687
    %v736 = vmul.f32 %v633, %v688
    %v737 = vmul.f32 %v633, %v689
    %v738 = vmul.f32 %v633, %v690
    %v739 = vmul.f32 %v633, %v691
    %v740 = vmul.f32 %v633, %v692
    %v741 = vmul.f32 %v633, %v693
    %v742 = vmul.f32 %v633, %v694
    %v743 = vmul.f32 %v633, %v695
    %v744 = vmul.f32 %v633, %v696
    %v745 = vmul.f32 %v633, %v697
    %v746 = vmul.f32 %v633, %v698
    %v747 = vmul.f32 %v633, %v699
    %v748 = vmul.f32 %v633, %v700
    %v749 = vmul.f32 %v633, %v701
    %v750 = vmul.f32 %v633, %v702
    %v751 = vmul.f32 %v637, %v687
    %v752 = vmul.f32 %v637, %v688
    %v753 = vmul.f32 %v637, %v689
    %v754 = vmul.f32 %v637, %v690
    %v755 = vmul.f32 %v637, %v691
    %v756 = vmul.f32 %v637, %v692
    %v757 = vmul.f32 %v637, %v693
    %v758 = vmul.f32 %v637, %v694
    %v759 = vmul.f32 %v637, %v695
    %v760 = vmul.f32 %v637, %v696
    %v761 = vmul.f32 %v637, %v697
    %v762 = vmul.f32 %v637, %v698
    %v763 = vmul.f32 %v637, %v699
    %v764 = vmul.f32 %v637, %v700
    %v765 = vmul.f32 %v637, %v701
    %v766 = vmul.f32 %v637, %v702
    %v767 = vmul.f32 %v641, %v687
    %v768 = vmul.f32 %v641, %v688
    %v769 = vmul.f32 %v641, %v689
    %v770 = vmul.f32 %v641, %v690
    %v771 = vmul.f32 %v641, %v691
    %v772 = vmul.f32 %v641, %v692
    %v773 = vmul.f32 %v641, %v693
    %v774 = vmul.f32 %v641, %v694
    %v775 = vmul.f32 %v641, %v695
    %v776 = vmul.f32 %v641, %v696
    %v777 = vmul.f32 %v641, %v697
    %v778 = vmul.f32 %v641, %v698
    %v779 = vmul.f32 %v641, %v699
    %v780 = vmul.f32 %v641, %v700
    %v781 = vmul.f32 %v641, %v701
    %v782 = vmul.f32 %v641, %v702
    %v783 = vmul.f32 %v645, %v687
    %v784 = vmul.f32 %v645, %v688
    %v785 = vmul.f32 %v645, %v689
    %v786 = vmul.f32 %v645, %v690
    %v787 = vmul.f32 %v645, %v691
    %v788 = vmul.f32 %v645, %v692
    %v789 = vmul.f32 %v645, %v693
    %v790 = vmul.f32 %v645, %v694
    %v791 = vmul.f32 %v645, %v695
    %v792 = vmul.f32 %v645, %v696
    %v793 = vmul.f32 %v645, %v697
    %v794 = vmul.f32 %v645, %v698
    %v795 = vmul.f32 %v645, %v699
    %v796 = vmul.f32 %v645, %v700
    %v797 = vmul.f32 %v645, %v701
    %v798 = vmul.f32 %v645, %v702
    %v799 = vmul.f32 %v649, %v687
    %v800 = vmul.f32 %v649, %v688
    %v801 = vmul.f32 %v649, %v689
    %v802 = vmul.f32 %v649, %v690
    %v803 = vmul.f32 %v649, %v691
    %v804 = vmul.f32 %v649, %v692
    %v805 = vmul.f32 %v649, %v693
    %v806 = vmul.f32 %v649, %v694
    %v807 = vmul.f32 %v649, %v695
    %v808 = vmul.f32 %v649, %v696
    %v809 = vmul.f32 %v649, %v697
    %v810 = vmul.f32 %v649, %v698
    %v811 = vmul.f32 %v649, %v699
    %v812 = vmul.f32 %v649, %v700
    %v813 = vmul.f32 %v649, %v701
    %v814 = vmul.f32 %v649, %v702
    %v815 = vmul.f32 %v653, %v687
    %v816 = vmul.f32 %v653, %v688
    %v817 = vmul.f32 %v653, %v689
    %v818 = vmul.f32 %v653, %v690
    %v819 = vmul.f32 %v653, %v691
    %v820 = vmul.f32 %v653, %v692
    %v821 = vmul.f32 %v653, %v693
    %v822 = vmul.f32 %v653, %v694
    %v823 = vmul.f32 %v653, %v695
    %v824 = vmul.f32 %v653, %v696
    %v825 = vmul.f32 %v653, %v697
    %v826 = vmul.f32 %v653, %v698
    %v827 = vmul.f32 %v653, %v699
    %v828 = vmul.f32 %v653, %v700
    %v829 = vmul.f32 %v653, %v701
    %v830 = vmul.f32 %v653, %v702
    %v831 = vadd.f32 %v495, %v703
    %v832 = vadd.f32 %v496, %v704
    %v833 = vadd.f32 %v497, %v705
    %v834 = vadd.f32 %v498, %v706
    %v835 = vadd.f32 %v499, %v707
    %v836 = vadd.f32 %v500, %v708
    %v837 = vadd.f32 %v501, %v709
    %v838 = vadd.f32 %v502, %v710
    %v839 = vadd.f32 %v503, %v711
    %v840 = vadd.f32 %v504, %v712
    %v841 = vadd.f32 %v505, %v713
    %v842 = vadd.f32 %v506, %v714
    %v843 = vadd.f32 %v507, %v715
    %v844 = vadd.f32 %v508, %v716
    %v845 = vadd.f32 %v509, %v717
    %v846 = vadd.f32 %v510, %v718
    %v847 = vadd.f32 %v511, %v719
    %v848 = vadd.f32 %v512, %v720
    %v849 = vadd.f32 %v513, %v721
    %v850 = vadd.f32 %v514, %v722
    %v851 = vadd.f32 %v515, %v723
    %v852 = vadd.f32 %v516, %v724
    %v853 = vadd.f32 %v517, %v725
    %v854 = vadd.f32 %v518, %v726
    %v855 = vadd.f32 %v519, %v727
    %v856 = vadd.f32 %v520, %v728
    %v857 = vadd.f32 %v521, %v729
    %v858 = vadd.f32 %v522, %v730
    %v859 = vadd.f32 %v523, %v731
    %v860 = vadd.f32 %v524, %v732
    %v861 = vadd.f32 %v525, %v733
    %v862 = vadd.f32 %v526, %v734
    %v863 = vadd.f32 %v527, %v735
    %v864 = vadd.f32 %v528, %v736
    %v865 = vadd.f32 %v529, %v737
    %v866 = vadd.f32 %v530, %v738
    %v867 = vadd.f32 %v531, %v739
    %v868 = vadd.f32 %v532, %v740
    %v869 = vadd.f32 %v533, %v741
    %v870 = vadd.f32 %v534, %v742
    %v871 = vadd.f32 %v535, %v743
    %v872 = vadd.f32 %v536, %v744
    %v873 = vadd.f32 %v537, %v745
    %v874 = vadd.f32 %v538, %v746
    %v875 = vadd.f32 %v539, %v747
    %v876 = vadd.f32 %v540, %v748
    %v877 = vadd.f32 %v541, %v749
    %v878 = vadd.f32 %v542, %v750
    %v879 = vadd.f32 %v543, %v751
    %v880 = vadd.f32 %v544, %v752
    %v881 = vadd.f32 %v545, %v753
    %v882 = vadd.f32 %v546, %v754
    %v883 = vadd.f32 %v547, %v755
    %v884 = vadd.f32 %v548, %v756
    %v885 = vadd.f32 %v549, %v757
    %v886 = vadd.f32 %v550, %v758
    %v887 = vadd.f32 %v551, %v759
    %v888 = vadd.f32 %v552, %v760
    %v889 = vadd.f32 %v553, %v761
    %v890 = vadd.f32 %v554, %v762
    %v891 = vadd.f32 %v555, %v763
    %v892 = vadd.f32 %v556, %v764
    %v893 = vadd.f32 %v557, %v765
    %v894 = vadd.f32 %v558, %v766
    %v895 = vadd.f32 %v559, %v767
    %v896 = vadd.f32 %v560, %v768
    %v897 = vadd.f32 %v561, %v769
    %v898 = vadd.f32 %v562, %v770
    %v899 = vadd.f32 %v563, %v771
    %v900 = vadd.f32 %v564, %v772
    %v901 = vadd.f32 %v565, %v773
    %v902 = vadd.f32 %v566, %v774
    %v903 = vadd.f32 %v567, %v775
    %v904 = vadd.f32 %v568, %v776
    %v905 = vadd.f32 %v569, %v777
    %v906 = vadd.f32 %v570, %v778
    %v907 = vadd.f32 %v571, %v779
    %v908 = vadd.f32 %v572, %v780
    %v909 = vadd.f32 %v573, %v781
    %v910 = vadd.f32 %v574, %v782
    %v911 = vadd.f32 %v575, %v783
    %v912 = vadd.f32 %v576, %v784
    %v913 = vadd.f32 %v577, %v785
    %v914 = vadd.f32 %v578, %v786
    %v915 = vadd.f32 %v579, %v787
    %v916 = vadd.f32 %v580, %v788
    %v917 = vadd.f32 %v581, %v789
    %v918 = vadd.f32 %v582, %v790
    %v919 = vadd.f32 %v583, %v791
    %v920 = vadd.f32 %v584, %v792
    %v921 = vadd.f32 %v585, %v793
    %v922 = vadd.f32 %v586, %v794
    %v923 = vadd.f32 %v587, %v795
    %v924 = vadd.f32 %v588, %v796
    %v925 = vadd.f32 %v589, %v797
    %v926 = vadd.f32 %v590, %v798
    %v927 = vadd.f32 %v591, %v799
    %v928 = vadd.f32 %v592, %v800
    %v929 = vadd.f32 %v593, %v801
    %v930 = vadd.f32 %v594, %v802
    %v931 = vadd.f32 %v595, %v803
    %v932 = vadd.f32 %v596, %v804
    %v933 = vadd.f32 %v597, %v805
    %v934 = vadd.f32 %v598, %v806
    %v935 = vadd.f32 %v599, %v807
    %v936 = vadd.f32 %v600, %v808
    %v937 = vadd.f32 %v601, %v809
    %v938 = vadd.f32 %v602, %v810
    %v939 = vadd.f32 %v603, %v811
    %v940 = vadd.f32 %v604, %v812
    %v941 = vadd.f32 %v605, %v813
    %v942 = vadd.f32 %v606, %v814
    %v943 = vadd.f32 %v607, %v815
    %v944 = vadd.f32 %v608, %v816
    %v945 = vadd.f32 %v609, %v817
    %v946 = vadd.f32 %v610, %v818
    %v947 = vadd.f32 %v611, %v819
    %v948 = vadd.f32 %v612, %v820
    %v949 = vadd.f32 %v613, %v821
    %v950 = vadd.f32 %v614, %v822
    %v951 = vadd.f32 %v615, %v823
    %v952 = vadd.f32 %v616, %v824
    %v953 = vadd.f32 %v617, %v825
    %v954 = vadd.f32 %v618, %v826
    %v955 = vadd.f32 %v619, %v827
    %v956 = vadd.f32 %v620, %v828
    %v957 = vadd.f32 %v621, %v829
    %v958 = vadd.f32 %v622, %v830
    %959 = vset.pattern.permute.xlu0 3
    %960 = vperm.xlu0 %959, %v47
    %v961 = vpop.permute.xlu0 %960
    %963 = vset.pattern.permute.xlu0 3
    %964 = vperm.xlu0 %963, %v48
    %v965 = vpop.permute.xlu0 %964
    %967 = vset.pattern.permute.xlu0 3
    %968 = vperm.xlu0 %967, %v49
    %v969 = vpop.permute.xlu0 %968
    %971 = vset.pattern.permute.xlu0 3
    %972 = vperm.xlu0 %971, %v50
    %v973 = vpop.permute.xlu0 %972
    %975 = vset.pattern.permute.xlu0 3
    %976 = vperm.xlu0 %975, %v51
    %v977 = vpop.permute.xlu0 %976
    %979 = vset.pattern.permute.xlu0 3
    %980 = vperm.xlu0 %979, %v52
    %v981 = vpop.permute.xlu0 %980
    %983 = vset.pattern.permute.xlu0 3
    %984 = vperm.xlu0 %983, %v53
    %v985 = vpop.permute.xlu0 %984
    %987 = vset.pattern.permute.xlu0 3
    %988 = vperm.xlu0 %987, %v54
    %v989 = vpop.permute.xlu0 %988
    %v991 = vperm.slane %v39, 3
    %v992 = vperm.slane %v39, 7
    %v993 = vperm.slane %v40, 3
    %v994 = vperm.slane %v40, 7
    %v995 = vperm.slane %v41, 3
    %v996 = vperm.slane %v41, 7
    %v997 = vperm.slane %v42, 3
    %v998 = vperm.slane %v42, 7
    %v999 = vperm.slane %v43, 3
    %v1000 = vperm.slane %v43, 7
    %v1001 = vperm.slane %v44, 3
    %v1002 = vperm.slane %v44, 7
    %v1003 = vperm.slane %v45, 3
    %v1004 = vperm.slane %v45, 7
    %v1005 = vperm.slane %v46, 3
    %v1006 = vperm.slane %v46, 7
    %v1023 = vperm.slane %v991, 3
    %v1024 = vperm.slane %v992, 3
    %v1025 = vperm.slane %v993, 3
    %v1026 = vperm.slane %v994, 3
    %v1027 = vperm.slane %v995, 3
    %v1028 = vperm.slane %v996, 3
    %v1029 = vperm.slane %v997, 3
    %v1030 = vperm.slane %v998, 3
    %v1031 = vperm.slane %v999, 3
    %v1032 = vperm.slane %v1000, 3
    %v1033 = vperm.slane %v1001, 3
    %v1034 = vperm.slane %v1002, 3
    %v1035 = vperm.slane %v1003, 3
    %v1036 = vperm.slane %v1004, 3
    %v1037 = vperm.slane %v1005, 3
    %v1038 = vperm.slane %v1006, 3
    %v1039 = vmul.f32 %v961, %v1023
    %v1040 = vmul.f32 %v961, %v1024
    %v1041 = vmul.f32 %v961, %v1025
    %v1042 = vmul.f32 %v961, %v1026
    %v1043 = vmul.f32 %v961, %v1027
    %v1044 = vmul.f32 %v961, %v1028
    %v1045 = vmul.f32 %v961, %v1029
    %v1046 = vmul.f32 %v961, %v1030
    %v1047 = vmul.f32 %v961, %v1031
    %v1048 = vmul.f32 %v961, %v1032
    %v1049 = vmul.f32 %v961, %v1033
    %v1050 = vmul.f32 %v961, %v1034
    %v1051 = vmul.f32 %v961, %v1035
    %v1052 = vmul.f32 %v961, %v1036
    %v1053 = vmul.f32 %v961, %v1037
    %v1054 = vmul.f32 %v961, %v1038
    %v1055 = vmul.f32 %v965, %v1023
    %v1056 = vmul.f32 %v965, %v1024
    %v1057 = vmul.f32 %v965, %v1025
    %v1058 = vmul.f32 %v965, %v1026
    %v1059 = vmul.f32 %v965, %v1027
    %v1060 = vmul.f32 %v965, %v1028
    %v1061 = vmul.f32 %v965, %v1029
    %v1062 = vmul.f32 %v965, %v1030
    %v1063 = vmul.f32 %v965, %v1031
    %v1064 = vmul.f32 %v965, %v1032
    %v1065 = vmul.f32 %v965, %v1033
    %v1066 = vmul.f32 %v965, %v1034
    %v1067 = vmul.f32 %v965, %v1035
    %v1068 = vmul.f32 %v965, %v1036
    %v1069 = vmul.f32 %v965, %v1037
    %v1070 = vmul.f32 %v965, %v1038
    %v1071 = vmul.f32 %v969, %v1023
    %v1072 = vmul.f32 %v969, %v1024
    %v1073 = vmul.f32 %v969, %v1025
    %v1074 = vmul.f32 %v969, %v1026
    %v1075 = vmul.f32 %v969, %v1027
    %v1076 = vmul.f32 %v969, %v1028
    %v1077 = vmul.f32 %v969, %v1029
    %v1078 = vmul.f32 %v969, %v1030
    %v1079 = vmul.f32 %v969, %v1031
    %v1080 = vmul.f32 %v969, %v1032
    %v1081 = vmul.f32 %v969, %v1033
    %v1082 = vmul.f32 %v969, %v1034
    %v1083 = vmul.f32 %v969, %v1035
    %v1084 = vmul.f32 %v969, %v1036
    %v1085 = vmul.f32 %v969, %v1037
    %v1086 = vmul.f32 %v969, %v1038
    %v1087 = vmul.f32 %v973, %v1023
    %v1088 = vmul.f32 %v973, %v1024
    %v1089 = vmul.f32 %v973, %v1025
    %v1090 = vmul.f32 %v973, %v1026
    %v1091 = vmul.f32 %v973, %v1027
    %v1092 = vmul.f32 %v973, %v1028
    %v1093 = vmul.f32 %v973, %v1029
    %v1094 = vmul.f32 %v973, %v1030
    %v1095 = vmul.f32 %v973, %v1031
    %v1096 = vmul.f32 %v973, %v1032
    %v1097 = vmul.f32 %v973, %v1033
    %v1098 = vmul.f32 %v973, %v1034
    %v1099 = vmul.f32 %v973, %v1035
    %v1100 = vmul.f32 %v973, %v1036
    %v1101 = vmul.f32 %v973, %v1037
    %v1102 = vmul.f32 %v973, %v1038
    %v1103 = vmul.f32 %v977, %v1023
    %v1104 = vmul.f32 %v977, %v1024
    %v1105 = vmul.f32 %v977, %v1025
    %v1106 = vmul.f32 %v977, %v1026
    %v1107 = vmul.f32 %v977, %v1027
    %v1108 = vmul.f32 %v977, %v1028
    %v1109 = vmul.f32 %v977, %v1029
    %v1110 = vmul.f32 %v977, %v1030
    %v1111 = vmul.f32 %v977, %v1031
    %v1112 = vmul.f32 %v977, %v1032
    %v1113 = vmul.f32 %v977, %v1033
    %v1114 = vmul.f32 %v977, %v1034
    %v1115 = vmul.f32 %v977, %v1035
    %v1116 = vmul.f32 %v977, %v1036
    %v1117 = vmul.f32 %v977, %v1037
    %v1118 = vmul.f32 %v977, %v1038
    %v1119 = vmul.f32 %v981, %v1023
    %v1120 = vmul.f32 %v981, %v1024
    %v1121 = vmul.f32 %v981, %v1025
    %v1122 = vmul.f32 %v981, %v1026
    %v1123 = vmul.f32 %v981, %v1027
    %v1124 = vmul.f32 %v981, %v1028
    %v1125 = vmul.f32 %v981, %v1029
    %v1126 = vmul.f32 %v981, %v1030
    %v1127 = vmul.f32 %v981, %v1031
    %v1128 = vmul.f32 %v981, %v1032
    %v1129 = vmul.f32 %v981, %v1033
    %v1130 = vmul.f32 %v981, %v1034
    %v1131 = vmul.f32 %v981, %v1035
    %v1132 = vmul.f32 %v981, %v1036
    %v1133 = vmul.f32 %v981, %v1037
    %v1134 = vmul.f32 %v981, %v1038
    %v1135 = vmul.f32 %v985, %v1023
    %v1136 = vmul.f32 %v985, %v1024
    %v1137 = vmul.f32 %v985, %v1025
    %v1138 = vmul.f32 %v985, %v1026
    %v1139 = vmul.f32 %v985, %v1027
    %v1140 = vmul.f32 %v985, %v1028
    %v1141 = vmul.f32 %v985, %v1029
    %v1142 = vmul.f32 %v985, %v1030
    %v1143 = vmul.f32 %v985, %v1031
    %v1144 = vmul.f32 %v985, %v1032
    %v1145 = vmul.f32 %v985, %v1033
    %v1146 = vmul.f32 %v985, %v1034
    %v1147 = vmul.f32 %v985, %v1035
    %v1148 = vmul.f32 %v985, %v1036
    %v1149 = vmul.f32 %v985, %v1037
    %v1150 = vmul.f32 %v985, %v1038
    %v1151 = vmul.f32 %v989, %v1023
    %v1152 = vmul.f32 %v989, %v1024
    %v1153 = vmul.f32 %v989, %v1025
    %v1154 = vmul.f32 %v989, %v1026
    %v1155 = vmul.f32 %v989, %v1027
    %v1156 = vmul.f32 %v989, %v1028
    %v1157 = vmul.f32 %v989, %v1029
    %v1158 = vmul.f32 %v989, %v1030
    %v1159 = vmul.f32 %v989, %v1031
    %v1160 = vmul.f32 %v989, %v1032
    %v1161 = vmul.f32 %v989, %v1033
    %v1162 = vmul.f32 %v989, %v1034
    %v1163 = vmul.f32 %v989, %v1035
    %v1164 = vmul.f32 %v989, %v1036
    %v1165 = vmul.f32 %v989, %v1037
    %v1166 = vmul.f32 %v989, %v1038
    %v1167 = vadd.f32 %v831, %v1039
    %v1168 = vadd.f32 %v832, %v1040
    %v1169 = vadd.f32 %v833, %v1041
    %v1170 = vadd.f32 %v834, %v1042
    %v1171 = vadd.f32 %v835, %v1043
    %v1172 = vadd.f32 %v836, %v1044
    %v1173 = vadd.f32 %v837, %v1045
    %v1174 = vadd.f32 %v838, %v1046
    %v1175 = vadd.f32 %v839, %v1047
    %v1176 = vadd.f32 %v840, %v1048
    %v1177 = vadd.f32 %v841, %v1049
    %v1178 = vadd.f32 %v842, %v1050
    %v1179 = vadd.f32 %v843, %v1051
    %v1180 = vadd.f32 %v844, %v1052
    %v1181 = vadd.f32 %v845, %v1053
    %v1182 = vadd.f32 %v846, %v1054
    %v1183 = vadd.f32 %v847, %v1055
    %v1184 = vadd.f32 %v848, %v1056
    %v1185 = vadd.f32 %v849, %v1057
    %v1186 = vadd.f32 %v850, %v1058
    %v1187 = vadd.f32 %v851, %v1059
    %v1188 = vadd.f32 %v852, %v1060
    %v1189 = vadd.f32 %v853, %v1061
    %v1190 = vadd.f32 %v854, %v1062
    %v1191 = vadd.f32 %v855, %v1063
    %v1192 = vadd.f32 %v856, %v1064
    %v1193 = vadd.f32 %v857, %v1065
    %v1194 = vadd.f32 %v858, %v1066
    %v1195 = vadd.f32 %v859, %v1067
    %v1196 = vadd.f32 %v860, %v1068
    %v1197 = vadd.f32 %v861, %v1069
    %v1198 = vadd.f32 %v862, %v1070
    %v1199 = vadd.f32 %v863, %v1071
    %v1200 = vadd.f32 %v864, %v1072
    %v1201 = vadd.f32 %v865, %v1073
    %v1202 = vadd.f32 %v866, %v1074
    %v1203 = vadd.f32 %v867, %v1075
    %v1204 = vadd.f32 %v868, %v1076
    %v1205 = vadd.f32 %v869, %v1077
    %v1206 = vadd.f32 %v870, %v1078
    %v1207 = vadd.f32 %v871, %v1079
    %v1208 = vadd.f32 %v872, %v1080
    %v1209 = vadd.f32 %v873, %v1081
    %v1210 = vadd.f32 %v874, %v1082
    %v1211 = vadd.f32 %v875, %v1083
    %v1212 = vadd.f32 %v876, %v1084
    %v1213 = vadd.f32 %v877, %v1085
    %v1214 = vadd.f32 %v878, %v1086
    %v1215 = vadd.f32 %v879, %v1087
    %v1216 = vadd.f32 %v880, %v1088
    %v1217 = vadd.f32 %v881, %v1089
    %v1218 = vadd.f32 %v882, %v1090
    %v1219 = vadd.f32 %v883, %v1091
    %v1220 = vadd.f32 %v884, %v1092
    %v1221 = vadd.f32 %v885, %v1093
    %v1222 = vadd.f32 %v886, %v1094
    %v1223 = vadd.f32 %v887, %v1095
    %v1224 = vadd.f32 %v888, %v1096
    %v1225 = vadd.f32 %v889, %v1097
    %v1226 = vadd.f32 %v890, %v1098
    %v1227 = vadd.f32 %v891, %v1099
    %v1228 = vadd.f32 %v892, %v1100
    %v1229 = vadd.f32 %v893, %v1101
    %v1230 = vadd.f32 %v894, %v1102
    %v1231 = vadd.f32 %v895, %v1103
    %v1232 = vadd.f32 %v896, %v1104
    %v1233 = vadd.f32 %v897, %v1105
    %v1234 = vadd.f32 %v898, %v1106
    %v1235 = vadd.f32 %v899, %v1107
    %v1236 = vadd.f32 %v900, %v1108
    %v1237 = vadd.f32 %v901, %v1109
    %v1238 = vadd.f32 %v902, %v1110
    %v1239 = vadd.f32 %v903, %v1111
    %v1240 = vadd.f32 %v904, %v1112
    %v1241 = vadd.f32 %v905, %v1113
    %v1242 = vadd.f32 %v906, %v1114
    %v1243 = vadd.f32 %v907, %v1115
    %v1244 = vadd.f32 %v908, %v1116
    %v1245 = vadd.f32 %v909, %v1117
    %v1246 = vadd.f32 %v910, %v1118
    %v1247 = vadd.f32 %v911, %v1119
    %v1248 = vadd.f32 %v912, %v1120
    %v1249 = vadd.f32 %v913, %v1121
    %v1250 = vadd.f32 %v914, %v1122
    %v1251 = vadd.f32 %v915, %v1123
    %v1252 = vadd.f32 %v916, %v1124
    %v1253 = vadd.f32 %v917, %v1125
    %v1254 = vadd.f32 %v918, %v1126
    %v1255 = vadd.f32 %v919, %v1127
    %v1256 = vadd.f32 %v920, %v1128
    %v1257 = vadd.f32 %v921, %v1129
    %v1258 = vadd.f32 %v922, %v1130
    %v1259 = vadd.f32 %v923, %v1131
    %v1260 = vadd.f32 %v924, %v1132
    %v1261 = vadd.f32 %v925, %v1133
    %v1262 = vadd.f32 %v926, %v1134
    %v1263 = vadd.f32 %v927, %v1135
    %v1264 = vadd.f32 %v928, %v1136
    %v1265 = vadd.f32 %v929, %v1137
    %v1266 = vadd.f32 %v930, %v1138
    %v1267 = vadd.f32 %v931, %v1139
    %v1268 = vadd.f32 %v932, %v1140
    %v1269 = vadd.f32 %v933, %v1141
    %v1270 = vadd.f32 %v934, %v1142
    %v1271 = vadd.f32 %v935, %v1143
    %v1272 = vadd.f32 %v936, %v1144
    %v1273 = vadd.f32 %v937, %v1145
    %v1274 = vadd.f32 %v938, %v1146
    %v1275 = vadd.f32 %v939, %v1147
    %v1276 = vadd.f32 %v940, %v1148
    %v1277 = vadd.f32 %v941, %v1149
    %v1278 = vadd.f32 %v942, %v1150
    %v1279 = vadd.f32 %v943, %v1151
    %v1280 = vadd.f32 %v944, %v1152
    %v1281 = vadd.f32 %v945, %v1153
    %v1282 = vadd.f32 %v946, %v1154
    %v1283 = vadd.f32 %v947, %v1155
    %v1284 = vadd.f32 %v948, %v1156
    %v1285 = vadd.f32 %v949, %v1157
    %v1286 = vadd.f32 %v950, %v1158
    %v1287 = vadd.f32 %v951, %v1159
    %v1288 = vadd.f32 %v952, %v1160
    %v1289 = vadd.f32 %v953, %v1161
    %v1290 = vadd.f32 %v954, %v1162
    %v1291 = vadd.f32 %v955, %v1163
    %v1292 = vadd.f32 %v956, %v1164
    %v1293 = vadd.f32 %v957, %v1165
    %v1294 = vadd.f32 %v958, %v1166
    %1296 = vset.pattern.permute.xlu0 0
    %1297 = vperm.xlu0 %1296, %v55
    %v1298 = vpop.permute.xlu0 %1297
    %1301 = vset.pattern.permute.xlu0 0
    %1302 = vperm.xlu0 %1301, %v56
    %v1303 = vpop.permute.xlu0 %1302
    %1306 = vset.pattern.permute.xlu0 0
    %1307 = vperm.xlu0 %1306, %v57
    %v1308 = vpop.permute.xlu0 %1307
    %1311 = vset.pattern.permute.xlu0 0
    %1312 = vperm.xlu0 %1311, %v58
    %v1313 = vpop.permute.xlu0 %1312
    %1316 = vset.pattern.permute.xlu0 0
    %1317 = vperm.xlu0 %1316, %v59
    %v1318 = vpop.permute.xlu0 %1317
    %1321 = vset.pattern.permute.xlu0 0
    %1322 = vperm.xlu0 %1321, %v60
    %v1323 = vpop.permute.xlu0 %1322
    %1326 = vset.pattern.permute.xlu0 0
    %1327 = vperm.xlu0 %1326, %v61
    %v1328 = vpop.permute.xlu0 %1327
    %1331 = vset.pattern.permute.xlu0 0
    %1332 = vperm.xlu0 %1331, %v62
    %v1333 = vpop.permute.xlu0 %1332
    %v1335 = vadd.f32 %v1167, %v1298
    %v1336 = vadd.f32 %v1168, %v1298
    %v1337 = vadd.f32 %v1169, %v1298
    %v1338 = vadd.f32 %v1170, %v1298
    %v1339 = vadd.f32 %v1171, %v1298
    %v1340 = vadd.f32 %v1172, %v1298
    %v1341 = vadd.f32 %v1173, %v1298
    %v1342 = vadd.f32 %v1174, %v1298
    %v1343 = vadd.f32 %v1175, %v1298
    %v1344 = vadd.f32 %v1176, %v1298
    %v1345 = vadd.f32 %v1177, %v1298
    %v1346 = vadd.f32 %v1178, %v1298
    %v1347 = vadd.f32 %v1179, %v1298
    %v1348 = vadd.f32 %v1180, %v1298
    %v1349 = vadd.f32 %v1181, %v1298
    %v1350 = vadd.f32 %v1182, %v1298
    %v1351 = vadd.f32 %v1183, %v1303
    %v1352 = vadd.f32 %v1184, %v1303
    %v1353 = vadd.f32 %v1185, %v1303
    %v1354 = vadd.f32 %v1186, %v1303
    %v1355 = vadd.f32 %v1187, %v1303
    %v1356 = vadd.f32 %v1188, %v1303
    %v1357 = vadd.f32 %v1189, %v1303
    %v1358 = vadd.f32 %v1190, %v1303
    %v1359 = vadd.f32 %v1191, %v1303
    %v1360 = vadd.f32 %v1192, %v1303
    %v1361 = vadd.f32 %v1193, %v1303
    %v1362 = vadd.f32 %v1194, %v1303
    %v1363 = vadd.f32 %v1195, %v1303
    %v1364 = vadd.f32 %v1196, %v1303
    %v1365 = vadd.f32 %v1197, %v1303
    %v1366 = vadd.f32 %v1198, %v1303
    %v1367 = vadd.f32 %v1199, %v1308
    %v1368 = vadd.f32 %v1200, %v1308
    %v1369 = vadd.f32 %v1201, %v1308
    %v1370 = vadd.f32 %v1202, %v1308
    %v1371 = vadd.f32 %v1203, %v1308
    %v1372 = vadd.f32 %v1204, %v1308
    %v1373 = vadd.f32 %v1205, %v1308
    %v1374 = vadd.f32 %v1206, %v1308
    %v1375 = vadd.f32 %v1207, %v1308
    %v1376 = vadd.f32 %v1208, %v1308
    %v1377 = vadd.f32 %v1209, %v1308
    %v1378 = vadd.f32 %v1210, %v1308
    %v1379 = vadd.f32 %v1211, %v1308
    %v1380 = vadd.f32 %v1212, %v1308
    %v1381 = vadd.f32 %v1213, %v1308
    %v1382 = vadd.f32 %v1214, %v1308
    %v1383 = vadd.f32 %v1215, %v1313
    %v1384 = vadd.f32 %v1216, %v1313
    %v1385 = vadd.f32 %v1217, %v1313
    %v1386 = vadd.f32 %v1218, %v1313
    %v1387 = vadd.f32 %v1219, %v1313
    %v1388 = vadd.f32 %v1220, %v1313
    %v1389 = vadd.f32 %v1221, %v1313
    %v1390 = vadd.f32 %v1222, %v1313
    %v1391 = vadd.f32 %v1223, %v1313
    %v1392 = vadd.f32 %v1224, %v1313
    %v1393 = vadd.f32 %v1225, %v1313
    %v1394 = vadd.f32 %v1226, %v1313
    %v1395 = vadd.f32 %v1227, %v1313
    %v1396 = vadd.f32 %v1228, %v1313
    %v1397 = vadd.f32 %v1229, %v1313
    %v1398 = vadd.f32 %v1230, %v1313
    %v1399 = vadd.f32 %v1231, %v1318
    %v1400 = vadd.f32 %v1232, %v1318
    %v1401 = vadd.f32 %v1233, %v1318
    %v1402 = vadd.f32 %v1234, %v1318
    %v1403 = vadd.f32 %v1235, %v1318
    %v1404 = vadd.f32 %v1236, %v1318
    %v1405 = vadd.f32 %v1237, %v1318
    %v1406 = vadd.f32 %v1238, %v1318
    %v1407 = vadd.f32 %v1239, %v1318
    %v1408 = vadd.f32 %v1240, %v1318
    %v1409 = vadd.f32 %v1241, %v1318
    %v1410 = vadd.f32 %v1242, %v1318
    %v1411 = vadd.f32 %v1243, %v1318
    %v1412 = vadd.f32 %v1244, %v1318
    %v1413 = vadd.f32 %v1245, %v1318
    %v1414 = vadd.f32 %v1246, %v1318
    %v1415 = vadd.f32 %v1247, %v1323
    %v1416 = vadd.f32 %v1248, %v1323
    %v1417 = vadd.f32 %v1249, %v1323
    %v1418 = vadd.f32 %v1250, %v1323
    %v1419 = vadd.f32 %v1251, %v1323
    %v1420 = vadd.f32 %v1252, %v1323
    %v1421 = vadd.f32 %v1253, %v1323
    %v1422 = vadd.f32 %v1254, %v1323
    %v1423 = vadd.f32 %v1255, %v1323
    %v1424 = vadd.f32 %v1256, %v1323
    %v1425 = vadd.f32 %v1257, %v1323
    %v1426 = vadd.f32 %v1258, %v1323
    %v1427 = vadd.f32 %v1259, %v1323
    %v1428 = vadd.f32 %v1260, %v1323
    %v1429 = vadd.f32 %v1261, %v1323
    %v1430 = vadd.f32 %v1262, %v1323
    %v1431 = vadd.f32 %v1263, %v1328
    %v1432 = vadd.f32 %v1264, %v1328
    %v1433 = vadd.f32 %v1265, %v1328
    %v1434 = vadd.f32 %v1266, %v1328
    %v1435 = vadd.f32 %v1267, %v1328
    %v1436 = vadd.f32 %v1268, %v1328
    %v1437 = vadd.f32 %v1269, %v1328
    %v1438 = vadd.f32 %v1270, %v1328
    %v1439 = vadd.f32 %v1271, %v1328
    %v1440 = vadd.f32 %v1272, %v1328
    %v1441 = vadd.f32 %v1273, %v1328
    %v1442 = vadd.f32 %v1274, %v1328
    %v1443 = vadd.f32 %v1275, %v1328
    %v1444 = vadd.f32 %v1276, %v1328
    %v1445 = vadd.f32 %v1277, %v1328
    %v1446 = vadd.f32 %v1278, %v1328
    %v1447 = vadd.f32 %v1279, %v1333
    %v1448 = vadd.f32 %v1280, %v1333
    %v1449 = vadd.f32 %v1281, %v1333
    %v1450 = vadd.f32 %v1282, %v1333
    %v1451 = vadd.f32 %v1283, %v1333
    %v1452 = vadd.f32 %v1284, %v1333
    %v1453 = vadd.f32 %v1285, %v1333
    %v1454 = vadd.f32 %v1286, %v1333
    %v1455 = vadd.f32 %v1287, %v1333
    %v1456 = vadd.f32 %v1288, %v1333
    %v1457 = vadd.f32 %v1289, %v1333
    %v1458 = vadd.f32 %v1290, %v1333
    %v1459 = vadd.f32 %v1291, %v1333
    %v1460 = vadd.f32 %v1292, %v1333
    %v1461 = vadd.f32 %v1293, %v1333
    %v1462 = vadd.f32 %v1294, %v1333
    %v1463 = vtanh.pop %v1335
    %v1464 = vtanh.pop %v1336
    %v1465 = vtanh.pop %v1337
    %v1466 = vtanh.pop %v1338
    %v1467 = vtanh.pop %v1339
    %v1468 = vtanh.pop %v1340
    %v1469 = vtanh.pop %v1341
    %v1470 = vtanh.pop %v1342
    %v1471 = vtanh.pop %v1343
    %v1472 = vtanh.pop %v1344
    %v1473 = vtanh.pop %v1345
    %v1474 = vtanh.pop %v1346
    %v1475 = vtanh.pop %v1347
    %v1476 = vtanh.pop %v1348
    %v1477 = vtanh.pop %v1349
    %v1478 = vtanh.pop %v1350
    %v1479 = vtanh.pop %v1351
    %v1480 = vtanh.pop %v1352
    %v1481 = vtanh.pop %v1353
    %v1482 = vtanh.pop %v1354
    %v1483 = vtanh.pop %v1355
    %v1484 = vtanh.pop %v1356
    %v1485 = vtanh.pop %v1357
    %v1486 = vtanh.pop %v1358
    %v1487 = vtanh.pop %v1359
    %v1488 = vtanh.pop %v1360
    %v1489 = vtanh.pop %v1361
    %v1490 = vtanh.pop %v1362
    %v1491 = vtanh.pop %v1363
    %v1492 = vtanh.pop %v1364
    %v1493 = vtanh.pop %v1365
    %v1494 = vtanh.pop %v1366
    %v1495 = vtanh.pop %v1367
    %v1496 = vtanh.pop %v1368
    %v1497 = vtanh.pop %v1369
    %v1498 = vtanh.pop %v1370
    %v1499 = vtanh.pop %v1371
    %v1500 = vtanh.pop %v1372
    %v1501 = vtanh.pop %v1373
    %v1502 = vtanh.pop %v1374
    %v1503 = vtanh.pop %v1375
    %v1504 = vtanh.pop %v1376
    %v1505 = vtanh.pop %v1377
    %v1506 = vtanh.pop %v1378
    %v1507 = vtanh.pop %v1379
    %v1508 = vtanh.pop %v1380
    %v1509 = vtanh.pop %v1381
    %v1510 = vtanh.pop %v1382
    %v1511 = vtanh.pop %v1383
    %v1512 = vtanh.pop %v1384
    %v1513 = vtanh.pop %v1385
    %v1514 = vtanh.pop %v1386
    %v1515 = vtanh.pop %v1387
    %v1516 = vtanh.pop %v1388
    %v1517 = vtanh.pop %v1389
    %v1518 = vtanh.pop %v1390
    %v1519 = vtanh.pop %v1391
    %v1520 = vtanh.pop %v1392
    %v1521 = vtanh.pop %v1393
    %v1522 = vtanh.pop %v1394
    %v1523 = vtanh.pop %v1395
    %v1524 = vtanh.pop %v1396
    %v1525 = vtanh.pop %v1397
    %v1526 = vtanh.pop %v1398
    %v1527 = vtanh.pop %v1399
    %v1528 = vtanh.pop %v1400
    %v1529 = vtanh.pop %v1401
    %v1530 = vtanh.pop %v1402
    %v1531 = vtanh.pop %v1403
    %v1532 = vtanh.pop %v1404
    %v1533 = vtanh.pop %v1405
    %v1534 = vtanh.pop %v1406
    %v1535 = vtanh.pop %v1407
    %v1536 = vtanh.pop %v1408
    %v1537 = vtanh.pop %v1409
    %v1538 = vtanh.pop %v1410
    %v1539 = vtanh.pop %v1411
    %v1540 = vtanh.pop %v1412
    %v1541 = vtanh.pop %v1413
    %v1542 = vtanh.pop %v1414
    %v1543 = vtanh.pop %v1415
    %v1544 = vtanh.pop %v1416
    %v1545 = vtanh.pop %v1417
    %v1546 = vtanh.pop %v1418
    %v1547 = vtanh.pop %v1419
    %v1548 = vtanh.pop %v1420
    %v1549 = vtanh.pop %v1421
    %v1550 = vtanh.pop %v1422
    %v1551 = vtanh.pop %v1423
    %v1552 = vtanh.pop %v1424
    %v1553 = vtanh.pop %v1425
    %v1554 = vtanh.pop %v1426
    %v1555 = vtanh.pop %v1427
    %v1556 = vtanh.pop %v1428
    %v1557 = vtanh.pop %v1429
    %v1558 = vtanh.pop %v1430
    %v1559 = vtanh.pop %v1431
    %v1560 = vtanh.pop %v1432
    %v1561 = vtanh.pop %v1433
    %v1562 = vtanh.pop %v1434
    %v1563 = vtanh.pop %v1435
    %v1564 = vtanh.pop %v1436
    %v1565 = vtanh.pop %v1437
    %v1566 = vtanh.pop %v1438
    %v1567 = vtanh.pop %v1439
    %v1568 = vtanh.pop %v1440
    %v1569 = vtanh.pop %v1441
    %v1570 = vtanh.pop %v1442
    %v1571 = vtanh.pop %v1443
    %v1572 = vtanh.pop %v1444
    %v1573 = vtanh.pop %v1445
    %v1574 = vtanh.pop %v1446
    %v1575 = vtanh.pop %v1447
    %v1576 = vtanh.pop %v1448
    %v1577 = vtanh.pop %v1449
    %v1578 = vtanh.pop %v1450
    %v1579 = vtanh.pop %v1451
    %v1580 = vtanh.pop %v1452
    %v1581 = vtanh.pop %v1453
    %v1582 = vtanh.pop %v1454
    %v1583 = vtanh.pop %v1455
    %v1584 = vtanh.pop %v1456
    %v1585 = vtanh.pop %v1457
    %v1586 = vtanh.pop %v1458
    %v1587 = vtanh.pop %v1459
    %v1588 = vtanh.pop %v1460
    %v1589 = vtanh.pop %v1461
    %v1590 = vtanh.pop %v1462
    %v1591 = vld [vmem:[%s3] sm:$0xff]
    %v1592 = vld [vmem:[%s3 + $0x8] sm:$0xff]
    %v1593 = vld [vmem:[%s3 + $0x10] sm:$0xff]
    %v1594 = vld [vmem:[%s3 + $0x18] sm:$0xff]
    %v1595 = vld [vmem:[%s3 + $0x20] sm:$0xff]
    %v1596 = vld [vmem:[%s3 + $0x28] sm:$0xff]
    %v1597 = vld [vmem:[%s3 + $0x30] sm:$0xff]
    %v1598 = vld [vmem:[%s3 + $0x38] sm:$0xff]
    %v1599 = vld [vmem:[%s4] sm:$0xff]
    %v1600 = vld [vmem:[%s4 + $0x8] sm:$0xff]
    %v1601 = vld [vmem:[%s4 + $0x10] sm:$0xff]
    %v1602 = vld [vmem:[%s4 + $0x18] sm:$0xff]
    %v1603 = vld [vmem:[%s4 + $0x20] sm:$0xff]
    %v1604 = vld [vmem:[%s4 + $0x28] sm:$0xff]
    %v1605 = vld [vmem:[%s4 + $0x30] sm:$0xff]
    %v1606 = vld [vmem:[%s4 + $0x38] sm:$0xff]
    %1608 = vset.pattern.permute.xlu0 0
    %1609 = vperm.xlu0 %1608, %v1599
    %v1610 = vpop.permute.xlu0 %1609
    %1613 = vset.pattern.permute.xlu0 0
    %1614 = vperm.xlu0 %1613, %v1600
    %v1615 = vpop.permute.xlu0 %1614
    %1618 = vset.pattern.permute.xlu0 0
    %1619 = vperm.xlu0 %1618, %v1601
    %v1620 = vpop.permute.xlu0 %1619
    %1623 = vset.pattern.permute.xlu0 0
    %1624 = vperm.xlu0 %1623, %v1602
    %v1625 = vpop.permute.xlu0 %1624
    %1628 = vset.pattern.permute.xlu0 0
    %1629 = vperm.xlu0 %1628, %v1603
    %v1630 = vpop.permute.xlu0 %1629
    %1633 = vset.pattern.permute.xlu0 0
    %1634 = vperm.xlu0 %1633, %v1604
    %v1635 = vpop.permute.xlu0 %1634
    %1638 = vset.pattern.permute.xlu0 0
    %1639 = vperm.xlu0 %1638, %v1605
    %v1640 = vpop.permute.xlu0 %1639
    %1643 = vset.pattern.permute.xlu0 0
    %1644 = vperm.xlu0 %1643, %v1606
    %v1645 = vpop.permute.xlu0 %1644
    %vm1647 = vcmask 523264
    %v1649 = vsel %vm1647, %v1591, 0
    %v1652 = vsel %vm1647, %v1592, 0
    %v1655 = vsel %vm1647, %v1593, 0
    %v1658 = vsel %vm1647, %v1594, 0
    %v1661 = vsel %vm1647, %v1595, 0
    %v1664 = vsel %vm1647, %v1596, 0
    %v1667 = vsel %vm1647, %v1597, 0
    %v1670 = vsel %vm1647, %v1598, 0
    %1672 = vmatpush.msra.mxu0 0.0
    %1673 = vmatpush.msra.mxu0 0.0
    %1674 = vmatpush.msra.mxu0 0.0
    %1675 = vmatpush.msra.mxu0 0.0
    %1676 = vmatpush.msra.mxu0 0.0
    %1677 = vmatpush.msra.mxu0 0.0
    %1678 = vmatpush.msra.mxu0 0.0
    %1679 = vmatpush.msra.mxu0 0.0
    %1680 = vmatpush.msra.mxu0 %v1575
    %1681 = vmatpush.msra.mxu0 %v1559
    %1682 = vmatpush.msra.mxu0 %v1543
    %1683 = vmatpush.msra.mxu0 %v1527
    %1684 = vmatpush.msra.mxu0 %v1511
    %1685 = vmatpush.msra.mxu0 %v1495
    %1686 = vmatpush.msra.mxu0 %v1479
    %1687 = vmatpush.msra.mxu0 %v1463
    %1688 = vmatmul.f32.gmra.mxu0 %v1649
    %v1689 = vpop.f32.mrf.mxu0
    %v1690 = vadd.f32 %v1610, %v1689
    %1691 = vmatmul.f32.gmra.mxu0 %v1652
    %v1692 = vpop.f32.mrf.mxu0
    %v1693 = vadd.f32 %v1615, %v1692
    %1694 = vmatmul.f32.gmra.mxu0 %v1655
    %v1695 = vpop.f32.mrf.mxu0
    %v1696 = vadd.f32 %v1620, %v1695
    %1697 = vmatmul.f32.gmra.mxu0 %v1658
    %v1698 = vpop.f32.mrf.mxu0
    %v1699 = vadd.f32 %v1625, %v1698
    %1700 = vmatmul.f32.gmra.mxu0 %v1661
    %v1701 = vpop.f32.mrf.mxu0
    %v1702 = vadd.f32 %v1630, %v1701
    %1703 = vmatmul.f32.gmra.mxu0 %v1664
    %v1704 = vpop.f32.mrf.mxu0
    %v1705 = vadd.f32 %v1635, %v1704
    %1706 = vmatmul.f32.gmra.mxu0 %v1667
    %v1707 = vpop.f32.mrf.mxu0
    %v1708 = vadd.f32 %v1640, %v1707
    %1709 = vmatmul.f32.gmra.mxu0 %v1670
    %v1710 = vpop.f32.mrf.mxu0
    %v1711 = vadd.f32 %v1645, %v1710
    %1712 = vdwg.mxu0
    %1713 = vmatpush.msra.mxu0 0.0
    %1714 = vmatpush.msra.mxu0 0.0
    %1715 = vmatpush.msra.mxu0 0.0
    %1716 = vmatpush.msra.mxu0 0.0
    %1717 = vmatpush.msra.mxu0 0.0
    %1718 = vmatpush.msra.mxu0 0.0
    %1719 = vmatpush.msra.mxu0 0.0
    %1720 = vmatpush.msra.mxu0 0.0
    %1721 = vmatpush.msra.mxu0 %v1576
    %1722 = vmatpush.msra.mxu0 %v1560
    %1723 = vmatpush.msra.mxu0 %v1544
    %1724 = vmatpush.msra.mxu0 %v1528
    %1725 = vmatpush.msra.mxu0 %v1512
    %1726 = vmatpush.msra.mxu0 %v1496
    %1727 = vmatpush.msra.mxu0 %v1480
    %1728 = vmatpush.msra.mxu0 %v1464
    %1729 = vmatmul.f32.gmra.mxu0 %v1649
    %v1730 = vpop.f32.mrf.mxu0
    %v1731 = vadd.f32 %v1610, %v1730
    %1732 = vmatmul.f32.gmra.mxu0 %v1652
    %v1733 = vpop.f32.mrf.mxu0
    %v1734 = vadd.f32 %v1615, %v1733
    %1735 = vmatmul.f32.gmra.mxu0 %v1655
    %v1736 = vpop.f32.mrf.mxu0
    %v1737 = vadd.f32 %v1620, %v1736
    %1738 = vmatmul.f32.gmra.mxu0 %v1658
    %v1739 = vpop.f32.mrf.mxu0
    %v1740 = vadd.f32 %v1625, %v1739
    %1741 = vmatmul.f32.gmra.mxu0 %v1661
    %v1742 = vpop.f32.mrf.mxu0
    %v1743 = vadd.f32 %v1630, %v1742
    %1744 = vmatmul.f32.gmra.mxu0 %v1664
    %v1745 = vpop.f32.mrf.mxu0
    %v1746 = vadd.f32 %v1635, %v1745
    %1747 = vmatmul.f32.gmra.mxu0 %v1667
    %v1748 = vpop.f32.mrf.mxu0
    %v1749 = vadd.f32 %v1640, %v1748
    %1750 = vmatmul.f32.gmra.mxu0 %v1670
    %v1751 = vpop.f32.mrf.mxu0
    %v1752 = vadd.f32 %v1645, %v1751
    %1753 = vdwg.mxu0
    %1754 = vmatpush.msra.mxu0 0.0
    %1755 = vmatpush.msra.mxu0 0.0
    %1756 = vmatpush.msra.mxu0 0.0
    %1757 = vmatpush.msra.mxu0 0.0
    %1758 = vmatpush.msra.mxu0 0.0
    %1759 = vmatpush.msra.mxu0 0.0
    %1760 = vmatpush.msra.mxu0 0.0
    %1761 = vmatpush.msra.mxu0 0.0
    %1762 = vmatpush.msra.mxu0 %v1577
    %1763 = vmatpush.msra.mxu0 %v1561
    %1764 = vmatpush.msra.mxu0 %v1545
    %1765 = vmatpush.msra.mxu0 %v1529
    %1766 = vmatpush.msra.mxu0 %v1513
    %1767 = vmatpush.msra.mxu0 %v1497
    %1768 = vmatpush.msra.mxu0 %v1481
    %1769 = vmatpush.msra.mxu0 %v1465
    %1770 = vmatmul.f32.gmra.mxu0 %v1649
    %v1771 = vpop.f32.mrf.mxu0
    %v1772 = vadd.f32 %v1610, %v1771
    %1773 = vmatmul.f32.gmra.mxu0 %v1652
    %v1774 = vpop.f32.mrf.mxu0
    %v1775 = vadd.f32 %v1615, %v1774
    %1776 = vmatmul.f32.gmra.mxu0 %v1655
    %v1777 = vpop.f32.mrf.mxu0
    %v1778 = vadd.f32 %v1620, %v1777
    %1779 = vmatmul.f32.gmra.mxu0 %v1658
    %v1780 = vpop.f32.mrf.mxu0
    %v1781 = vadd.f32 %v1625, %v1780
    %1782 = vmatmul.f32.gmra.mxu0 %v1661
    %v1783 = vpop.f32.mrf.mxu0
    %v1784 = vadd.f32 %v1630, %v1783
    %1785 = vmatmul.f32.gmra.mxu0 %v1664
    %v1786 = vpop.f32.mrf.mxu0
    %v1787 = vadd.f32 %v1635, %v1786
    %1788 = vmatmul.f32.gmra.mxu0 %v1667
    %v1789 = vpop.f32.mrf.mxu0
    %v1790 = vadd.f32 %v1640, %v1789
    %1791 = vmatmul.f32.gmra.mxu0 %v1670
    %v1792 = vpop.f32.mrf.mxu0
    %v1793 = vadd.f32 %v1645, %v1792
    %1794 = vdwg.mxu0
    %1795 = vmatpush.msra.mxu0 0.0
    %1796 = vmatpush.msra.mxu0 0.0
    %1797 = vmatpush.msra.mxu0 0.0
    %1798 = vmatpush.msra.mxu0 0.0
    %1799 = vmatpush.msra.mxu0 0.0
    %1800 = vmatpush.msra.mxu0 0.0
    %1801 = vmatpush.msra.mxu0 0.0
    %1802 = vmatpush.msra.mxu0 0.0
    %1803 = vmatpush.msra.mxu0 %v1578
    %1804 = vmatpush.msra.mxu0 %v1562
    %1805 = vmatpush.msra.mxu0 %v1546
    %1806 = vmatpush.msra.mxu0 %v1530
    %1807 = vmatpush.msra.mxu0 %v1514
    %1808 = vmatpush.msra.mxu0 %v1498
    %1809 = vmatpush.msra.mxu0 %v1482
    %1810 = vmatpush.msra.mxu0 %v1466
    %1811 = vmatmul.f32.gmra.mxu0 %v1649
    %v1812 = vpop.f32.mrf.mxu0
    %v1813 = vadd.f32 %v1610, %v1812
    %1814 = vmatmul.f32.gmra.mxu0 %v1652
    %v1815 = vpop.f32.mrf.mxu0
    %v1816 = vadd.f32 %v1615, %v1815
    %1817 = vmatmul.f32.gmra.mxu0 %v1655
    %v1818 = vpop.f32.mrf.mxu0
    %v1819 = vadd.f32 %v1620, %v1818
    %1820 = vmatmul.f32.gmra.mxu0 %v1658
    %v1821 = vpop.f32.mrf.mxu0
    %v1822 = vadd.f32 %v1625, %v1821
    %1823 = vmatmul.f32.gmra.mxu0 %v1661
    %v1824 = vpop.f32.mrf.mxu0
    %v1825 = vadd.f32 %v1630, %v1824
    %1826 = vmatmul.f32.gmra.mxu0 %v1664
    %v1827 = vpop.f32.mrf.mxu0
    %v1828 = vadd.f32 %v1635, %v1827
    %1829 = vmatmul.f32.gmra.mxu0 %v1667
    %v1830 = vpop.f32.mrf.mxu0
    %v1831 = vadd.f32 %v1640, %v1830
    %1832 = vmatmul.f32.gmra.mxu0 %v1670
    %v1833 = vpop.f32.mrf.mxu0
    %v1834 = vadd.f32 %v1645, %v1833
    %1835 = vdwg.mxu0
    %1836 = vmatpush.msra.mxu0 0.0
    %1837 = vmatpush.msra.mxu0 0.0
    %1838 = vmatpush.msra.mxu0 0.0
    %1839 = vmatpush.msra.mxu0 0.0
    %1840 = vmatpush.msra.mxu0 0.0
    %1841 = vmatpush.msra.mxu0 0.0
    %1842 = vmatpush.msra.mxu0 0.0
    %1843 = vmatpush.msra.mxu0 0.0
    %1844 = vmatpush.msra.mxu0 %v1579
    %1845 = vmatpush.msra.mxu0 %v1563
    %1846 = vmatpush.msra.mxu0 %v1547
    %1847 = vmatpush.msra.mxu0 %v1531
    %1848 = vmatpush.msra.mxu0 %v1515
    %1849 = vmatpush.msra.mxu0 %v1499
    %1850 = vmatpush.msra.mxu0 %v1483
    %1851 = vmatpush.msra.mxu0 %v1467
    %1852 = vmatmul.f32.gmra.mxu0 %v1649
    %v1853 = vpop.f32.mrf.mxu0
    %v1854 = vadd.f32 %v1610, %v1853
    %1855 = vmatmul.f32.gmra.mxu0 %v1652
    %v1856 = vpop.f32.mrf.mxu0
    %v1857 = vadd.f32 %v1615, %v1856
    %1858 = vmatmul.f32.gmra.mxu0 %v1655
    %v1859 = vpop.f32.mrf.mxu0
    %v1860 = vadd.f32 %v1620, %v1859
    %1861 = vmatmul.f32.gmra.mxu0 %v1658
    %v1862 = vpop.f32.mrf.mxu0
    %v1863 = vadd.f32 %v1625, %v1862
    %1864 = vmatmul.f32.gmra.mxu0 %v1661
    %v1865 = vpop.f32.mrf.mxu0
    %v1866 = vadd.f32 %v1630, %v1865
    %1867 = vmatmul.f32.gmra.mxu0 %v1664
    %v1868 = vpop.f32.mrf.mxu0
    %v1869 = vadd.f32 %v1635, %v1868
    %1870 = vmatmul.f32.gmra.mxu0 %v1667
    %v1871 = vpop.f32.mrf.mxu0
    %v1872 = vadd.f32 %v1640, %v1871
    %1873 = vmatmul.f32.gmra.mxu0 %v1670
    %v1874 = vpop.f32.mrf.mxu0
    %v1875 = vadd.f32 %v1645, %v1874
    %1876 = vdwg.mxu0
    %1877 = vmatpush.msra.mxu0 0.0
    %1878 = vmatpush.msra.mxu0 0.0
    %1879 = vmatpush.msra.mxu0 0.0
    %1880 = vmatpush.msra.mxu0 0.0
    %1881 = vmatpush.msra.mxu0 0.0
    %1882 = vmatpush.msra.mxu0 0.0
    %1883 = vmatpush.msra.mxu0 0.0
    %1884 = vmatpush.msra.mxu0 0.0
    %1885 = vmatpush.msra.mxu0 %v1580
    %1886 = vmatpush.msra.mxu0 %v1564
    %1887 = vmatpush.msra.mxu0 %v1548
    %1888 = vmatpush.msra.mxu0 %v1532
    %1889 = vmatpush.msra.mxu0 %v1516
    %1890 = vmatpush.msra.mxu0 %v1500
    %1891 = vmatpush.msra.mxu0 %v1484
    %1892 = vmatpush.msra.mxu0 %v1468
    %1893 = vmatmul.f32.gmra.mxu0 %v1649
    %v1894 = vpop.f32.mrf.mxu0
    %v1895 = vadd.f32 %v1610, %v1894
    %1896 = vmatmul.f32.gmra.mxu0 %v1652
    %v1897 = vpop.f32.mrf.mxu0
    %v1898 = vadd.f32 %v1615, %v1897
    %1899 = vmatmul.f32.gmra.mxu0 %v1655
    %v1900 = vpop.f32.mrf.mxu0
    %v1901 = vadd.f32 %v1620, %v1900
    %1902 = vmatmul.f32.gmra.mxu0 %v1658
    %v1903 = vpop.f32.mrf.mxu0
    %v1904 = vadd.f32 %v1625, %v1903
    %1905 = vmatmul.f32.gmra.mxu0 %v1661
    %v1906 = vpop.f32.mrf.mxu0
    %v1907 = vadd.f32 %v1630, %v1906
    %1908 = vmatmul.f32.gmra.mxu0 %v1664
    %v1909 = vpop.f32.mrf.mxu0
    %v1910 = vadd.f32 %v1635, %v1909
    %1911 = vmatmul.f32.gmra.mxu0 %v1667
    %v1912 = vpop.f32.mrf.mxu0
    %v1913 = vadd.f32 %v1640, %v1912
    %1914 = vmatmul.f32.gmra.mxu0 %v1670
    %v1915 = vpop.f32.mrf.mxu0
    %v1916 = vadd.f32 %v1645, %v1915
    %1917 = vdwg.mxu0
    %1918 = vmatpush.msra.mxu0 0.0
    %1919 = vmatpush.msra.mxu0 0.0
    %1920 = vmatpush.msra.mxu0 0.0
    %1921 = vmatpush.msra.mxu0 0.0
    %1922 = vmatpush.msra.mxu0 0.0
    %1923 = vmatpush.msra.mxu0 0.0
    %1924 = vmatpush.msra.mxu0 0.0
    %1925 = vmatpush.msra.mxu0 0.0
    %1926 = vmatpush.msra.mxu0 %v1581
    %1927 = vmatpush.msra.mxu0 %v1565
    %1928 = vmatpush.msra.mxu0 %v1549
    %1929 = vmatpush.msra.mxu0 %v1533
    %1930 = vmatpush.msra.mxu0 %v1517
    %1931 = vmatpush.msra.mxu0 %v1501
    %1932 = vmatpush.msra.mxu0 %v1485
    %1933 = vmatpush.msra.mxu0 %v1469
    %1934 = vmatmul.f32.gmra.mxu0 %v1649
    %v1935 = vpop.f32.mrf.mxu0
    %v1936 = vadd.f32 %v1610, %v1935
    %1937 = vmatmul.f32.gmra.mxu0 %v1652
    %v1938 = vpop.f32.mrf.mxu0
    %v1939 = vadd.f32 %v1615, %v1938
    %1940 = vmatmul.f32.gmra.mxu0 %v1655
    %v1941 = vpop.f32.mrf.mxu0
    %v1942 = vadd.f32 %v1620, %v1941
    %1943 = vmatmul.f32.gmra.mxu0 %v1658
    %v1944 = vpop.f32.mrf.mxu0
    %v1945 = vadd.f32 %v1625, %v1944
    %1946 = vmatmul.f32.gmra.mxu0 %v1661
    %v1947 = vpop.f32.mrf.mxu0
    %v1948 = vadd.f32 %v1630, %v1947
    %1949 = vmatmul.f32.gmra.mxu0 %v1664
    %v1950 = vpop.f32.mrf.mxu0
    %v1951 = vadd.f32 %v1635, %v1950
    %1952 = vmatmul.f32.gmra.mxu0 %v1667
    %v1953 = vpop.f32.mrf.mxu0
    %v1954 = vadd.f32 %v1640, %v1953
    %1955 = vmatmul.f32.gmra.mxu0 %v1670
    %v1956 = vpop.f32.mrf.mxu0
    %v1957 = vadd.f32 %v1645, %v1956
    %1958 = vdwg.mxu0
    %1959 = vmatpush.msra.mxu0 0.0
    %1960 = vmatpush.msra.mxu0 0.0
    %1961 = vmatpush.msra.mxu0 0.0
    %1962 = vmatpush.msra.mxu0 0.0
    %1963 = vmatpush.msra.mxu0 0.0
    %1964 = vmatpush.msra.mxu0 0.0
    %1965 = vmatpush.msra.mxu0 0.0
    %1966 = vmatpush.msra.mxu0 0.0
    %1967 = vmatpush.msra.mxu0 %v1582
    %1968 = vmatpush.msra.mxu0 %v1566
    %1969 = vmatpush.msra.mxu0 %v1550
    %1970 = vmatpush.msra.mxu0 %v1534
    %1971 = vmatpush.msra.mxu0 %v1518
    %1972 = vmatpush.msra.mxu0 %v1502
    %1973 = vmatpush.msra.mxu0 %v1486
    %1974 = vmatpush.msra.mxu0 %v1470
    %1975 = vmatmul.f32.gmra.mxu0 %v1649
    %v1976 = vpop.f32.mrf.mxu0
    %v1977 = vadd.f32 %v1610, %v1976
    %1978 = vmatmul.f32.gmra.mxu0 %v1652
    %v1979 = vpop.f32.mrf.mxu0
    %v1980 = vadd.f32 %v1615, %v1979
    %1981 = vmatmul.f32.gmra.mxu0 %v1655
    %v1982 = vpop.f32.mrf.mxu0
    %v1983 = vadd.f32 %v1620, %v1982
    %1984 = vmatmul.f32.gmra.mxu0 %v1658
    %v1985 = vpop.f32.mrf.mxu0
    %v1986 = vadd.f32 %v1625, %v1985
    %1987 = vmatmul.f32.gmra.mxu0 %v1661
    %v1988 = vpop.f32.mrf.mxu0
    %v1989 = vadd.f32 %v1630, %v1988
    %1990 = vmatmul.f32.gmra.mxu0 %v1664
    %v1991 = vpop.f32.mrf.mxu0
    %v1992 = vadd.f32 %v1635, %v1991
    %1993 = vmatmul.f32.gmra.mxu0 %v1667
    %v1994 = vpop.f32.mrf.mxu0
    %v1995 = vadd.f32 %v1640, %v1994
    %1996 = vmatmul.f32.gmra.mxu0 %v1670
    %v1997 = vpop.f32.mrf.mxu0
    %v1998 = vadd.f32 %v1645, %v1997
    %1999 = vdwg.mxu0
    %2000 = vmatpush.msra.mxu0 0.0
    %2001 = vmatpush.msra.mxu0 0.0
    %2002 = vmatpush.msra.mxu0 0.0
    %2003 = vmatpush.msra.mxu0 0.0
    %2004 = vmatpush.msra.mxu0 0.0
    %2005 = vmatpush.msra.mxu0 0.0
    %2006 = vmatpush.msra.mxu0 0.0
    %2007 = vmatpush.msra.mxu0 0.0
    %2008 = vmatpush.msra.mxu0 %v1583
    %2009 = vmatpush.msra.mxu0 %v1567
    %2010 = vmatpush.msra.mxu0 %v1551
    %2011 = vmatpush.msra.mxu0 %v1535
    %2012 = vmatpush.msra.mxu0 %v1519
    %2013 = vmatpush.msra.mxu0 %v1503
    %2014 = vmatpush.msra.mxu0 %v1487
    %2015 = vmatpush.msra.mxu0 %v1471
    %2016 = vmatmul.f32.gmra.mxu0 %v1649
    %v2017 = vpop.f32.mrf.mxu0
    %v2018 = vadd.f32 %v1610, %v2017
    %2019 = vmatmul.f32.gmra.mxu0 %v1652
    %v2020 = vpop.f32.mrf.mxu0
    %v2021 = vadd.f32 %v1615, %v2020
    %2022 = vmatmul.f32.gmra.mxu0 %v1655
    %v2023 = vpop.f32.mrf.mxu0
    %v2024 = vadd.f32 %v1620, %v2023
    %2025 = vmatmul.f32.gmra.mxu0 %v1658
    %v2026 = vpop.f32.mrf.mxu0
    %v2027 = vadd.f32 %v1625, %v2026
    %2028 = vmatmul.f32.gmra.mxu0 %v1661
    %v2029 = vpop.f32.mrf.mxu0
    %v2030 = vadd.f32 %v1630, %v2029
    %2031 = vmatmul.f32.gmra.mxu0 %v1664
    %v2032 = vpop.f32.mrf.mxu0
    %v2033 = vadd.f32 %v1635, %v2032
    %2034 = vmatmul.f32.gmra.mxu0 %v1667
    %v2035 = vpop.f32.mrf.mxu0
    %v2036 = vadd.f32 %v1640, %v2035
    %2037 = vmatmul.f32.gmra.mxu0 %v1670
    %v2038 = vpop.f32.mrf.mxu0
    %v2039 = vadd.f32 %v1645, %v2038
    %2040 = vdwg.mxu0
    %2041 = vmatpush.msra.mxu0 0.0
    %2042 = vmatpush.msra.mxu0 0.0
    %2043 = vmatpush.msra.mxu0 0.0
    %2044 = vmatpush.msra.mxu0 0.0
    %2045 = vmatpush.msra.mxu0 0.0
    %2046 = vmatpush.msra.mxu0 0.0
    %2047 = vmatpush.msra.mxu0 0.0
    %2048 = vmatpush.msra.mxu0 0.0
    %2049 = vmatpush.msra.mxu0 %v1584
    %2050 = vmatpush.msra.mxu0 %v1568
    %2051 = vmatpush.msra.mxu0 %v1552
    %2052 = vmatpush.msra.mxu0 %v1536
    %2053 = vmatpush.msra.mxu0 %v1520
    %2054 = vmatpush.msra.mxu0 %v1504
    %2055 = vmatpush.msra.mxu0 %v1488
    %2056 = vmatpush.msra.mxu0 %v1472
    %2057 = vmatmul.f32.gmra.mxu0 %v1649
    %v2058 = vpop.f32.mrf.mxu0
    %v2059 = vadd.f32 %v1610, %v2058
    %2060 = vmatmul.f32.gmra.mxu0 %v1652
    %v2061 = vpop.f32.mrf.mxu0
    %v2062 = vadd.f32 %v1615, %v2061
    %2063 = vmatmul.f32.gmra.mxu0 %v1655
    %v2064 = vpop.f32.mrf.mxu0
    %v2065 = vadd.f32 %v1620, %v2064
    %2066 = vmatmul.f32.gmra.mxu0 %v1658
    %v2067 = vpop.f32.mrf.mxu0
    %v2068 = vadd.f32 %v1625, %v2067
    %2069 = vmatmul.f32.gmra.mxu0 %v1661
    %v2070 = vpop.f32.mrf.mxu0
    %v2071 = vadd.f32 %v1630, %v2070
    %2072 = vmatmul.f32.gmra.mxu0 %v1664
    %v2073 = vpop.f32.mrf.mxu0
    %v2074 = vadd.f32 %v1635, %v2073
    %2075 = vmatmul.f32.gmra.mxu0 %v1667
    %v2076 = vpop.f32.mrf.mxu0
    %v2077 = vadd.f32 %v1640, %v2076
    %2078 = vmatmul.f32.gmra.mxu0 %v1670
    %v2079 = vpop.f32.mrf.mxu0
    %v2080 = vadd.f32 %v1645, %v2079
    %2081 = vdwg.mxu0
    %2082 = vmatpush.msra.mxu0 0.0
    %2083 = vmatpush.msra.mxu0 0.0
    %2084 = vmatpush.msra.mxu0 0.0
    %2085 = vmatpush.msra.mxu0 0.0
    %2086 = vmatpush.msra.mxu0 0.0
    %2087 = vmatpush.msra.mxu0 0.0
    %2088 = vmatpush.msra.mxu0 0.0
    %2089 = vmatpush.msra.mxu0 0.0
    %2090 = vmatpush.msra.mxu0 %v1585
    %2091 = vmatpush.msra.mxu0 %v1569
    %2092 = vmatpush.msra.mxu0 %v1553
    %2093 = vmatpush.msra.mxu0 %v1537
    %2094 = vmatpush.msra.mxu0 %v1521
    %2095 = vmatpush.msra.mxu0 %v1505
    %2096 = vmatpush.msra.mxu0 %v1489
    %2097 = vmatpush.msra.mxu0 %v1473
    %2098 = vmatmul.f32.gmra.mxu0 %v1649
    %v2099 = vpop.f32.mrf.mxu0
    %v2100 = vadd.f32 %v1610, %v2099
    %2101 = vmatmul.f32.gmra.mxu0 %v1652
    %v2102 = vpop.f32.mrf.mxu0
    %v2103 = vadd.f32 %v1615, %v2102
    %2104 = vmatmul.f32.gmra.mxu0 %v1655
    %v2105 = vpop.f32.mrf.mxu0
    %v2106 = vadd.f32 %v1620, %v2105
    %2107 = vmatmul.f32.gmra.mxu0 %v1658
    %v2108 = vpop.f32.mrf.mxu0
    %v2109 = vadd.f32 %v1625, %v2108
    %2110 = vmatmul.f32.gmra.mxu0 %v1661
    %v2111 = vpop.f32.mrf.mxu0
    %v2112 = vadd.f32 %v1630, %v2111
    %2113 = vmatmul.f32.gmra.mxu0 %v1664
    %v2114 = vpop.f32.mrf.mxu0
    %v2115 = vadd.f32 %v1635, %v2114
    %2116 = vmatmul.f32.gmra.mxu0 %v1667
    %v2117 = vpop.f32.mrf.mxu0
    %v2118 = vadd.f32 %v1640, %v2117
    %2119 = vmatmul.f32.gmra.mxu0 %v1670
    %v2120 = vpop.f32.mrf.mxu0
    %v2121 = vadd.f32 %v1645, %v2120
    %2122 = vdwg.mxu0
    %2123 = vmatpush.msra.mxu0 0.0
    %2124 = vmatpush.msra.mxu0 0.0
    %2125 = vmatpush.msra.mxu0 0.0
    %2126 = vmatpush.msra.mxu0 0.0
    %2127 = vmatpush.msra.mxu0 0.0
    %2128 = vmatpush.msra.mxu0 0.0
    %2129 = vmatpush.msra.mxu0 0.0
    %2130 = vmatpush.msra.mxu0 0.0
    %2131 = vmatpush.msra.mxu0 %v1586
    %2132 = vmatpush.msra.mxu0 %v1570
    %2133 = vmatpush.msra.mxu0 %v1554
    %2134 = vmatpush.msra.mxu0 %v1538
    %2135 = vmatpush.msra.mxu0 %v1522
    %2136 = vmatpush.msra.mxu0 %v1506
    %2137 = vmatpush.msra.mxu0 %v1490
    %2138 = vmatpush.msra.mxu0 %v1474
    %2139 = vmatmul.f32.gmra.mxu0 %v1649
    %v2140 = vpop.f32.mrf.mxu0
    %v2141 = vadd.f32 %v1610, %v2140
    %2142 = vmatmul.f32.gmra.mxu0 %v1652
    %v2143 = vpop.f32.mrf.mxu0
    %v2144 = vadd.f32 %v1615, %v2143
    %2145 = vmatmul.f32.gmra.mxu0 %v1655
    %v2146 = vpop.f32.mrf.mxu0
    %v2147 = vadd.f32 %v1620, %v2146
    %2148 = vmatmul.f32.gmra.mxu0 %v1658
    %v2149 = vpop.f32.mrf.mxu0
    %v2150 = vadd.f32 %v1625, %v2149
    %2151 = vmatmul.f32.gmra.mxu0 %v1661
    %v2152 = vpop.f32.mrf.mxu0
    %v2153 = vadd.f32 %v1630, %v2152
    %2154 = vmatmul.f32.gmra.mxu0 %v1664
    %v2155 = vpop.f32.mrf.mxu0
    %v2156 = vadd.f32 %v1635, %v2155
    %2157 = vmatmul.f32.gmra.mxu0 %v1667
    %v2158 = vpop.f32.mrf.mxu0
    %v2159 = vadd.f32 %v1640, %v2158
    %2160 = vmatmul.f32.gmra.mxu0 %v1670
    %v2161 = vpop.f32.mrf.mxu0
    %v2162 = vadd.f32 %v1645, %v2161
    %2163 = vdwg.mxu0
    %2164 = vmatpush.msra.mxu0 0.0
    %2165 = vmatpush.msra.mxu0 0.0
    %2166 = vmatpush.msra.mxu0 0.0
    %2167 = vmatpush.msra.mxu0 0.0
    %2168 = vmatpush.msra.mxu0 0.0
    %2169 = vmatpush.msra.mxu0 0.0
    %2170 = vmatpush.msra.mxu0 0.0
    %2171 = vmatpush.msra.mxu0 0.0
    %2172 = vmatpush.msra.mxu0 %v1587
    %2173 = vmatpush.msra.mxu0 %v1571
    %2174 = vmatpush.msra.mxu0 %v1555
    %2175 = vmatpush.msra.mxu0 %v1539
    %2176 = vmatpush.msra.mxu0 %v1523
    %2177 = vmatpush.msra.mxu0 %v1507
    %2178 = vmatpush.msra.mxu0 %v1491
    %2179 = vmatpush.msra.mxu0 %v1475
    %2180 = vmatmul.f32.gmra.mxu0 %v1649
    %v2181 = vpop.f32.mrf.mxu0
    %v2182 = vadd.f32 %v1610, %v2181
    %2183 = vmatmul.f32.gmra.mxu0 %v1652
    %v2184 = vpop.f32.mrf.mxu0
    %v2185 = vadd.f32 %v1615, %v2184
    %2186 = vmatmul.f32.gmra.mxu0 %v1655
    %v2187 = vpop.f32.mrf.mxu0
    %v2188 = vadd.f32 %v1620, %v2187
    %2189 = vmatmul.f32.gmra.mxu0 %v1658
    %v2190 = vpop.f32.mrf.mxu0
    %v2191 = vadd.f32 %v1625, %v2190
    %2192 = vmatmul.f32.gmra.mxu0 %v1661
    %v2193 = vpop.f32.mrf.mxu0
    %v2194 = vadd.f32 %v1630, %v2193
    %2195 = vmatmul.f32.gmra.mxu0 %v1664
    %v2196 = vpop.f32.mrf.mxu0
    %v2197 = vadd.f32 %v1635, %v2196
    %2198 = vmatmul.f32.gmra.mxu0 %v1667
    %v2199 = vpop.f32.mrf.mxu0
    %v2200 = vadd.f32 %v1640, %v2199
    %2201 = vmatmul.f32.gmra.mxu0 %v1670
    %v2202 = vpop.f32.mrf.mxu0
    %v2203 = vadd.f32 %v1645, %v2202
    %2204 = vdwg.mxu0
    %2205 = vmatpush.msra.mxu0 0.0
    %2206 = vmatpush.msra.mxu0 0.0
    %2207 = vmatpush.msra.mxu0 0.0
    %2208 = vmatpush.msra.mxu0 0.0
    %2209 = vmatpush.msra.mxu0 0.0
    %2210 = vmatpush.msra.mxu0 0.0
    %2211 = vmatpush.msra.mxu0 0.0
    %2212 = vmatpush.msra.mxu0 0.0
    %2213 = vmatpush.msra.mxu0 %v1588
    %2214 = vmatpush.msra.mxu0 %v1572
    %2215 = vmatpush.msra.mxu0 %v1556
    %2216 = vmatpush.msra.mxu0 %v1540
    %2217 = vmatpush.msra.mxu0 %v1524
    %2218 = vmatpush.msra.mxu0 %v1508
    %2219 = vmatpush.msra.mxu0 %v1492
    %2220 = vmatpush.msra.mxu0 %v1476
    %2221 = vmatmul.f32.gmra.mxu0 %v1649
    %v2222 = vpop.f32.mrf.mxu0
    %v2223 = vadd.f32 %v1610, %v2222
    %2224 = vmatmul.f32.gmra.mxu0 %v1652
    %v2225 = vpop.f32.mrf.mxu0
    %v2226 = vadd.f32 %v1615, %v2225
    %2227 = vmatmul.f32.gmra.mxu0 %v1655
    %v2228 = vpop.f32.mrf.mxu0
    %v2229 = vadd.f32 %v1620, %v2228
    %2230 = vmatmul.f32.gmra.mxu0 %v1658
    %v2231 = vpop.f32.mrf.mxu0
    %v2232 = vadd.f32 %v1625, %v2231
    %2233 = vmatmul.f32.gmra.mxu0 %v1661
    %v2234 = vpop.f32.mrf.mxu0
    %v2235 = vadd.f32 %v1630, %v2234
    %2236 = vmatmul.f32.gmra.mxu0 %v1664
    %v2237 = vpop.f32.mrf.mxu0
    %v2238 = vadd.f32 %v1635, %v2237
    %2239 = vmatmul.f32.gmra.mxu0 %v1667
    %v2240 = vpop.f32.mrf.mxu0
    %v2241 = vadd.f32 %v1640, %v2240
    %2242 = vmatmul.f32.gmra.mxu0 %v1670
    %v2243 = vpop.f32.mrf.mxu0
    %v2244 = vadd.f32 %v1645, %v2243
    %2245 = vdwg.mxu0
    %2246 = vmatpush.msra.mxu0 0.0
    %2247 = vmatpush.msra.mxu0 0.0
    %2248 = vmatpush.msra.mxu0 0.0
    %2249 = vmatpush.msra.mxu0 0.0
    %2250 = vmatpush.msra.mxu0 0.0
    %2251 = vmatpush.msra.mxu0 0.0
    %2252 = vmatpush.msra.mxu0 0.0
    %2253 = vmatpush.msra.mxu0 0.0
    %2254 = vmatpush.msra.mxu0 %v1589
    %2255 = vmatpush.msra.mxu0 %v1573
    %2256 = vmatpush.msra.mxu0 %v1557
    %2257 = vmatpush.msra.mxu0 %v1541
    %2258 = vmatpush.msra.mxu0 %v1525
    %2259 = vmatpush.msra.mxu0 %v1509
    %2260 = vmatpush.msra.mxu0 %v1493
    %2261 = vmatpush.msra.mxu0 %v1477
    %2262 = vmatmul.f32.gmra.mxu0 %v1649
    %v2263 = vpop.f32.mrf.mxu0
    %v2264 = vadd.f32 %v1610, %v2263
    %2265 = vmatmul.f32.gmra.mxu0 %v1652
    %v2266 = vpop.f32.mrf.mxu0
    %v2267 = vadd.f32 %v1615, %v2266
    %2268 = vmatmul.f32.gmra.mxu0 %v1655
    %v2269 = vpop.f32.mrf.mxu0
    %v2270 = vadd.f32 %v1620, %v2269
    %2271 = vmatmul.f32.gmra.mxu0 %v1658
    %v2272 = vpop.f32.mrf.mxu0
    %v2273 = vadd.f32 %v1625, %v2272
    %2274 = vmatmul.f32.gmra.mxu0 %v1661
    %v2275 = vpop.f32.mrf.mxu0
    %v2276 = vadd.f32 %v1630, %v2275
    %2277 = vmatmul.f32.gmra.mxu0 %v1664
    %v2278 = vpop.f32.mrf.mxu0
    %v2279 = vadd.f32 %v1635, %v2278
    %2280 = vmatmul.f32.gmra.mxu0 %v1667
    %v2281 = vpop.f32.mrf.mxu0
    %v2282 = vadd.f32 %v1640, %v2281
    %2283 = vmatmul.f32.gmra.mxu0 %v1670
    %v2284 = vpop.f32.mrf.mxu0
    %v2285 = vadd.f32 %v1645, %v2284
    %2286 = vdwg.mxu0
    %2287 = vmatpush.msra.mxu0 0.0
    %2288 = vmatpush.msra.mxu0 0.0
    %2289 = vmatpush.msra.mxu0 0.0
    %2290 = vmatpush.msra.mxu0 0.0
    %2291 = vmatpush.msra.mxu0 0.0
    %2292 = vmatpush.msra.mxu0 0.0
    %2293 = vmatpush.msra.mxu0 0.0
    %2294 = vmatpush.msra.mxu0 0.0
    %2295 = vmatpush.msra.mxu0 %v1590
    %2296 = vmatpush.msra.mxu0 %v1574
    %2297 = vmatpush.msra.mxu0 %v1558
    %2298 = vmatpush.msra.mxu0 %v1542
    %2299 = vmatpush.msra.mxu0 %v1526
    %2300 = vmatpush.msra.mxu0 %v1510
    %2301 = vmatpush.msra.mxu0 %v1494
    %2302 = vmatpush.msra.mxu0 %v1478
    %2303 = vmatmul.f32.gmra.mxu0 %v1649
    %v2304 = vpop.f32.mrf.mxu0
    %v2305 = vadd.f32 %v1610, %v2304
    %2306 = vmatmul.f32.gmra.mxu0 %v1652
    %v2307 = vpop.f32.mrf.mxu0
    %v2308 = vadd.f32 %v1615, %v2307
    %2309 = vmatmul.f32.gmra.mxu0 %v1655
    %v2310 = vpop.f32.mrf.mxu0
    %v2311 = vadd.f32 %v1620, %v2310
    %2312 = vmatmul.f32.gmra.mxu0 %v1658
    %v2313 = vpop.f32.mrf.mxu0
    %v2314 = vadd.f32 %v1625, %v2313
    %2315 = vmatmul.f32.gmra.mxu0 %v1661
    %v2316 = vpop.f32.mrf.mxu0
    %v2317 = vadd.f32 %v1630, %v2316
    %2318 = vmatmul.f32.gmra.mxu0 %v1664
    %v2319 = vpop.f32.mrf.mxu0
    %v2320 = vadd.f32 %v1635, %v2319
    %2321 = vmatmul.f32.gmra.mxu0 %v1667
    %v2322 = vpop.f32.mrf.mxu0
    %v2323 = vadd.f32 %v1640, %v2322
    %2324 = vmatmul.f32.gmra.mxu0 %v1670
    %v2325 = vpop.f32.mrf.mxu0
    %v2326 = vadd.f32 %v1645, %v2325
    %2327 = vdwg.mxu0
    %v2328 = vtanh.pop %v1690
    %v2329 = vtanh.pop %v1731
    %v2330 = vtanh.pop %v1772
    %v2331 = vtanh.pop %v1813
    %v2332 = vtanh.pop %v1854
    %v2333 = vtanh.pop %v1895
    %v2334 = vtanh.pop %v1936
    %v2335 = vtanh.pop %v1977
    %v2336 = vtanh.pop %v2018
    %v2337 = vtanh.pop %v2059
    %v2338 = vtanh.pop %v2100
    %v2339 = vtanh.pop %v2141
    %v2340 = vtanh.pop %v2182
    %v2341 = vtanh.pop %v2223
    %v2342 = vtanh.pop %v2264
    %v2343 = vtanh.pop %v2305
    %v2344 = vtanh.pop %v1693
    %v2345 = vtanh.pop %v1734
    %v2346 = vtanh.pop %v1775
    %v2347 = vtanh.pop %v1816
    %v2348 = vtanh.pop %v1857
    %v2349 = vtanh.pop %v1898
    %v2350 = vtanh.pop %v1939
    %v2351 = vtanh.pop %v1980
    %v2352 = vtanh.pop %v2021
    %v2353 = vtanh.pop %v2062
    %v2354 = vtanh.pop %v2103
    %v2355 = vtanh.pop %v2144
    %v2356 = vtanh.pop %v2185
    %v2357 = vtanh.pop %v2226
    %v2358 = vtanh.pop %v2267
    %v2359 = vtanh.pop %v2308
    %v2360 = vtanh.pop %v1696
    %v2361 = vtanh.pop %v1737
    %v2362 = vtanh.pop %v1778
    %v2363 = vtanh.pop %v1819
    %v2364 = vtanh.pop %v1860
    %v2365 = vtanh.pop %v1901
    %v2366 = vtanh.pop %v1942
    %v2367 = vtanh.pop %v1983
    %v2368 = vtanh.pop %v2024
    %v2369 = vtanh.pop %v2065
    %v2370 = vtanh.pop %v2106
    %v2371 = vtanh.pop %v2147
    %v2372 = vtanh.pop %v2188
    %v2373 = vtanh.pop %v2229
    %v2374 = vtanh.pop %v2270
    %v2375 = vtanh.pop %v2311
    %v2376 = vtanh.pop %v1699
    %v2377 = vtanh.pop %v1740
    %v2378 = vtanh.pop %v1781
    %v2379 = vtanh.pop %v1822
    %v2380 = vtanh.pop %v1863
    %v2381 = vtanh.pop %v1904
    %v2382 = vtanh.pop %v1945
    %v2383 = vtanh.pop %v1986
    %v2384 = vtanh.pop %v2027
    %v2385 = vtanh.pop %v2068
    %v2386 = vtanh.pop %v2109
    %v2387 = vtanh.pop %v2150
    %v2388 = vtanh.pop %v2191
    %v2389 = vtanh.pop %v2232
    %v2390 = vtanh.pop %v2273
    %v2391 = vtanh.pop %v2314
    %v2392 = vtanh.pop %v1702
    %v2393 = vtanh.pop %v1743
    %v2394 = vtanh.pop %v1784
    %v2395 = vtanh.pop %v1825
    %v2396 = vtanh.pop %v1866
    %v2397 = vtanh.pop %v1907
    %v2398 = vtanh.pop %v1948
    %v2399 = vtanh.pop %v1989
    %v2400 = vtanh.pop %v2030
    %v2401 = vtanh.pop %v2071
    %v2402 = vtanh.pop %v2112
    %v2403 = vtanh.pop %v2153
    %v2404 = vtanh.pop %v2194
    %v2405 = vtanh.pop %v2235
    %v2406 = vtanh.pop %v2276
    %v2407 = vtanh.pop %v2317
    %v2408 = vtanh.pop %v1705
    %v2409 = vtanh.pop %v1746
    %v2410 = vtanh.pop %v1787
    %v2411 = vtanh.pop %v1828
    %v2412 = vtanh.pop %v1869
    %v2413 = vtanh.pop %v1910
    %v2414 = vtanh.pop %v1951
    %v2415 = vtanh.pop %v1992
    %v2416 = vtanh.pop %v2033
    %v2417 = vtanh.pop %v2074
    %v2418 = vtanh.pop %v2115
    %v2419 = vtanh.pop %v2156
    %v2420 = vtanh.pop %v2197
    %v2421 = vtanh.pop %v2238
    %v2422 = vtanh.pop %v2279
    %v2423 = vtanh.pop %v2320
    %v2424 = vtanh.pop %v1708
    %v2425 = vtanh.pop %v1749
    %v2426 = vtanh.pop %v1790
    %v2427 = vtanh.pop %v1831
    %v2428 = vtanh.pop %v1872
    %v2429 = vtanh.pop %v1913
    %v2430 = vtanh.pop %v1954
    %v2431 = vtanh.pop %v1995
    %v2432 = vtanh.pop %v2036
    %v2433 = vtanh.pop %v2077
    %v2434 = vtanh.pop %v2118
    %v2435 = vtanh.pop %v2159
    %v2436 = vtanh.pop %v2200
    %v2437 = vtanh.pop %v2241
    %v2438 = vtanh.pop %v2282
    %v2439 = vtanh.pop %v2323
    %v2440 = vtanh.pop %v1711
    %v2441 = vtanh.pop %v1752
    %v2442 = vtanh.pop %v1793
    %v2443 = vtanh.pop %v1834
    %v2444 = vtanh.pop %v1875
    %v2445 = vtanh.pop %v1916
    %v2446 = vtanh.pop %v1957
    %v2447 = vtanh.pop %v1998
    %v2448 = vtanh.pop %v2039
    %v2449 = vtanh.pop %v2080
    %v2450 = vtanh.pop %v2121
    %v2451 = vtanh.pop %v2162
    %v2452 = vtanh.pop %v2203
    %v2453 = vtanh.pop %v2244
    %v2454 = vtanh.pop %v2285
    %v2455 = vtanh.pop %v2326
    %v2456 = vld [vmem:[%s5] sm:$0xff]
    %v2457 = vld [vmem:[%s5 + $0x8] sm:$0xff]
    %v2458 = vld [vmem:[%s5 + $0x10] sm:$0xff]
    %v2459 = vld [vmem:[%s5 + $0x18] sm:$0xff]
    %v2460 = vld [vmem:[%s5 + $0x20] sm:$0xff]
    %v2461 = vld [vmem:[%s5 + $0x28] sm:$0xff]
    %v2462 = vld [vmem:[%s5 + $0x30] sm:$0xff]
    %v2463 = vld [vmem:[%s5 + $0x38] sm:$0xff]
    %v2464 = vld [vmem:[%s6] sm:$0xff]
    %v2465 = vld [vmem:[%s6 + $0x8] sm:$0xff]
    %v2466 = vld [vmem:[%s6 + $0x10] sm:$0xff]
    %v2467 = vld [vmem:[%s6 + $0x18] sm:$0xff]
    %v2468 = vld [vmem:[%s6 + $0x20] sm:$0xff]
    %v2469 = vld [vmem:[%s6 + $0x28] sm:$0xff]
    %v2470 = vld [vmem:[%s6 + $0x30] sm:$0xff]
    %v2471 = vld [vmem:[%s6 + $0x38] sm:$0xff]
    %2473 = vset.pattern.permute.xlu0 0
    %2474 = vperm.xlu0 %2473, %v2464
    %v2475 = vpop.permute.xlu0 %2474
    %2478 = vset.pattern.permute.xlu0 0
    %2479 = vperm.xlu0 %2478, %v2465
    %v2480 = vpop.permute.xlu0 %2479
    %2483 = vset.pattern.permute.xlu0 0
    %2484 = vperm.xlu0 %2483, %v2466
    %v2485 = vpop.permute.xlu0 %2484
    %2488 = vset.pattern.permute.xlu0 0
    %2489 = vperm.xlu0 %2488, %v2467
    %v2490 = vpop.permute.xlu0 %2489
    %2493 = vset.pattern.permute.xlu0 0
    %2494 = vperm.xlu0 %2493, %v2468
    %v2495 = vpop.permute.xlu0 %2494
    %2498 = vset.pattern.permute.xlu0 0
    %2499 = vperm.xlu0 %2498, %v2469
    %v2500 = vpop.permute.xlu0 %2499
    %2503 = vset.pattern.permute.xlu0 0
    %2504 = vperm.xlu0 %2503, %v2470
    %v2505 = vpop.permute.xlu0 %2504
    %2508 = vset.pattern.permute.xlu0 0
    %2509 = vperm.xlu0 %2508, %v2471
    %v2510 = vpop.permute.xlu0 %2509
    %v2513 = vsel %vm1647, %v2456, 0
    %v2516 = vsel %vm1647, %v2457, 0
    %v2519 = vsel %vm1647, %v2458, 0
    %v2522 = vsel %vm1647, %v2459, 0
    %v2525 = vsel %vm1647, %v2460, 0
    %v2528 = vsel %vm1647, %v2461, 0
    %v2531 = vsel %vm1647, %v2462, 0
    %v2534 = vsel %vm1647, %v2463, 0
    %2536 = vmatpush.msra.mxu0 0.0
    %2537 = vmatpush.msra.mxu0 0.0
    %2538 = vmatpush.msra.mxu0 0.0
    %2539 = vmatpush.msra.mxu0 0.0
    %2540 = vmatpush.msra.mxu0 0.0
    %2541 = vmatpush.msra.mxu0 0.0
    %2542 = vmatpush.msra.mxu0 0.0
    %2543 = vmatpush.msra.mxu0 0.0
    %2544 = vmatpush.msra.mxu0 %v2440
    %2545 = vmatpush.msra.mxu0 %v2424
    %2546 = vmatpush.msra.mxu0 %v2408
    %2547 = vmatpush.msra.mxu0 %v2392
    %2548 = vmatpush.msra.mxu0 %v2376
    %2549 = vmatpush.msra.mxu0 %v2360
    %2550 = vmatpush.msra.mxu0 %v2344
    %2551 = vmatpush.msra.mxu0 %v2328
    %2552 = vmatmul.f32.gmra.mxu0 %v2513
    %v2553 = vpop.f32.mrf.mxu0
    %v2554 = vadd.f32 %v2475, %v2553
    %2555 = vmatmul.f32.gmra.mxu0 %v2516
    %v2556 = vpop.f32.mrf.mxu0
    %v2557 = vadd.f32 %v2480, %v2556
    %2558 = vmatmul.f32.gmra.mxu0 %v2519
    %v2559 = vpop.f32.mrf.mxu0
    %v2560 = vadd.f32 %v2485, %v2559
    %2561 = vmatmul.f32.gmra.mxu0 %v2522
    %v2562 = vpop.f32.mrf.mxu0
    %v2563 = vadd.f32 %v2490, %v2562
    %2564 = vmatmul.f32.gmra.mxu0 %v2525
    %v2565 = vpop.f32.mrf.mxu0
    %v2566 = vadd.f32 %v2495, %v2565
    %2567 = vmatmul.f32.gmra.mxu0 %v2528
    %v2568 = vpop.f32.mrf.mxu0
    %v2569 = vadd.f32 %v2500, %v2568
    %2570 = vmatmul.f32.gmra.mxu0 %v2531
    %v2571 = vpop.f32.mrf.mxu0
    %v2572 = vadd.f32 %v2505, %v2571
    %2573 = vmatmul.f32.gmra.mxu0 %v2534
    %v2574 = vpop.f32.mrf.mxu0
    %v2575 = vadd.f32 %v2510, %v2574
    %2576 = vdwg.mxu0
    %2577 = vmatpush.msra.mxu0 0.0
    %2578 = vmatpush.msra.mxu0 0.0
    %2579 = vmatpush.msra.mxu0 0.0
    %2580 = vmatpush.msra.mxu0 0.0
    %2581 = vmatpush.msra.mxu0 0.0
    %2582 = vmatpush.msra.mxu0 0.0
    %2583 = vmatpush.msra.mxu0 0.0
    %2584 = vmatpush.msra.mxu0 0.0
    %2585 = vmatpush.msra.mxu0 %v2441
    %2586 = vmatpush.msra.mxu0 %v2425
    %2587 = vmatpush.msra.mxu0 %v2409
    %2588 = vmatpush.msra.mxu0 %v2393
    %2589 = vmatpush.msra.mxu0 %v2377
    %2590 = vmatpush.msra.mxu0 %v2361
    %2591 = vmatpush.msra.mxu0 %v2345
    %2592 = vmatpush.msra.mxu0 %v2329
    %2593 = vmatmul.f32.gmra.mxu0 %v2513
    %v2594 = vpop.f32.mrf.mxu0
    %v2595 = vadd.f32 %v2475, %v2594
    %2596 = vmatmul.f32.gmra.mxu0 %v2516
    %v2597 = vpop.f32.mrf.mxu0
    %v2598 = vadd.f32 %v2480, %v2597
    %2599 = vmatmul.f32.gmra.mxu0 %v2519
    %v2600 = vpop.f32.mrf.mxu0
    %v2601 = vadd.f32 %v2485, %v2600
    %2602 = vmatmul.f32.gmra.mxu0 %v2522
    %v2603 = vpop.f32.mrf.mxu0
    %v2604 = vadd.f32 %v2490, %v2603
    %2605 = vmatmul.f32.gmra.mxu0 %v2525
    %v2606 = vpop.f32.mrf.mxu0
    %v2607 = vadd.f32 %v2495, %v2606
    %2608 = vmatmul.f32.gmra.mxu0 %v2528
    %v2609 = vpop.f32.mrf.mxu0
    %v2610 = vadd.f32 %v2500, %v2609
    %2611 = vmatmul.f32.gmra.mxu0 %v2531
    %v2612 = vpop.f32.mrf.mxu0
    %v2613 = vadd.f32 %v2505, %v2612
    %2614 = vmatmul.f32.gmra.mxu0 %v2534
    %v2615 = vpop.f32.mrf.mxu0
    %v2616 = vadd.f32 %v2510, %v2615
    %2617 = vdwg.mxu0
    %2618 = vmatpush.msra.mxu0 0.0
    %2619 = vmatpush.msra.mxu0 0.0
    %2620 = vmatpush.msra.mxu0 0.0
    %2621 = vmatpush.msra.mxu0 0.0
    %2622 = vmatpush.msra.mxu0 0.0
    %2623 = vmatpush.msra.mxu0 0.0
    %2624 = vmatpush.msra.mxu0 0.0
    %2625 = vmatpush.msra.mxu0 0.0
    %2626 = vmatpush.msra.mxu0 %v2442
    %2627 = vmatpush.msra.mxu0 %v2426
    %2628 = vmatpush.msra.mxu0 %v2410
    %2629 = vmatpush.msra.mxu0 %v2394
    %2630 = vmatpush.msra.mxu0 %v2378
    %2631 = vmatpush.msra.mxu0 %v2362
    %2632 = vmatpush.msra.mxu0 %v2346
    %2633 = vmatpush.msra.mxu0 %v2330
    %2634 = vmatmul.f32.gmra.mxu0 %v2513
    %v2635 = vpop.f32.mrf.mxu0
    %v2636 = vadd.f32 %v2475, %v2635
    %2637 = vmatmul.f32.gmra.mxu0 %v2516
    %v2638 = vpop.f32.mrf.mxu0
    %v2639 = vadd.f32 %v2480, %v2638
    %2640 = vmatmul.f32.gmra.mxu0 %v2519
    %v2641 = vpop.f32.mrf.mxu0
    %v2642 = vadd.f32 %v2485, %v2641
    %2643 = vmatmul.f32.gmra.mxu0 %v2522
    %v2644 = vpop.f32.mrf.mxu0
    %v2645 = vadd.f32 %v2490, %v2644
    %2646 = vmatmul.f32.gmra.mxu0 %v2525
    %v2647 = vpop.f32.mrf.mxu0
    %v2648 = vadd.f32 %v2495, %v2647
    %2649 = vmatmul.f32.gmra.mxu0 %v2528
    %v2650 = vpop.f32.mrf.mxu0
    %v2651 = vadd.f32 %v2500, %v2650
    %2652 = vmatmul.f32.gmra.mxu0 %v2531
    %v2653 = vpop.f32.mrf.mxu0
    %v2654 = vadd.f32 %v2505, %v2653
    %2655 = vmatmul.f32.gmra.mxu0 %v2534
    %v2656 = vpop.f32.mrf.mxu0
    %v2657 = vadd.f32 %v2510, %v2656
    %2658 = vdwg.mxu0
    %2659 = vmatpush.msra.mxu0 0.0
    %2660 = vmatpush.msra.mxu0 0.0
    %2661 = vmatpush.msra.mxu0 0.0
    %2662 = vmatpush.msra.mxu0 0.0
    %2663 = vmatpush.msra.mxu0 0.0
    %2664 = vmatpush.msra.mxu0 0.0
    %2665 = vmatpush.msra.mxu0 0.0
    %2666 = vmatpush.msra.mxu0 0.0
    %2667 = vmatpush.msra.mxu0 %v2443
    %2668 = vmatpush.msra.mxu0 %v2427
    %2669 = vmatpush.msra.mxu0 %v2411
    %2670 = vmatpush.msra.mxu0 %v2395
    %2671 = vmatpush.msra.mxu0 %v2379
    %2672 = vmatpush.msra.mxu0 %v2363
    %2673 = vmatpush.msra.mxu0 %v2347
    %2674 = vmatpush.msra.mxu0 %v2331
    %2675 = vmatmul.f32.gmra.mxu0 %v2513
    %v2676 = vpop.f32.mrf.mxu0
    %v2677 = vadd.f32 %v2475, %v2676
    %2678 = vmatmul.f32.gmra.mxu0 %v2516
    %v2679 = vpop.f32.mrf.mxu0
    %v2680 = vadd.f32 %v2480, %v2679
    %2681 = vmatmul.f32.gmra.mxu0 %v2519
    %v2682 = vpop.f32.mrf.mxu0
    %v2683 = vadd.f32 %v2485, %v2682
    %2684 = vmatmul.f32.gmra.mxu0 %v2522
    %v2685 = vpop.f32.mrf.mxu0
    %v2686 = vadd.f32 %v2490, %v2685
    %2687 = vmatmul.f32.gmra.mxu0 %v2525
    %v2688 = vpop.f32.mrf.mxu0
    %v2689 = vadd.f32 %v2495, %v2688
    %2690 = vmatmul.f32.gmra.mxu0 %v2528
    %v2691 = vpop.f32.mrf.mxu0
    %v2692 = vadd.f32 %v2500, %v2691
    %2693 = vmatmul.f32.gmra.mxu0 %v2531
    %v2694 = vpop.f32.mrf.mxu0
    %v2695 = vadd.f32 %v2505, %v2694
    %2696 = vmatmul.f32.gmra.mxu0 %v2534
    %v2697 = vpop.f32.mrf.mxu0
    %v2698 = vadd.f32 %v2510, %v2697
    %2699 = vdwg.mxu0
    %2700 = vmatpush.msra.mxu0 0.0
    %2701 = vmatpush.msra.mxu0 0.0
    %2702 = vmatpush.msra.mxu0 0.0
    %2703 = vmatpush.msra.mxu0 0.0
    %2704 = vmatpush.msra.mxu0 0.0
    %2705 = vmatpush.msra.mxu0 0.0
    %2706 = vmatpush.msra.mxu0 0.0
    %2707 = vmatpush.msra.mxu0 0.0
    %2708 = vmatpush.msra.mxu0 %v2444
    %2709 = vmatpush.msra.mxu0 %v2428
    %2710 = vmatpush.msra.mxu0 %v2412
    %2711 = vmatpush.msra.mxu0 %v2396
    %2712 = vmatpush.msra.mxu0 %v2380
    %2713 = vmatpush.msra.mxu0 %v2364
    %2714 = vmatpush.msra.mxu0 %v2348
    %2715 = vmatpush.msra.mxu0 %v2332
    %2716 = vmatmul.f32.gmra.mxu0 %v2513
    %v2717 = vpop.f32.mrf.mxu0
    %v2718 = vadd.f32 %v2475, %v2717
    %2719 = vmatmul.f32.gmra.mxu0 %v2516
    %v2720 = vpop.f32.mrf.mxu0
    %v2721 = vadd.f32 %v2480, %v2720
    %2722 = vmatmul.f32.gmra.mxu0 %v2519
    %v2723 = vpop.f32.mrf.mxu0
    %v2724 = vadd.f32 %v2485, %v2723
    %2725 = vmatmul.f32.gmra.mxu0 %v2522
    %v2726 = vpop.f32.mrf.mxu0
    %v2727 = vadd.f32 %v2490, %v2726
    %2728 = vmatmul.f32.gmra.mxu0 %v2525
    %v2729 = vpop.f32.mrf.mxu0
    %v2730 = vadd.f32 %v2495, %v2729
    %2731 = vmatmul.f32.gmra.mxu0 %v2528
    %v2732 = vpop.f32.mrf.mxu0
    %v2733 = vadd.f32 %v2500, %v2732
    %2734 = vmatmul.f32.gmra.mxu0 %v2531
    %v2735 = vpop.f32.mrf.mxu0
    %v2736 = vadd.f32 %v2505, %v2735
    %2737 = vmatmul.f32.gmra.mxu0 %v2534
    %v2738 = vpop.f32.mrf.mxu0
    %v2739 = vadd.f32 %v2510, %v2738
    %2740 = vdwg.mxu0
    %2741 = vmatpush.msra.mxu0 0.0
    %2742 = vmatpush.msra.mxu0 0.0
    %2743 = vmatpush.msra.mxu0 0.0
    %2744 = vmatpush.msra.mxu0 0.0
    %2745 = vmatpush.msra.mxu0 0.0
    %2746 = vmatpush.msra.mxu0 0.0
    %2747 = vmatpush.msra.mxu0 0.0
    %2748 = vmatpush.msra.mxu0 0.0
    %2749 = vmatpush.msra.mxu0 %v2445
    %2750 = vmatpush.msra.mxu0 %v2429
    %2751 = vmatpush.msra.mxu0 %v2413
    %2752 = vmatpush.msra.mxu0 %v2397
    %2753 = vmatpush.msra.mxu0 %v2381
    %2754 = vmatpush.msra.mxu0 %v2365
    %2755 = vmatpush.msra.mxu0 %v2349
    %2756 = vmatpush.msra.mxu0 %v2333
    %2757 = vmatmul.f32.gmra.mxu0 %v2513
    %v2758 = vpop.f32.mrf.mxu0
    %v2759 = vadd.f32 %v2475, %v2758
    %2760 = vmatmul.f32.gmra.mxu0 %v2516
    %v2761 = vpop.f32.mrf.mxu0
    %v2762 = vadd.f32 %v2480, %v2761
    %2763 = vmatmul.f32.gmra.mxu0 %v2519
    %v2764 = vpop.f32.mrf.mxu0
    %v2765 = vadd.f32 %v2485, %v2764
    %2766 = vmatmul.f32.gmra.mxu0 %v2522
    %v2767 = vpop.f32.mrf.mxu0
    %v2768 = vadd.f32 %v2490, %v2767
    %2769 = vmatmul.f32.gmra.mxu0 %v2525
    %v2770 = vpop.f32.mrf.mxu0
    %v2771 = vadd.f32 %v2495, %v2770
    %2772 = vmatmul.f32.gmra.mxu0 %v2528
    %v2773 = vpop.f32.mrf.mxu0
    %v2774 = vadd.f32 %v2500, %v2773
    %2775 = vmatmul.f32.gmra.mxu0 %v2531
    %v2776 = vpop.f32.mrf.mxu0
    %v2777 = vadd.f32 %v2505, %v2776
    %2778 = vmatmul.f32.gmra.mxu0 %v2534
    %v2779 = vpop.f32.mrf.mxu0
    %v2780 = vadd.f32 %v2510, %v2779
    %2781 = vdwg.mxu0
    %2782 = vmatpush.msra.mxu0 0.0
    %2783 = vmatpush.msra.mxu0 0.0
    %2784 = vmatpush.msra.mxu0 0.0
    %2785 = vmatpush.msra.mxu0 0.0
    %2786 = vmatpush.msra.mxu0 0.0
    %2787 = vmatpush.msra.mxu0 0.0
    %2788 = vmatpush.msra.mxu0 0.0
    %2789 = vmatpush.msra.mxu0 0.0
    %2790 = vmatpush.msra.mxu0 %v2446
    %2791 = vmatpush.msra.mxu0 %v2430
    %2792 = vmatpush.msra.mxu0 %v2414
    %2793 = vmatpush.msra.mxu0 %v2398
    %2794 = vmatpush.msra.mxu0 %v2382
    %2795 = vmatpush.msra.mxu0 %v2366
    %2796 = vmatpush.msra.mxu0 %v2350
    %2797 = vmatpush.msra.mxu0 %v2334
    %2798 = vmatmul.f32.gmra.mxu0 %v2513
    %v2799 = vpop.f32.mrf.mxu0
    %v2800 = vadd.f32 %v2475, %v2799
    %2801 = vmatmul.f32.gmra.mxu0 %v2516
    %v2802 = vpop.f32.mrf.mxu0
    %v2803 = vadd.f32 %v2480, %v2802
    %2804 = vmatmul.f32.gmra.mxu0 %v2519
    %v2805 = vpop.f32.mrf.mxu0
    %v2806 = vadd.f32 %v2485, %v2805
    %2807 = vmatmul.f32.gmra.mxu0 %v2522
    %v2808 = vpop.f32.mrf.mxu0
    %v2809 = vadd.f32 %v2490, %v2808
    %2810 = vmatmul.f32.gmra.mxu0 %v2525
    %v2811 = vpop.f32.mrf.mxu0
    %v2812 = vadd.f32 %v2495, %v2811
    %2813 = vmatmul.f32.gmra.mxu0 %v2528
    %v2814 = vpop.f32.mrf.mxu0
    %v2815 = vadd.f32 %v2500, %v2814
    %2816 = vmatmul.f32.gmra.mxu0 %v2531
    %v2817 = vpop.f32.mrf.mxu0
    %v2818 = vadd.f32 %v2505, %v2817
    %2819 = vmatmul.f32.gmra.mxu0 %v2534
    %v2820 = vpop.f32.mrf.mxu0
    %v2821 = vadd.f32 %v2510, %v2820
    %2822 = vdwg.mxu0
    %2823 = vmatpush.msra.mxu0 0.0
    %2824 = vmatpush.msra.mxu0 0.0
    %2825 = vmatpush.msra.mxu0 0.0
    %2826 = vmatpush.msra.mxu0 0.0
    %2827 = vmatpush.msra.mxu0 0.0
    %2828 = vmatpush.msra.mxu0 0.0
    %2829 = vmatpush.msra.mxu0 0.0
    %2830 = vmatpush.msra.mxu0 0.0
    %2831 = vmatpush.msra.mxu0 %v2447
    %2832 = vmatpush.msra.mxu0 %v2431
    %2833 = vmatpush.msra.mxu0 %v2415
    %2834 = vmatpush.msra.mxu0 %v2399
    %2835 = vmatpush.msra.mxu0 %v2383
    %2836 = vmatpush.msra.mxu0 %v2367
    %2837 = vmatpush.msra.mxu0 %v2351
    %2838 = vmatpush.msra.mxu0 %v2335
    %2839 = vmatmul.f32.gmra.mxu0 %v2513
    %v2840 = vpop.f32.mrf.mxu0
    %v2841 = vadd.f32 %v2475, %v2840
    %2842 = vmatmul.f32.gmra.mxu0 %v2516
    %v2843 = vpop.f32.mrf.mxu0
    %v2844 = vadd.f32 %v2480, %v2843
    %2845 = vmatmul.f32.gmra.mxu0 %v2519
    %v2846 = vpop.f32.mrf.mxu0
    %v2847 = vadd.f32 %v2485, %v2846
    %2848 = vmatmul.f32.gmra.mxu0 %v2522
    %v2849 = vpop.f32.mrf.mxu0
    %v2850 = vadd.f32 %v2490, %v2849
    %2851 = vmatmul.f32.gmra.mxu0 %v2525
    %v2852 = vpop.f32.mrf.mxu0
    %v2853 = vadd.f32 %v2495, %v2852
    %2854 = vmatmul.f32.gmra.mxu0 %v2528
    %v2855 = vpop.f32.mrf.mxu0
    %v2856 = vadd.f32 %v2500, %v2855
    %2857 = vmatmul.f32.gmra.mxu0 %v2531
    %v2858 = vpop.f32.mrf.mxu0
    %v2859 = vadd.f32 %v2505, %v2858
    %2860 = vmatmul.f32.gmra.mxu0 %v2534
    %v2861 = vpop.f32.mrf.mxu0
    %v2862 = vadd.f32 %v2510, %v2861
    %2863 = vdwg.mxu0
    %2864 = vmatpush.msra.mxu0 0.0
    %2865 = vmatpush.msra.mxu0 0.0
    %2866 = vmatpush.msra.mxu0 0.0
    %2867 = vmatpush.msra.mxu0 0.0
    %2868 = vmatpush.msra.mxu0 0.0
    %2869 = vmatpush.msra.mxu0 0.0
    %2870 = vmatpush.msra.mxu0 0.0
    %2871 = vmatpush.msra.mxu0 0.0
    %2872 = vmatpush.msra.mxu0 %v2448
    %2873 = vmatpush.msra.mxu0 %v2432
    %2874 = vmatpush.msra.mxu0 %v2416
    %2875 = vmatpush.msra.mxu0 %v2400
    %2876 = vmatpush.msra.mxu0 %v2384
    %2877 = vmatpush.msra.mxu0 %v2368
    %2878 = vmatpush.msra.mxu0 %v2352
    %2879 = vmatpush.msra.mxu0 %v2336
    %2880 = vmatmul.f32.gmra.mxu0 %v2513
    %v2881 = vpop.f32.mrf.mxu0
    %v2882 = vadd.f32 %v2475, %v2881
    %2883 = vmatmul.f32.gmra.mxu0 %v2516
    %v2884 = vpop.f32.mrf.mxu0
    %v2885 = vadd.f32 %v2480, %v2884
    %2886 = vmatmul.f32.gmra.mxu0 %v2519
    %v2887 = vpop.f32.mrf.mxu0
    %v2888 = vadd.f32 %v2485, %v2887
    %2889 = vmatmul.f32.gmra.mxu0 %v2522
    %v2890 = vpop.f32.mrf.mxu0
    %v2891 = vadd.f32 %v2490, %v2890
    %2892 = vmatmul.f32.gmra.mxu0 %v2525
    %v2893 = vpop.f32.mrf.mxu0
    %v2894 = vadd.f32 %v2495, %v2893
    %2895 = vmatmul.f32.gmra.mxu0 %v2528
    %v2896 = vpop.f32.mrf.mxu0
    %v2897 = vadd.f32 %v2500, %v2896
    %2898 = vmatmul.f32.gmra.mxu0 %v2531
    %v2899 = vpop.f32.mrf.mxu0
    %v2900 = vadd.f32 %v2505, %v2899
    %2901 = vmatmul.f32.gmra.mxu0 %v2534
    %v2902 = vpop.f32.mrf.mxu0
    %v2903 = vadd.f32 %v2510, %v2902
    %2904 = vdwg.mxu0
    %2905 = vmatpush.msra.mxu0 0.0
    %2906 = vmatpush.msra.mxu0 0.0
    %2907 = vmatpush.msra.mxu0 0.0
    %2908 = vmatpush.msra.mxu0 0.0
    %2909 = vmatpush.msra.mxu0 0.0
    %2910 = vmatpush.msra.mxu0 0.0
    %2911 = vmatpush.msra.mxu0 0.0
    %2912 = vmatpush.msra.mxu0 0.0
    %2913 = vmatpush.msra.mxu0 %v2449
    %2914 = vmatpush.msra.mxu0 %v2433
    %2915 = vmatpush.msra.mxu0 %v2417
    %2916 = vmatpush.msra.mxu0 %v2401
    %2917 = vmatpush.msra.mxu0 %v2385
    %2918 = vmatpush.msra.mxu0 %v2369
    %2919 = vmatpush.msra.mxu0 %v2353
    %2920 = vmatpush.msra.mxu0 %v2337
    %2921 = vmatmul.f32.gmra.mxu0 %v2513
    %v2922 = vpop.f32.mrf.mxu0
    %v2923 = vadd.f32 %v2475, %v2922
    %2924 = vmatmul.f32.gmra.mxu0 %v2516
    %v2925 = vpop.f32.mrf.mxu0
    %v2926 = vadd.f32 %v2480, %v2925
    %2927 = vmatmul.f32.gmra.mxu0 %v2519
    %v2928 = vpop.f32.mrf.mxu0
    %v2929 = vadd.f32 %v2485, %v2928
    %2930 = vmatmul.f32.gmra.mxu0 %v2522
    %v2931 = vpop.f32.mrf.mxu0
    %v2932 = vadd.f32 %v2490, %v2931
    %2933 = vmatmul.f32.gmra.mxu0 %v2525
    %v2934 = vpop.f32.mrf.mxu0
    %v2935 = vadd.f32 %v2495, %v2934
    %2936 = vmatmul.f32.gmra.mxu0 %v2528
    %v2937 = vpop.f32.mrf.mxu0
    %v2938 = vadd.f32 %v2500, %v2937
    %2939 = vmatmul.f32.gmra.mxu0 %v2531
    %v2940 = vpop.f32.mrf.mxu0
    %v2941 = vadd.f32 %v2505, %v2940
    %2942 = vmatmul.f32.gmra.mxu0 %v2534
    %v2943 = vpop.f32.mrf.mxu0
    %v2944 = vadd.f32 %v2510, %v2943
    %2945 = vdwg.mxu0
    %2946 = vmatpush.msra.mxu0 0.0
    %2947 = vmatpush.msra.mxu0 0.0
    %2948 = vmatpush.msra.mxu0 0.0
    %2949 = vmatpush.msra.mxu0 0.0
    %2950 = vmatpush.msra.mxu0 0.0
    %2951 = vmatpush.msra.mxu0 0.0
    %2952 = vmatpush.msra.mxu0 0.0
    %2953 = vmatpush.msra.mxu0 0.0
    %2954 = vmatpush.msra.mxu0 %v2450
    %2955 = vmatpush.msra.mxu0 %v2434
    %2956 = vmatpush.msra.mxu0 %v2418
    %2957 = vmatpush.msra.mxu0 %v2402
    %2958 = vmatpush.msra.mxu0 %v2386
    %2959 = vmatpush.msra.mxu0 %v2370
    %2960 = vmatpush.msra.mxu0 %v2354
    %2961 = vmatpush.msra.mxu0 %v2338
    %2962 = vmatmul.f32.gmra.mxu0 %v2513
    %v2963 = vpop.f32.mrf.mxu0
    %v2964 = vadd.f32 %v2475, %v2963
    %2965 = vmatmul.f32.gmra.mxu0 %v2516
    %v2966 = vpop.f32.mrf.mxu0
    %v2967 = vadd.f32 %v2480, %v2966
    %2968 = vmatmul.f32.gmra.mxu0 %v2519
    %v2969 = vpop.f32.mrf.mxu0
    %v2970 = vadd.f32 %v2485, %v2969
    %2971 = vmatmul.f32.gmra.mxu0 %v2522
    %v2972 = vpop.f32.mrf.mxu0
    %v2973 = vadd.f32 %v2490, %v2972
    %2974 = vmatmul.f32.gmra.mxu0 %v2525
    %v2975 = vpop.f32.mrf.mxu0
    %v2976 = vadd.f32 %v2495, %v2975
    %2977 = vmatmul.f32.gmra.mxu0 %v2528
    %v2978 = vpop.f32.mrf.mxu0
    %v2979 = vadd.f32 %v2500, %v2978
    %2980 = vmatmul.f32.gmra.mxu0 %v2531
    %v2981 = vpop.f32.mrf.mxu0
    %v2982 = vadd.f32 %v2505, %v2981
    %2983 = vmatmul.f32.gmra.mxu0 %v2534
    %v2984 = vpop.f32.mrf.mxu0
    %v2985 = vadd.f32 %v2510, %v2984
    %2986 = vdwg.mxu0
    %2987 = vmatpush.msra.mxu0 0.0
    %2988 = vmatpush.msra.mxu0 0.0
    %2989 = vmatpush.msra.mxu0 0.0
    %2990 = vmatpush.msra.mxu0 0.0
    %2991 = vmatpush.msra.mxu0 0.0
    %2992 = vmatpush.msra.mxu0 0.0
    %2993 = vmatpush.msra.mxu0 0.0
    %2994 = vmatpush.msra.mxu0 0.0
    %2995 = vmatpush.msra.mxu0 %v2451
    %2996 = vmatpush.msra.mxu0 %v2435
    %2997 = vmatpush.msra.mxu0 %v2419
    %2998 = vmatpush.msra.mxu0 %v2403
    %2999 = vmatpush.msra.mxu0 %v2387
    %3000 = vmatpush.msra.mxu0 %v2371
    %3001 = vmatpush.msra.mxu0 %v2355
    %3002 = vmatpush.msra.mxu0 %v2339
    %3003 = vmatmul.f32.gmra.mxu0 %v2513
    %v3004 = vpop.f32.mrf.mxu0
    %v3005 = vadd.f32 %v2475, %v3004
    %3006 = vmatmul.f32.gmra.mxu0 %v2516
    %v3007 = vpop.f32.mrf.mxu0
    %v3008 = vadd.f32 %v2480, %v3007
    %3009 = vmatmul.f32.gmra.mxu0 %v2519
    %v3010 = vpop.f32.mrf.mxu0
    %v3011 = vadd.f32 %v2485, %v3010
    %3012 = vmatmul.f32.gmra.mxu0 %v2522
    %v3013 = vpop.f32.mrf.mxu0
    %v3014 = vadd.f32 %v2490, %v3013
    %3015 = vmatmul.f32.gmra.mxu0 %v2525
    %v3016 = vpop.f32.mrf.mxu0
    %v3017 = vadd.f32 %v2495, %v3016
    %3018 = vmatmul.f32.gmra.mxu0 %v2528
    %v3019 = vpop.f32.mrf.mxu0
    %v3020 = vadd.f32 %v2500, %v3019
    %3021 = vmatmul.f32.gmra.mxu0 %v2531
    %v3022 = vpop.f32.mrf.mxu0
    %v3023 = vadd.f32 %v2505, %v3022
    %3024 = vmatmul.f32.gmra.mxu0 %v2534
    %v3025 = vpop.f32.mrf.mxu0
    %v3026 = vadd.f32 %v2510, %v3025
    %3027 = vdwg.mxu0
    %3028 = vmatpush.msra.mxu0 0.0
    %3029 = vmatpush.msra.mxu0 0.0
    %3030 = vmatpush.msra.mxu0 0.0
    %3031 = vmatpush.msra.mxu0 0.0
    %3032 = vmatpush.msra.mxu0 0.0
    %3033 = vmatpush.msra.mxu0 0.0
    %3034 = vmatpush.msra.mxu0 0.0
    %3035 = vmatpush.msra.mxu0 0.0
    %3036 = vmatpush.msra.mxu0 %v2452
    %3037 = vmatpush.msra.mxu0 %v2436
    %3038 = vmatpush.msra.mxu0 %v2420
    %3039 = vmatpush.msra.mxu0 %v2404
    %3040 = vmatpush.msra.mxu0 %v2388
    %3041 = vmatpush.msra.mxu0 %v2372
    %3042 = vmatpush.msra.mxu0 %v2356
    %3043 = vmatpush.msra.mxu0 %v2340
    %3044 = vmatmul.f32.gmra.mxu0 %v2513
    %v3045 = vpop.f32.mrf.mxu0
    %v3046 = vadd.f32 %v2475, %v3045
    %3047 = vmatmul.f32.gmra.mxu0 %v2516
    %v3048 = vpop.f32.mrf.mxu0
    %v3049 = vadd.f32 %v2480, %v3048
    %3050 = vmatmul.f32.gmra.mxu0 %v2519
    %v3051 = vpop.f32.mrf.mxu0
    %v3052 = vadd.f32 %v2485, %v3051
    %3053 = vmatmul.f32.gmra.mxu0 %v2522
    %v3054 = vpop.f32.mrf.mxu0
    %v3055 = vadd.f32 %v2490, %v3054
    %3056 = vmatmul.f32.gmra.mxu0 %v2525
    %v3057 = vpop.f32.mrf.mxu0
    %v3058 = vadd.f32 %v2495, %v3057
    %3059 = vmatmul.f32.gmra.mxu0 %v2528
    %v3060 = vpop.f32.mrf.mxu0
    %v3061 = vadd.f32 %v2500, %v3060
    %3062 = vmatmul.f32.gmra.mxu0 %v2531
    %v3063 = vpop.f32.mrf.mxu0
    %v3064 = vadd.f32 %v2505, %v3063
    %3065 = vmatmul.f32.gmra.mxu0 %v2534
    %v3066 = vpop.f32.mrf.mxu0
    %v3067 = vadd.f32 %v2510, %v3066
    %3068 = vdwg.mxu0
    %3069 = vmatpush.msra.mxu0 0.0
    %3070 = vmatpush.msra.mxu0 0.0
    %3071 = vmatpush.msra.mxu0 0.0
    %3072 = vmatpush.msra.mxu0 0.0
    %3073 = vmatpush.msra.mxu0 0.0
    %3074 = vmatpush.msra.mxu0 0.0
    %3075 = vmatpush.msra.mxu0 0.0
    %3076 = vmatpush.msra.mxu0 0.0
    %3077 = vmatpush.msra.mxu0 %v2453
    %3078 = vmatpush.msra.mxu0 %v2437
    %3079 = vmatpush.msra.mxu0 %v2421
    %3080 = vmatpush.msra.mxu0 %v2405
    %3081 = vmatpush.msra.mxu0 %v2389
    %3082 = vmatpush.msra.mxu0 %v2373
    %3083 = vmatpush.msra.mxu0 %v2357
    %3084 = vmatpush.msra.mxu0 %v2341
    %3085 = vmatmul.f32.gmra.mxu0 %v2513
    %v3086 = vpop.f32.mrf.mxu0
    %v3087 = vadd.f32 %v2475, %v3086
    %3088 = vmatmul.f32.gmra.mxu0 %v2516
    %v3089 = vpop.f32.mrf.mxu0
    %v3090 = vadd.f32 %v2480, %v3089
    %3091 = vmatmul.f32.gmra.mxu0 %v2519
    %v3092 = vpop.f32.mrf.mxu0
    %v3093 = vadd.f32 %v2485, %v3092
    %3094 = vmatmul.f32.gmra.mxu0 %v2522
    %v3095 = vpop.f32.mrf.mxu0
    %v3096 = vadd.f32 %v2490, %v3095
    %3097 = vmatmul.f32.gmra.mxu0 %v2525
    %v3098 = vpop.f32.mrf.mxu0
    %v3099 = vadd.f32 %v2495, %v3098
    %3100 = vmatmul.f32.gmra.mxu0 %v2528
    %v3101 = vpop.f32.mrf.mxu0
    %v3102 = vadd.f32 %v2500, %v3101
    %3103 = vmatmul.f32.gmra.mxu0 %v2531
    %v3104 = vpop.f32.mrf.mxu0
    %v3105 = vadd.f32 %v2505, %v3104
    %3106 = vmatmul.f32.gmra.mxu0 %v2534
    %v3107 = vpop.f32.mrf.mxu0
    %v3108 = vadd.f32 %v2510, %v3107
    %3109 = vdwg.mxu0
    %3110 = vmatpush.msra.mxu0 0.0
    %3111 = vmatpush.msra.mxu0 0.0
    %3112 = vmatpush.msra.mxu0 0.0
    %3113 = vmatpush.msra.mxu0 0.0
    %3114 = vmatpush.msra.mxu0 0.0
    %3115 = vmatpush.msra.mxu0 0.0
    %3116 = vmatpush.msra.mxu0 0.0
    %3117 = vmatpush.msra.mxu0 0.0
    %3118 = vmatpush.msra.mxu0 %v2454
    %3119 = vmatpush.msra.mxu0 %v2438
    %3120 = vmatpush.msra.mxu0 %v2422
    %3121 = vmatpush.msra.mxu0 %v2406
    %3122 = vmatpush.msra.mxu0 %v2390
    %3123 = vmatpush.msra.mxu0 %v2374
    %3124 = vmatpush.msra.mxu0 %v2358
    %3125 = vmatpush.msra.mxu0 %v2342
    %3126 = vmatmul.f32.gmra.mxu0 %v2513
    %v3127 = vpop.f32.mrf.mxu0
    %v3128 = vadd.f32 %v2475, %v3127
    %3129 = vmatmul.f32.gmra.mxu0 %v2516
    %v3130 = vpop.f32.mrf.mxu0
    %v3131 = vadd.f32 %v2480, %v3130
    %3132 = vmatmul.f32.gmra.mxu0 %v2519
    %v3133 = vpop.f32.mrf.mxu0
    %v3134 = vadd.f32 %v2485, %v3133
    %3135 = vmatmul.f32.gmra.mxu0 %v2522
    %v3136 = vpop.f32.mrf.mxu0
    %v3137 = vadd.f32 %v2490, %v3136
    %3138 = vmatmul.f32.gmra.mxu0 %v2525
    %v3139 = vpop.f32.mrf.mxu0
    %v3140 = vadd.f32 %v2495, %v3139
    %3141 = vmatmul.f32.gmra.mxu0 %v2528
    %v3142 = vpop.f32.mrf.mxu0
    %v3143 = vadd.f32 %v2500, %v3142
    %3144 = vmatmul.f32.gmra.mxu0 %v2531
    %v3145 = vpop.f32.mrf.mxu0
    %v3146 = vadd.f32 %v2505, %v3145
    %3147 = vmatmul.f32.gmra.mxu0 %v2534
    %v3148 = vpop.f32.mrf.mxu0
    %v3149 = vadd.f32 %v2510, %v3148
    %3150 = vdwg.mxu0
    %3151 = vmatpush.msra.mxu0 0.0
    %3152 = vmatpush.msra.mxu0 0.0
    %3153 = vmatpush.msra.mxu0 0.0
    %3154 = vmatpush.msra.mxu0 0.0
    %3155 = vmatpush.msra.mxu0 0.0
    %3156 = vmatpush.msra.mxu0 0.0
    %3157 = vmatpush.msra.mxu0 0.0
    %3158 = vmatpush.msra.mxu0 0.0
    %3159 = vmatpush.msra.mxu0 %v2455
    %3160 = vmatpush.msra.mxu0 %v2439
    %3161 = vmatpush.msra.mxu0 %v2423
    %3162 = vmatpush.msra.mxu0 %v2407
    %3163 = vmatpush.msra.mxu0 %v2391
    %3164 = vmatpush.msra.mxu0 %v2375
    %3165 = vmatpush.msra.mxu0 %v2359
    %3166 = vmatpush.msra.mxu0 %v2343
    %3167 = vmatmul.f32.gmra.mxu0 %v2513
    %v3168 = vpop.f32.mrf.mxu0
    %v3169 = vadd.f32 %v2475, %v3168
    %3170 = vmatmul.f32.gmra.mxu0 %v2516
    %v3171 = vpop.f32.mrf.mxu0
    %v3172 = vadd.f32 %v2480, %v3171
    %3173 = vmatmul.f32.gmra.mxu0 %v2519
    %v3174 = vpop.f32.mrf.mxu0
    %v3175 = vadd.f32 %v2485, %v3174
    %3176 = vmatmul.f32.gmra.mxu0 %v2522
    %v3177 = vpop.f32.mrf.mxu0
    %v3178 = vadd.f32 %v2490, %v3177
    %3179 = vmatmul.f32.gmra.mxu0 %v2525
    %v3180 = vpop.f32.mrf.mxu0
    %v3181 = vadd.f32 %v2495, %v3180
    %3182 = vmatmul.f32.gmra.mxu0 %v2528
    %v3183 = vpop.f32.mrf.mxu0
    %v3184 = vadd.f32 %v2500, %v3183
    %3185 = vmatmul.f32.gmra.mxu0 %v2531
    %v3186 = vpop.f32.mrf.mxu0
    %v3187 = vadd.f32 %v2505, %v3186
    %3188 = vmatmul.f32.gmra.mxu0 %v2534
    %v3189 = vpop.f32.mrf.mxu0
    %v3190 = vadd.f32 %v2510, %v3189
    %3191 = vdwg.mxu0
    %v3192 = vtanh.pop %v2554
    %v3193 = vtanh.pop %v2595
    %v3194 = vtanh.pop %v2636
    %v3195 = vtanh.pop %v2677
    %v3196 = vtanh.pop %v2718
    %v3197 = vtanh.pop %v2759
    %v3198 = vtanh.pop %v2800
    %v3199 = vtanh.pop %v2841
    %v3200 = vtanh.pop %v2882
    %v3201 = vtanh.pop %v2923
    %v3202 = vtanh.pop %v2964
    %v3203 = vtanh.pop %v3005
    %v3204 = vtanh.pop %v3046
    %v3205 = vtanh.pop %v3087
    %v3206 = vtanh.pop %v3128
    %v3207 = vtanh.pop %v3169
    %v3208 = vtanh.pop %v2557
    %v3209 = vtanh.pop %v2598
    %v3210 = vtanh.pop %v2639
    %v3211 = vtanh.pop %v2680
    %v3212 = vtanh.pop %v2721
    %v3213 = vtanh.pop %v2762
    %v3214 = vtanh.pop %v2803
    %v3215 = vtanh.pop %v2844
    %v3216 = vtanh.pop %v2885
    %v3217 = vtanh.pop %v2926
    %v3218 = vtanh.pop %v2967
    %v3219 = vtanh.pop %v3008
    %v3220 = vtanh.pop %v3049
    %v3221 = vtanh.pop %v3090
    %v3222 = vtanh.pop %v3131
    %v3223 = vtanh.pop %v3172
    %v3224 = vtanh.pop %v2560
    %v3225 = vtanh.pop %v2601
    %v3226 = vtanh.pop %v2642
    %v3227 = vtanh.pop %v2683
    %v3228 = vtanh.pop %v2724
    %v3229 = vtanh.pop %v2765
    %v3230 = vtanh.pop %v2806
    %v3231 = vtanh.pop %v2847
    %v3232 = vtanh.pop %v2888
    %v3233 = vtanh.pop %v2929
    %v3234 = vtanh.pop %v2970
    %v3235 = vtanh.pop %v3011
    %v3236 = vtanh.pop %v3052
    %v3237 = vtanh.pop %v3093
    %v3238 = vtanh.pop %v3134
    %v3239 = vtanh.pop %v3175
    %v3240 = vtanh.pop %v2563
    %v3241 = vtanh.pop %v2604
    %v3242 = vtanh.pop %v2645
    %v3243 = vtanh.pop %v2686
    %v3244 = vtanh.pop %v2727
    %v3245 = vtanh.pop %v2768
    %v3246 = vtanh.pop %v2809
    %v3247 = vtanh.pop %v2850
    %v3248 = vtanh.pop %v2891
    %v3249 = vtanh.pop %v2932
    %v3250 = vtanh.pop %v2973
    %v3251 = vtanh.pop %v3014
    %v3252 = vtanh.pop %v3055
    %v3253 = vtanh.pop %v3096
    %v3254 = vtanh.pop %v3137
    %v3255 = vtanh.pop %v3178
    %v3256 = vtanh.pop %v2566
    %v3257 = vtanh.pop %v2607
    %v3258 = vtanh.pop %v2648
    %v3259 = vtanh.pop %v2689
    %v3260 = vtanh.pop %v2730
    %v3261 = vtanh.pop %v2771
    %v3262 = vtanh.pop %v2812
    %v3263 = vtanh.pop %v2853
    %v3264 = vtanh.pop %v2894
    %v3265 = vtanh.pop %v2935
    %v3266 = vtanh.pop %v2976
    %v3267 = vtanh.pop %v3017
    %v3268 = vtanh.pop %v3058
    %v3269 = vtanh.pop %v3099
    %v3270 = vtanh.pop %v3140
    %v3271 = vtanh.pop %v3181
    %v3272 = vtanh.pop %v2569
    %v3273 = vtanh.pop %v2610
    %v3274 = vtanh.pop %v2651
    %v3275 = vtanh.pop %v2692
    %v3276 = vtanh.pop %v2733
    %v3277 = vtanh.pop %v2774
    %v3278 = vtanh.pop %v2815
    %v3279 = vtanh.pop %v2856
    %v3280 = vtanh.pop %v2897
    %v3281 = vtanh.pop %v2938
    %v3282 = vtanh.pop %v2979
    %v3283 = vtanh.pop %v3020
    %v3284 = vtanh.pop %v3061
    %v3285 = vtanh.pop %v3102
    %v3286 = vtanh.pop %v3143
    %v3287 = vtanh.pop %v3184
    %v3288 = vtanh.pop %v2572
    %v3289 = vtanh.pop %v2613
    %v3290 = vtanh.pop %v2654
    %v3291 = vtanh.pop %v2695
    %v3292 = vtanh.pop %v2736
    %v3293 = vtanh.pop %v2777
    %v3294 = vtanh.pop %v2818
    %v3295 = vtanh.pop %v2859
    %v3296 = vtanh.pop %v2900
    %v3297 = vtanh.pop %v2941
    %v3298 = vtanh.pop %v2982
    %v3299 = vtanh.pop %v3023
    %v3300 = vtanh.pop %v3064
    %v3301 = vtanh.pop %v3105
    %v3302 = vtanh.pop %v3146
    %v3303 = vtanh.pop %v3187
    %v3304 = vtanh.pop %v2575
    %v3305 = vtanh.pop %v2616
    %v3306 = vtanh.pop %v2657
    %v3307 = vtanh.pop %v2698
    %v3308 = vtanh.pop %v2739
    %v3309 = vtanh.pop %v2780
    %v3310 = vtanh.pop %v2821
    %v3311 = vtanh.pop %v2862
    %v3312 = vtanh.pop %v2903
    %v3313 = vtanh.pop %v2944
    %v3314 = vtanh.pop %v2985
    %v3315 = vtanh.pop %v3026
    %v3316 = vtanh.pop %v3067
    %v3317 = vtanh.pop %v3108
    %v3318 = vtanh.pop %v3149
    %v3319 = vtanh.pop %v3190
    %v3320 = vld [vmem:[%s7] sm:$0xff]
    %v3321 = vld [vmem:[%s7 + $0x8] sm:$0xff]
    %v3322 = vld [vmem:[%s7 + $0x10] sm:$0xff]
    %v3323 = vld [vmem:[%s7 + $0x18] sm:$0xff]
    %v3324 = vld [vmem:[%s7 + $0x20] sm:$0xff]
    %v3325 = vld [vmem:[%s7 + $0x28] sm:$0xff]
    %v3326 = vld [vmem:[%s7 + $0x30] sm:$0xff]
    %v3327 = vld [vmem:[%s7 + $0x38] sm:$0xff]
    %v3328 = vld [vmem:[%s8] sm:$0xff]
    %v3329 = vld [vmem:[%s8 + $0x8] sm:$0xff]
    %v3330 = vld [vmem:[%s8 + $0x10] sm:$0xff]
    %v3331 = vld [vmem:[%s8 + $0x18] sm:$0xff]
    %v3332 = vld [vmem:[%s8 + $0x20] sm:$0xff]
    %v3333 = vld [vmem:[%s8 + $0x28] sm:$0xff]
    %v3334 = vld [vmem:[%s8 + $0x30] sm:$0xff]
    %v3335 = vld [vmem:[%s8 + $0x38] sm:$0xff]
    %3337 = vset.pattern.permute.xlu0 0
    %3338 = vperm.xlu0 %3337, %v3328
    %v3339 = vpop.permute.xlu0 %3338
    %3342 = vset.pattern.permute.xlu0 0
    %3343 = vperm.xlu0 %3342, %v3329
    %v3344 = vpop.permute.xlu0 %3343
    %3347 = vset.pattern.permute.xlu0 0
    %3348 = vperm.xlu0 %3347, %v3330
    %v3349 = vpop.permute.xlu0 %3348
    %3352 = vset.pattern.permute.xlu0 0
    %3353 = vperm.xlu0 %3352, %v3331
    %v3354 = vpop.permute.xlu0 %3353
    %3357 = vset.pattern.permute.xlu0 0
    %3358 = vperm.xlu0 %3357, %v3332
    %v3359 = vpop.permute.xlu0 %3358
    %3362 = vset.pattern.permute.xlu0 0
    %3363 = vperm.xlu0 %3362, %v3333
    %v3364 = vpop.permute.xlu0 %3363
    %3367 = vset.pattern.permute.xlu0 0
    %3368 = vperm.xlu0 %3367, %v3334
    %v3369 = vpop.permute.xlu0 %3368
    %3372 = vset.pattern.permute.xlu0 0
    %3373 = vperm.xlu0 %3372, %v3335
    %v3374 = vpop.permute.xlu0 %3373
    %v3377 = vsel %vm1647, %v3320, 0
    %v3380 = vsel %vm1647, %v3321, 0
    %v3383 = vsel %vm1647, %v3322, 0
    %v3386 = vsel %vm1647, %v3323, 0
    %v3389 = vsel %vm1647, %v3324, 0
    %v3392 = vsel %vm1647, %v3325, 0
    %v3395 = vsel %vm1647, %v3326, 0
    %v3398 = vsel %vm1647, %v3327, 0
    %3400 = vmatpush.msra.mxu0 0.0
    %3401 = vmatpush.msra.mxu0 0.0
    %3402 = vmatpush.msra.mxu0 0.0
    %3403 = vmatpush.msra.mxu0 0.0
    %3404 = vmatpush.msra.mxu0 0.0
    %3405 = vmatpush.msra.mxu0 0.0
    %3406 = vmatpush.msra.mxu0 0.0
    %3407 = vmatpush.msra.mxu0 0.0
    %3408 = vmatpush.msra.mxu0 %v3304
    %3409 = vmatpush.msra.mxu0 %v3288
    %3410 = vmatpush.msra.mxu0 %v3272
    %3411 = vmatpush.msra.mxu0 %v3256
    %3412 = vmatpush.msra.mxu0 %v3240
    %3413 = vmatpush.msra.mxu0 %v3224
    %3414 = vmatpush.msra.mxu0 %v3208
    %3415 = vmatpush.msra.mxu0 %v3192
    %3416 = vmatmul.f32.gmra.mxu0 %v3377
    %v3417 = vpop.f32.mrf.mxu0
    %v3418 = vadd.f32 %v3339, %v3417
    %3419 = vmatmul.f32.gmra.mxu0 %v3380
    %v3420 = vpop.f32.mrf.mxu0
    %v3421 = vadd.f32 %v3344, %v3420
    %3422 = vmatmul.f32.gmra.mxu0 %v3383
    %v3423 = vpop.f32.mrf.mxu0
    %v3424 = vadd.f32 %v3349, %v3423
    %3425 = vmatmul.f32.gmra.mxu0 %v3386
    %v3426 = vpop.f32.mrf.mxu0
    %v3427 = vadd.f32 %v3354, %v3426
    %3428 = vmatmul.f32.gmra.mxu0 %v3389
    %v3429 = vpop.f32.mrf.mxu0
    %v3430 = vadd.f32 %v3359, %v3429
    %3431 = vmatmul.f32.gmra.mxu0 %v3392
    %v3432 = vpop.f32.mrf.mxu0
    %v3433 = vadd.f32 %v3364, %v3432
    %3434 = vmatmul.f32.gmra.mxu0 %v3395
    %v3435 = vpop.f32.mrf.mxu0
    %v3436 = vadd.f32 %v3369, %v3435
    %3437 = vmatmul.f32.gmra.mxu0 %v3398
    %v3438 = vpop.f32.mrf.mxu0
    %v3439 = vadd.f32 %v3374, %v3438
    %3440 = vdwg.mxu0
    %3441 = vmatpush.msra.mxu0 0.0
    %3442 = vmatpush.msra.mxu0 0.0
    %3443 = vmatpush.msra.mxu0 0.0
    %3444 = vmatpush.msra.mxu0 0.0
    %3445 = vmatpush.msra.mxu0 0.0
    %3446 = vmatpush.msra.mxu0 0.0
    %3447 = vmatpush.msra.mxu0 0.0
    %3448 = vmatpush.msra.mxu0 0.0
    %3449 = vmatpush.msra.mxu0 %v3305
    %3450 = vmatpush.msra.mxu0 %v3289
    %3451 = vmatpush.msra.mxu0 %v3273
    %3452 = vmatpush.msra.mxu0 %v3257
    %3453 = vmatpush.msra.mxu0 %v3241
    %3454 = vmatpush.msra.mxu0 %v3225
    %3455 = vmatpush.msra.mxu0 %v3209
    %3456 = vmatpush.msra.mxu0 %v3193
    %3457 = vmatmul.f32.gmra.mxu0 %v3377
    %v3458 = vpop.f32.mrf.mxu0
    %v3459 = vadd.f32 %v3339, %v3458
    %3460 = vmatmul.f32.gmra.mxu0 %v3380
    %v3461 = vpop.f32.mrf.mxu0
    %v3462 = vadd.f32 %v3344, %v3461
    %3463 = vmatmul.f32.gmra.mxu0 %v3383
    %v3464 = vpop.f32.mrf.mxu0
    %v3465 = vadd.f32 %v3349, %v3464
    %3466 = vmatmul.f32.gmra.mxu0 %v3386
    %v3467 = vpop.f32.mrf.mxu0
    %v3468 = vadd.f32 %v3354, %v3467
    %3469 = vmatmul.f32.gmra.mxu0 %v3389
    %v3470 = vpop.f32.mrf.mxu0
    %v3471 = vadd.f32 %v3359, %v3470
    %3472 = vmatmul.f32.gmra.mxu0 %v3392
    %v3473 = vpop.f32.mrf.mxu0
    %v3474 = vadd.f32 %v3364, %v3473
    %3475 = vmatmul.f32.gmra.mxu0 %v3395
    %v3476 = vpop.f32.mrf.mxu0
    %v3477 = vadd.f32 %v3369, %v3476
    %3478 = vmatmul.f32.gmra.mxu0 %v3398
    %v3479 = vpop.f32.mrf.mxu0
    %v3480 = vadd.f32 %v3374, %v3479
    %3481 = vdwg.mxu0
    %3482 = vmatpush.msra.mxu0 0.0
    %3483 = vmatpush.msra.mxu0 0.0
    %3484 = vmatpush.msra.mxu0 0.0
    %3485 = vmatpush.msra.mxu0 0.0
    %3486 = vmatpush.msra.mxu0 0.0
    %3487 = vmatpush.msra.mxu0 0.0
    %3488 = vmatpush.msra.mxu0 0.0
    %3489 = vmatpush.msra.mxu0 0.0
    %3490 = vmatpush.msra.mxu0 %v3306
    %3491 = vmatpush.msra.mxu0 %v3290
    %3492 = vmatpush.msra.mxu0 %v3274
    %3493 = vmatpush.msra.mxu0 %v3258
    %3494 = vmatpush.msra.mxu0 %v3242
    %3495 = vmatpush.msra.mxu0 %v3226
    %3496 = vmatpush.msra.mxu0 %v3210
    %3497 = vmatpush.msra.mxu0 %v3194
    %3498 = vmatmul.f32.gmra.mxu0 %v3377
    %v3499 = vpop.f32.mrf.mxu0
    %v3500 = vadd.f32 %v3339, %v3499
    %3501 = vmatmul.f32.gmra.mxu0 %v3380
    %v3502 = vpop.f32.mrf.mxu0
    %v3503 = vadd.f32 %v3344, %v3502
    %3504 = vmatmul.f32.gmra.mxu0 %v3383
    %v3505 = vpop.f32.mrf.mxu0
    %v3506 = vadd.f32 %v3349, %v3505
    %3507 = vmatmul.f32.gmra.mxu0 %v3386
    %v3508 = vpop.f32.mrf.mxu0
    %v3509 = vadd.f32 %v3354, %v3508
    %3510 = vmatmul.f32.gmra.mxu0 %v3389
    %v3511 = vpop.f32.mrf.mxu0
    %v3512 = vadd.f32 %v3359, %v3511
    %3513 = vmatmul.f32.gmra.mxu0 %v3392
    %v3514 = vpop.f32.mrf.mxu0
    %v3515 = vadd.f32 %v3364, %v3514
    %3516 = vmatmul.f32.gmra.mxu0 %v3395
    %v3517 = vpop.f32.mrf.mxu0
    %v3518 = vadd.f32 %v3369, %v3517
    %3519 = vmatmul.f32.gmra.mxu0 %v3398
    %v3520 = vpop.f32.mrf.mxu0
    %v3521 = vadd.f32 %v3374, %v3520
    %3522 = vdwg.mxu0
    %3523 = vmatpush.msra.mxu0 0.0
    %3524 = vmatpush.msra.mxu0 0.0
    %3525 = vmatpush.msra.mxu0 0.0
    %3526 = vmatpush.msra.mxu0 0.0
    %3527 = vmatpush.msra.mxu0 0.0
    %3528 = vmatpush.msra.mxu0 0.0
    %3529 = vmatpush.msra.mxu0 0.0
    %3530 = vmatpush.msra.mxu0 0.0
    %3531 = vmatpush.msra.mxu0 %v3307
    %3532 = vmatpush.msra.mxu0 %v3291
    %3533 = vmatpush.msra.mxu0 %v3275
    %3534 = vmatpush.msra.mxu0 %v3259
    %3535 = vmatpush.msra.mxu0 %v3243
    %3536 = vmatpush.msra.mxu0 %v3227
    %3537 = vmatpush.msra.mxu0 %v3211
    %3538 = vmatpush.msra.mxu0 %v3195
    %3539 = vmatmul.f32.gmra.mxu0 %v3377
    %v3540 = vpop.f32.mrf.mxu0
    %v3541 = vadd.f32 %v3339, %v3540
    %3542 = vmatmul.f32.gmra.mxu0 %v3380
    %v3543 = vpop.f32.mrf.mxu0
    %v3544 = vadd.f32 %v3344, %v3543
    %3545 = vmatmul.f32.gmra.mxu0 %v3383
    %v3546 = vpop.f32.mrf.mxu0
    %v3547 = vadd.f32 %v3349, %v3546
    %3548 = vmatmul.f32.gmra.mxu0 %v3386
    %v3549 = vpop.f32.mrf.mxu0
    %v3550 = vadd.f32 %v3354, %v3549
    %3551 = vmatmul.f32.gmra.mxu0 %v3389
    %v3552 = vpop.f32.mrf.mxu0
    %v3553 = vadd.f32 %v3359, %v3552
    %3554 = vmatmul.f32.gmra.mxu0 %v3392
    %v3555 = vpop.f32.mrf.mxu0
    %v3556 = vadd.f32 %v3364, %v3555
    %3557 = vmatmul.f32.gmra.mxu0 %v3395
    %v3558 = vpop.f32.mrf.mxu0
    %v3559 = vadd.f32 %v3369, %v3558
    %3560 = vmatmul.f32.gmra.mxu0 %v3398
    %v3561 = vpop.f32.mrf.mxu0
    %v3562 = vadd.f32 %v3374, %v3561
    %3563 = vdwg.mxu0
    %3564 = vmatpush.msra.mxu0 0.0
    %3565 = vmatpush.msra.mxu0 0.0
    %3566 = vmatpush.msra.mxu0 0.0
    %3567 = vmatpush.msra.mxu0 0.0
    %3568 = vmatpush.msra.mxu0 0.0
    %3569 = vmatpush.msra.mxu0 0.0
    %3570 = vmatpush.msra.mxu0 0.0
    %3571 = vmatpush.msra.mxu0 0.0
    %3572 = vmatpush.msra.mxu0 %v3308
    %3573 = vmatpush.msra.mxu0 %v3292
    %3574 = vmatpush.msra.mxu0 %v3276
    %3575 = vmatpush.msra.mxu0 %v3260
    %3576 = vmatpush.msra.mxu0 %v3244
    %3577 = vmatpush.msra.mxu0 %v3228
    %3578 = vmatpush.msra.mxu0 %v3212
    %3579 = vmatpush.msra.mxu0 %v3196
    %3580 = vmatmul.f32.gmra.mxu0 %v3377
    %v3581 = vpop.f32.mrf.mxu0
    %v3582 = vadd.f32 %v3339, %v3581
    %3583 = vmatmul.f32.gmra.mxu0 %v3380
    %v3584 = vpop.f32.mrf.mxu0
    %v3585 = vadd.f32 %v3344, %v3584
    %3586 = vmatmul.f32.gmra.mxu0 %v3383
    %v3587 = vpop.f32.mrf.mxu0
    %v3588 = vadd.f32 %v3349, %v3587
    %3589 = vmatmul.f32.gmra.mxu0 %v3386
    %v3590 = vpop.f32.mrf.mxu0
    %v3591 = vadd.f32 %v3354, %v3590
    %3592 = vmatmul.f32.gmra.mxu0 %v3389
    %v3593 = vpop.f32.mrf.mxu0
    %v3594 = vadd.f32 %v3359, %v3593
    %3595 = vmatmul.f32.gmra.mxu0 %v3392
    %v3596 = vpop.f32.mrf.mxu0
    %v3597 = vadd.f32 %v3364, %v3596
    %3598 = vmatmul.f32.gmra.mxu0 %v3395
    %v3599 = vpop.f32.mrf.mxu0
    %v3600 = vadd.f32 %v3369, %v3599
    %3601 = vmatmul.f32.gmra.mxu0 %v3398
    %v3602 = vpop.f32.mrf.mxu0
    %v3603 = vadd.f32 %v3374, %v3602
    %3604 = vdwg.mxu0
    %3605 = vmatpush.msra.mxu0 0.0
    %3606 = vmatpush.msra.mxu0 0.0
    %3607 = vmatpush.msra.mxu0 0.0
    %3608 = vmatpush.msra.mxu0 0.0
    %3609 = vmatpush.msra.mxu0 0.0
    %3610 = vmatpush.msra.mxu0 0.0
    %3611 = vmatpush.msra.mxu0 0.0
    %3612 = vmatpush.msra.mxu0 0.0
    %3613 = vmatpush.msra.mxu0 %v3309
    %3614 = vmatpush.msra.mxu0 %v3293
    %3615 = vmatpush.msra.mxu0 %v3277
    %3616 = vmatpush.msra.mxu0 %v3261
    %3617 = vmatpush.msra.mxu0 %v3245
    %3618 = vmatpush.msra.mxu0 %v3229
    %3619 = vmatpush.msra.mxu0 %v3213
    %3620 = vmatpush.msra.mxu0 %v3197
    %3621 = vmatmul.f32.gmra.mxu0 %v3377
    %v3622 = vpop.f32.mrf.mxu0
    %v3623 = vadd.f32 %v3339, %v3622
    %3624 = vmatmul.f32.gmra.mxu0 %v3380
    %v3625 = vpop.f32.mrf.mxu0
    %v3626 = vadd.f32 %v3344, %v3625
    %3627 = vmatmul.f32.gmra.mxu0 %v3383
    %v3628 = vpop.f32.mrf.mxu0
    %v3629 = vadd.f32 %v3349, %v3628
    %3630 = vmatmul.f32.gmra.mxu0 %v3386
    %v3631 = vpop.f32.mrf.mxu0
    %v3632 = vadd.f32 %v3354, %v3631
    %3633 = vmatmul.f32.gmra.mxu0 %v3389
    %v3634 = vpop.f32.mrf.mxu0
    %v3635 = vadd.f32 %v3359, %v3634
    %3636 = vmatmul.f32.gmra.mxu0 %v3392
    %v3637 = vpop.f32.mrf.mxu0
    %v3638 = vadd.f32 %v3364, %v3637
    %3639 = vmatmul.f32.gmra.mxu0 %v3395
    %v3640 = vpop.f32.mrf.mxu0
    %v3641 = vadd.f32 %v3369, %v3640
    %3642 = vmatmul.f32.gmra.mxu0 %v3398
    %v3643 = vpop.f32.mrf.mxu0
    %v3644 = vadd.f32 %v3374, %v3643
    %3645 = vdwg.mxu0
    %3646 = vmatpush.msra.mxu0 0.0
    %3647 = vmatpush.msra.mxu0 0.0
    %3648 = vmatpush.msra.mxu0 0.0
    %3649 = vmatpush.msra.mxu0 0.0
    %3650 = vmatpush.msra.mxu0 0.0
    %3651 = vmatpush.msra.mxu0 0.0
    %3652 = vmatpush.msra.mxu0 0.0
    %3653 = vmatpush.msra.mxu0 0.0
    %3654 = vmatpush.msra.mxu0 %v3310
    %3655 = vmatpush.msra.mxu0 %v3294
    %3656 = vmatpush.msra.mxu0 %v3278
    %3657 = vmatpush.msra.mxu0 %v3262
    %3658 = vmatpush.msra.mxu0 %v3246
    %3659 = vmatpush.msra.mxu0 %v3230
    %3660 = vmatpush.msra.mxu0 %v3214
    %3661 = vmatpush.msra.mxu0 %v3198
    %3662 = vmatmul.f32.gmra.mxu0 %v3377
    %v3663 = vpop.f32.mrf.mxu0
    %v3664 = vadd.f32 %v3339, %v3663
    %3665 = vmatmul.f32.gmra.mxu0 %v3380
    %v3666 = vpop.f32.mrf.mxu0
    %v3667 = vadd.f32 %v3344, %v3666
    %3668 = vmatmul.f32.gmra.mxu0 %v3383
    %v3669 = vpop.f32.mrf.mxu0
    %v3670 = vadd.f32 %v3349, %v3669
    %3671 = vmatmul.f32.gmra.mxu0 %v3386
    %v3672 = vpop.f32.mrf.mxu0
    %v3673 = vadd.f32 %v3354, %v3672
    %3674 = vmatmul.f32.gmra.mxu0 %v3389
    %v3675 = vpop.f32.mrf.mxu0
    %v3676 = vadd.f32 %v3359, %v3675
    %3677 = vmatmul.f32.gmra.mxu0 %v3392
    %v3678 = vpop.f32.mrf.mxu0
    %v3679 = vadd.f32 %v3364, %v3678
    %3680 = vmatmul.f32.gmra.mxu0 %v3395
    %v3681 = vpop.f32.mrf.mxu0
    %v3682 = vadd.f32 %v3369, %v3681
    %3683 = vmatmul.f32.gmra.mxu0 %v3398
    %v3684 = vpop.f32.mrf.mxu0
    %v3685 = vadd.f32 %v3374, %v3684
    %3686 = vdwg.mxu0
    %3687 = vmatpush.msra.mxu0 0.0
    %3688 = vmatpush.msra.mxu0 0.0
    %3689 = vmatpush.msra.mxu0 0.0
    %3690 = vmatpush.msra.mxu0 0.0
    %3691 = vmatpush.msra.mxu0 0.0
    %3692 = vmatpush.msra.mxu0 0.0
    %3693 = vmatpush.msra.mxu0 0.0
    %3694 = vmatpush.msra.mxu0 0.0
    %3695 = vmatpush.msra.mxu0 %v3311
    %3696 = vmatpush.msra.mxu0 %v3295
    %3697 = vmatpush.msra.mxu0 %v3279
    %3698 = vmatpush.msra.mxu0 %v3263
    %3699 = vmatpush.msra.mxu0 %v3247
    %3700 = vmatpush.msra.mxu0 %v3231
    %3701 = vmatpush.msra.mxu0 %v3215
    %3702 = vmatpush.msra.mxu0 %v3199
    %3703 = vmatmul.f32.gmra.mxu0 %v3377
    %v3704 = vpop.f32.mrf.mxu0
    %v3705 = vadd.f32 %v3339, %v3704
    %3706 = vmatmul.f32.gmra.mxu0 %v3380
    %v3707 = vpop.f32.mrf.mxu0
    %v3708 = vadd.f32 %v3344, %v3707
    %3709 = vmatmul.f32.gmra.mxu0 %v3383
    %v3710 = vpop.f32.mrf.mxu0
    %v3711 = vadd.f32 %v3349, %v3710
    %3712 = vmatmul.f32.gmra.mxu0 %v3386
    %v3713 = vpop.f32.mrf.mxu0
    %v3714 = vadd.f32 %v3354, %v3713
    %3715 = vmatmul.f32.gmra.mxu0 %v3389
    %v3716 = vpop.f32.mrf.mxu0
    %v3717 = vadd.f32 %v3359, %v3716
    %3718 = vmatmul.f32.gmra.mxu0 %v3392
    %v3719 = vpop.f32.mrf.mxu0
    %v3720 = vadd.f32 %v3364, %v3719
    %3721 = vmatmul.f32.gmra.mxu0 %v3395
    %v3722 = vpop.f32.mrf.mxu0
    %v3723 = vadd.f32 %v3369, %v3722
    %3724 = vmatmul.f32.gmra.mxu0 %v3398
    %v3725 = vpop.f32.mrf.mxu0
    %v3726 = vadd.f32 %v3374, %v3725
    %3727 = vdwg.mxu0
    %3728 = vmatpush.msra.mxu0 0.0
    %3729 = vmatpush.msra.mxu0 0.0
    %3730 = vmatpush.msra.mxu0 0.0
    %3731 = vmatpush.msra.mxu0 0.0
    %3732 = vmatpush.msra.mxu0 0.0
    %3733 = vmatpush.msra.mxu0 0.0
    %3734 = vmatpush.msra.mxu0 0.0
    %3735 = vmatpush.msra.mxu0 0.0
    %3736 = vmatpush.msra.mxu0 %v3312
    %3737 = vmatpush.msra.mxu0 %v3296
    %3738 = vmatpush.msra.mxu0 %v3280
    %3739 = vmatpush.msra.mxu0 %v3264
    %3740 = vmatpush.msra.mxu0 %v3248
    %3741 = vmatpush.msra.mxu0 %v3232
    %3742 = vmatpush.msra.mxu0 %v3216
    %3743 = vmatpush.msra.mxu0 %v3200
    %3744 = vmatmul.f32.gmra.mxu0 %v3377
    %v3745 = vpop.f32.mrf.mxu0
    %v3746 = vadd.f32 %v3339, %v3745
    %3747 = vmatmul.f32.gmra.mxu0 %v3380
    %v3748 = vpop.f32.mrf.mxu0
    %v3749 = vadd.f32 %v3344, %v3748
    %3750 = vmatmul.f32.gmra.mxu0 %v3383
    %v3751 = vpop.f32.mrf.mxu0
    %v3752 = vadd.f32 %v3349, %v3751
    %3753 = vmatmul.f32.gmra.mxu0 %v3386
    %v3754 = vpop.f32.mrf.mxu0
    %v3755 = vadd.f32 %v3354, %v3754
    %3756 = vmatmul.f32.gmra.mxu0 %v3389
    %v3757 = vpop.f32.mrf.mxu0
    %v3758 = vadd.f32 %v3359, %v3757
    %3759 = vmatmul.f32.gmra.mxu0 %v3392
    %v3760 = vpop.f32.mrf.mxu0
    %v3761 = vadd.f32 %v3364, %v3760
    %3762 = vmatmul.f32.gmra.mxu0 %v3395
    %v3763 = vpop.f32.mrf.mxu0
    %v3764 = vadd.f32 %v3369, %v3763
    %3765 = vmatmul.f32.gmra.mxu0 %v3398
    %v3766 = vpop.f32.mrf.mxu0
    %v3767 = vadd.f32 %v3374, %v3766
    %3768 = vdwg.mxu0
    %3769 = vmatpush.msra.mxu0 0.0
    %3770 = vmatpush.msra.mxu0 0.0
    %3771 = vmatpush.msra.mxu0 0.0
    %3772 = vmatpush.msra.mxu0 0.0
    %3773 = vmatpush.msra.mxu0 0.0
    %3774 = vmatpush.msra.mxu0 0.0
    %3775 = vmatpush.msra.mxu0 0.0
    %3776 = vmatpush.msra.mxu0 0.0
    %3777 = vmatpush.msra.mxu0 %v3313
    %3778 = vmatpush.msra.mxu0 %v3297
    %3779 = vmatpush.msra.mxu0 %v3281
    %3780 = vmatpush.msra.mxu0 %v3265
    %3781 = vmatpush.msra.mxu0 %v3249
    %3782 = vmatpush.msra.mxu0 %v3233
    %3783 = vmatpush.msra.mxu0 %v3217
    %3784 = vmatpush.msra.mxu0 %v3201
    %3785 = vmatmul.f32.gmra.mxu0 %v3377
    %v3786 = vpop.f32.mrf.mxu0
    %v3787 = vadd.f32 %v3339, %v3786
    %3788 = vmatmul.f32.gmra.mxu0 %v3380
    %v3789 = vpop.f32.mrf.mxu0
    %v3790 = vadd.f32 %v3344, %v3789
    %3791 = vmatmul.f32.gmra.mxu0 %v3383
    %v3792 = vpop.f32.mrf.mxu0
    %v3793 = vadd.f32 %v3349, %v3792
    %3794 = vmatmul.f32.gmra.mxu0 %v3386
    %v3795 = vpop.f32.mrf.mxu0
    %v3796 = vadd.f32 %v3354, %v3795
    %3797 = vmatmul.f32.gmra.mxu0 %v3389
    %v3798 = vpop.f32.mrf.mxu0
    %v3799 = vadd.f32 %v3359, %v3798
    %3800 = vmatmul.f32.gmra.mxu0 %v3392
    %v3801 = vpop.f32.mrf.mxu0
    %v3802 = vadd.f32 %v3364, %v3801
    %3803 = vmatmul.f32.gmra.mxu0 %v3395
    %v3804 = vpop.f32.mrf.mxu0
    %v3805 = vadd.f32 %v3369, %v3804
    %3806 = vmatmul.f32.gmra.mxu0 %v3398
    %v3807 = vpop.f32.mrf.mxu0
    %v3808 = vadd.f32 %v3374, %v3807
    %3809 = vdwg.mxu0
    %3810 = vmatpush.msra.mxu0 0.0
    %3811 = vmatpush.msra.mxu0 0.0
    %3812 = vmatpush.msra.mxu0 0.0
    %3813 = vmatpush.msra.mxu0 0.0
    %3814 = vmatpush.msra.mxu0 0.0
    %3815 = vmatpush.msra.mxu0 0.0
    %3816 = vmatpush.msra.mxu0 0.0
    %3817 = vmatpush.msra.mxu0 0.0
    %3818 = vmatpush.msra.mxu0 %v3314
    %3819 = vmatpush.msra.mxu0 %v3298
    %3820 = vmatpush.msra.mxu0 %v3282
    %3821 = vmatpush.msra.mxu0 %v3266
    %3822 = vmatpush.msra.mxu0 %v3250
    %3823 = vmatpush.msra.mxu0 %v3234
    %3824 = vmatpush.msra.mxu0 %v3218
    %3825 = vmatpush.msra.mxu0 %v3202
    %3826 = vmatmul.f32.gmra.mxu0 %v3377
    %v3827 = vpop.f32.mrf.mxu0
    %v3828 = vadd.f32 %v3339, %v3827
    %3829 = vmatmul.f32.gmra.mxu0 %v3380
    %v3830 = vpop.f32.mrf.mxu0
    %v3831 = vadd.f32 %v3344, %v3830
    %3832 = vmatmul.f32.gmra.mxu0 %v3383
    %v3833 = vpop.f32.mrf.mxu0
    %v3834 = vadd.f32 %v3349, %v3833
    %3835 = vmatmul.f32.gmra.mxu0 %v3386
    %v3836 = vpop.f32.mrf.mxu0
    %v3837 = vadd.f32 %v3354, %v3836
    %3838 = vmatmul.f32.gmra.mxu0 %v3389
    %v3839 = vpop.f32.mrf.mxu0
    %v3840 = vadd.f32 %v3359, %v3839
    %3841 = vmatmul.f32.gmra.mxu0 %v3392
    %v3842 = vpop.f32.mrf.mxu0
    %v3843 = vadd.f32 %v3364, %v3842
    %3844 = vmatmul.f32.gmra.mxu0 %v3395
    %v3845 = vpop.f32.mrf.mxu0
    %v3846 = vadd.f32 %v3369, %v3845
    %3847 = vmatmul.f32.gmra.mxu0 %v3398
    %v3848 = vpop.f32.mrf.mxu0
    %v3849 = vadd.f32 %v3374, %v3848
    %3850 = vdwg.mxu0
    %3851 = vmatpush.msra.mxu0 0.0
    %3852 = vmatpush.msra.mxu0 0.0
    %3853 = vmatpush.msra.mxu0 0.0
    %3854 = vmatpush.msra.mxu0 0.0
    %3855 = vmatpush.msra.mxu0 0.0
    %3856 = vmatpush.msra.mxu0 0.0
    %3857 = vmatpush.msra.mxu0 0.0
    %3858 = vmatpush.msra.mxu0 0.0
    %3859 = vmatpush.msra.mxu0 %v3315
    %3860 = vmatpush.msra.mxu0 %v3299
    %3861 = vmatpush.msra.mxu0 %v3283
    %3862 = vmatpush.msra.mxu0 %v3267
    %3863 = vmatpush.msra.mxu0 %v3251
    %3864 = vmatpush.msra.mxu0 %v3235
    %3865 = vmatpush.msra.mxu0 %v3219
    %3866 = vmatpush.msra.mxu0 %v3203
    %3867 = vmatmul.f32.gmra.mxu0 %v3377
    %v3868 = vpop.f32.mrf.mxu0
    %v3869 = vadd.f32 %v3339, %v3868
    %3870 = vmatmul.f32.gmra.mxu0 %v3380
    %v3871 = vpop.f32.mrf.mxu0
    %v3872 = vadd.f32 %v3344, %v3871
    %3873 = vmatmul.f32.gmra.mxu0 %v3383
    %v3874 = vpop.f32.mrf.mxu0
    %v3875 = vadd.f32 %v3349, %v3874
    %3876 = vmatmul.f32.gmra.mxu0 %v3386
    %v3877 = vpop.f32.mrf.mxu0
    %v3878 = vadd.f32 %v3354, %v3877
    %3879 = vmatmul.f32.gmra.mxu0 %v3389
    %v3880 = vpop.f32.mrf.mxu0
    %v3881 = vadd.f32 %v3359, %v3880
    %3882 = vmatmul.f32.gmra.mxu0 %v3392
    %v3883 = vpop.f32.mrf.mxu0
    %v3884 = vadd.f32 %v3364, %v3883
    %3885 = vmatmul.f32.gmra.mxu0 %v3395
    %v3886 = vpop.f32.mrf.mxu0
    %v3887 = vadd.f32 %v3369, %v3886
    %3888 = vmatmul.f32.gmra.mxu0 %v3398
    %v3889 = vpop.f32.mrf.mxu0
    %v3890 = vadd.f32 %v3374, %v3889
    %3891 = vdwg.mxu0
    %3892 = vmatpush.msra.mxu0 0.0
    %3893 = vmatpush.msra.mxu0 0.0
    %3894 = vmatpush.msra.mxu0 0.0
    %3895 = vmatpush.msra.mxu0 0.0
    %3896 = vmatpush.msra.mxu0 0.0
    %3897 = vmatpush.msra.mxu0 0.0
    %3898 = vmatpush.msra.mxu0 0.0
    %3899 = vmatpush.msra.mxu0 0.0
    %3900 = vmatpush.msra.mxu0 %v3316
    %3901 = vmatpush.msra.mxu0 %v3300
    %3902 = vmatpush.msra.mxu0 %v3284
    %3903 = vmatpush.msra.mxu0 %v3268
    %3904 = vmatpush.msra.mxu0 %v3252
    %3905 = vmatpush.msra.mxu0 %v3236
    %3906 = vmatpush.msra.mxu0 %v3220
    %3907 = vmatpush.msra.mxu0 %v3204
    %3908 = vmatmul.f32.gmra.mxu0 %v3377
    %v3909 = vpop.f32.mrf.mxu0
    %v3910 = vadd.f32 %v3339, %v3909
    %3911 = vmatmul.f32.gmra.mxu0 %v3380
    %v3912 = vpop.f32.mrf.mxu0
    %v3913 = vadd.f32 %v3344, %v3912
    %3914 = vmatmul.f32.gmra.mxu0 %v3383
    %v3915 = vpop.f32.mrf.mxu0
    %v3916 = vadd.f32 %v3349, %v3915
    %3917 = vmatmul.f32.gmra.mxu0 %v3386
    %v3918 = vpop.f32.mrf.mxu0
    %v3919 = vadd.f32 %v3354, %v3918
    %3920 = vmatmul.f32.gmra.mxu0 %v3389
    %v3921 = vpop.f32.mrf.mxu0
    %v3922 = vadd.f32 %v3359, %v3921
    %3923 = vmatmul.f32.gmra.mxu0 %v3392
    %v3924 = vpop.f32.mrf.mxu0
    %v3925 = vadd.f32 %v3364, %v3924
    %3926 = vmatmul.f32.gmra.mxu0 %v3395
    %v3927 = vpop.f32.mrf.mxu0
    %v3928 = vadd.f32 %v3369, %v3927
    %3929 = vmatmul.f32.gmra.mxu0 %v3398
    %v3930 = vpop.f32.mrf.mxu0
    %v3931 = vadd.f32 %v3374, %v3930
    %3932 = vdwg.mxu0
    %3933 = vmatpush.msra.mxu0 0.0
    %3934 = vmatpush.msra.mxu0 0.0
    %3935 = vmatpush.msra.mxu0 0.0
    %3936 = vmatpush.msra.mxu0 0.0
    %3937 = vmatpush.msra.mxu0 0.0
    %3938 = vmatpush.msra.mxu0 0.0
    %3939 = vmatpush.msra.mxu0 0.0
    %3940 = vmatpush.msra.mxu0 0.0
    %3941 = vmatpush.msra.mxu0 %v3317
    %3942 = vmatpush.msra.mxu0 %v3301
    %3943 = vmatpush.msra.mxu0 %v3285
    %3944 = vmatpush.msra.mxu0 %v3269
    %3945 = vmatpush.msra.mxu0 %v3253
    %3946 = vmatpush.msra.mxu0 %v3237
    %3947 = vmatpush.msra.mxu0 %v3221
    %3948 = vmatpush.msra.mxu0 %v3205
    %3949 = vmatmul.f32.gmra.mxu0 %v3377
    %v3950 = vpop.f32.mrf.mxu0
    %v3951 = vadd.f32 %v3339, %v3950
    %3952 = vmatmul.f32.gmra.mxu0 %v3380
    %v3953 = vpop.f32.mrf.mxu0
    %v3954 = vadd.f32 %v3344, %v3953
    %3955 = vmatmul.f32.gmra.mxu0 %v3383
    %v3956 = vpop.f32.mrf.mxu0
    %v3957 = vadd.f32 %v3349, %v3956
    %3958 = vmatmul.f32.gmra.mxu0 %v3386
    %v3959 = vpop.f32.mrf.mxu0
    %v3960 = vadd.f32 %v3354, %v3959
    %3961 = vmatmul.f32.gmra.mxu0 %v3389
    %v3962 = vpop.f32.mrf.mxu0
    %v3963 = vadd.f32 %v3359, %v3962
    %3964 = vmatmul.f32.gmra.mxu0 %v3392
    %v3965 = vpop.f32.mrf.mxu0
    %v3966 = vadd.f32 %v3364, %v3965
    %3967 = vmatmul.f32.gmra.mxu0 %v3395
    %v3968 = vpop.f32.mrf.mxu0
    %v3969 = vadd.f32 %v3369, %v3968
    %3970 = vmatmul.f32.gmra.mxu0 %v3398
    %v3971 = vpop.f32.mrf.mxu0
    %v3972 = vadd.f32 %v3374, %v3971
    %3973 = vdwg.mxu0
    %3974 = vmatpush.msra.mxu0 0.0
    %3975 = vmatpush.msra.mxu0 0.0
    %3976 = vmatpush.msra.mxu0 0.0
    %3977 = vmatpush.msra.mxu0 0.0
    %3978 = vmatpush.msra.mxu0 0.0
    %3979 = vmatpush.msra.mxu0 0.0
    %3980 = vmatpush.msra.mxu0 0.0
    %3981 = vmatpush.msra.mxu0 0.0
    %3982 = vmatpush.msra.mxu0 %v3318
    %3983 = vmatpush.msra.mxu0 %v3302
    %3984 = vmatpush.msra.mxu0 %v3286
    %3985 = vmatpush.msra.mxu0 %v3270
    %3986 = vmatpush.msra.mxu0 %v3254
    %3987 = vmatpush.msra.mxu0 %v3238
    %3988 = vmatpush.msra.mxu0 %v3222
    %3989 = vmatpush.msra.mxu0 %v3206
    %3990 = vmatmul.f32.gmra.mxu0 %v3377
    %v3991 = vpop.f32.mrf.mxu0
    %v3992 = vadd.f32 %v3339, %v3991
    %3993 = vmatmul.f32.gmra.mxu0 %v3380
    %v3994 = vpop.f32.mrf.mxu0
    %v3995 = vadd.f32 %v3344, %v3994
    %3996 = vmatmul.f32.gmra.mxu0 %v3383
    %v3997 = vpop.f32.mrf.mxu0
    %v3998 = vadd.f32 %v3349, %v3997
    %3999 = vmatmul.f32.gmra.mxu0 %v3386
    %v4000 = vpop.f32.mrf.mxu0
    %v4001 = vadd.f32 %v3354, %v4000
    %4002 = vmatmul.f32.gmra.mxu0 %v3389
    %v4003 = vpop.f32.mrf.mxu0
    %v4004 = vadd.f32 %v3359, %v4003
    %4005 = vmatmul.f32.gmra.mxu0 %v3392
    %v4006 = vpop.f32.mrf.mxu0
    %v4007 = vadd.f32 %v3364, %v4006
    %4008 = vmatmul.f32.gmra.mxu0 %v3395
    %v4009 = vpop.f32.mrf.mxu0
    %v4010 = vadd.f32 %v3369, %v4009
    %4011 = vmatmul.f32.gmra.mxu0 %v3398
    %v4012 = vpop.f32.mrf.mxu0
    %v4013 = vadd.f32 %v3374, %v4012
    %4014 = vdwg.mxu0
    %4015 = vmatpush.msra.mxu0 0.0
    %4016 = vmatpush.msra.mxu0 0.0
    %4017 = vmatpush.msra.mxu0 0.0
    %4018 = vmatpush.msra.mxu0 0.0
    %4019 = vmatpush.msra.mxu0 0.0
    %4020 = vmatpush.msra.mxu0 0.0
    %4021 = vmatpush.msra.mxu0 0.0
    %4022 = vmatpush.msra.mxu0 0.0
    %4023 = vmatpush.msra.mxu0 %v3319
    %4024 = vmatpush.msra.mxu0 %v3303
    %4025 = vmatpush.msra.mxu0 %v3287
    %4026 = vmatpush.msra.mxu0 %v3271
    %4027 = vmatpush.msra.mxu0 %v3255
    %4028 = vmatpush.msra.mxu0 %v3239
    %4029 = vmatpush.msra.mxu0 %v3223
    %4030 = vmatpush.msra.mxu0 %v3207
    %4031 = vmatmul.f32.gmra.mxu0 %v3377
    %v4032 = vpop.f32.mrf.mxu0
    %v4033 = vadd.f32 %v3339, %v4032
    %4034 = vmatmul.f32.gmra.mxu0 %v3380
    %v4035 = vpop.f32.mrf.mxu0
    %v4036 = vadd.f32 %v3344, %v4035
    %4037 = vmatmul.f32.gmra.mxu0 %v3383
    %v4038 = vpop.f32.mrf.mxu0
    %v4039 = vadd.f32 %v3349, %v4038
    %4040 = vmatmul.f32.gmra.mxu0 %v3386
    %v4041 = vpop.f32.mrf.mxu0
    %v4042 = vadd.f32 %v3354, %v4041
    %4043 = vmatmul.f32.gmra.mxu0 %v3389
    %v4044 = vpop.f32.mrf.mxu0
    %v4045 = vadd.f32 %v3359, %v4044
    %4046 = vmatmul.f32.gmra.mxu0 %v3392
    %v4047 = vpop.f32.mrf.mxu0
    %v4048 = vadd.f32 %v3364, %v4047
    %4049 = vmatmul.f32.gmra.mxu0 %v3395
    %v4050 = vpop.f32.mrf.mxu0
    %v4051 = vadd.f32 %v3369, %v4050
    %4052 = vmatmul.f32.gmra.mxu0 %v3398
    %v4053 = vpop.f32.mrf.mxu0
    %v4054 = vadd.f32 %v3374, %v4053
    %4055 = vdwg.mxu0
    %v4056 = vtanh.pop %v3418
    %v4057 = vtanh.pop %v3459
    %v4058 = vtanh.pop %v3500
    %v4059 = vtanh.pop %v3541
    %v4060 = vtanh.pop %v3582
    %v4061 = vtanh.pop %v3623
    %v4062 = vtanh.pop %v3664
    %v4063 = vtanh.pop %v3705
    %v4064 = vtanh.pop %v3746
    %v4065 = vtanh.pop %v3787
    %v4066 = vtanh.pop %v3828
    %v4067 = vtanh.pop %v3869
    %v4068 = vtanh.pop %v3910
    %v4069 = vtanh.pop %v3951
    %v4070 = vtanh.pop %v3992
    %v4071 = vtanh.pop %v4033
    %v4072 = vtanh.pop %v3421
    %v4073 = vtanh.pop %v3462
    %v4074 = vtanh.pop %v3503
    %v4075 = vtanh.pop %v3544
    %v4076 = vtanh.pop %v3585
    %v4077 = vtanh.pop %v3626
    %v4078 = vtanh.pop %v3667
    %v4079 = vtanh.pop %v3708
    %v4080 = vtanh.pop %v3749
    %v4081 = vtanh.pop %v3790
    %v4082 = vtanh.pop %v3831
    %v4083 = vtanh.pop %v3872
    %v4084 = vtanh.pop %v3913
    %v4085 = vtanh.pop %v3954
    %v4086 = vtanh.pop %v3995
    %v4087 = vtanh.pop %v4036
    %v4088 = vtanh.pop %v3424
    %v4089 = vtanh.pop %v3465
    %v4090 = vtanh.pop %v3506
    %v4091 = vtanh.pop %v3547
    %v4092 = vtanh.pop %v3588
    %v4093 = vtanh.pop %v3629
    %v4094 = vtanh.pop %v3670
    %v4095 = vtanh.pop %v3711
    %v4096 = vtanh.pop %v3752
    %v4097 = vtanh.pop %v3793
    %v4098 = vtanh.pop %v3834
    %v4099 = vtanh.pop %v3875
    %v4100 = vtanh.pop %v3916
    %v4101 = vtanh.pop %v3957
    %v4102 = vtanh.pop %v3998
    %v4103 = vtanh.pop %v4039
    %v4104 = vtanh.pop %v3427
    %v4105 = vtanh.pop %v3468
    %v4106 = vtanh.pop %v3509
    %v4107 = vtanh.pop %v3550
    %v4108 = vtanh.pop %v3591
    %v4109 = vtanh.pop %v3632
    %v4110 = vtanh.pop %v3673
    %v4111 = vtanh.pop %v3714
    %v4112 = vtanh.pop %v3755
    %v4113 = vtanh.pop %v3796
    %v4114 = vtanh.pop %v3837
    %v4115 = vtanh.pop %v3878
    %v4116 = vtanh.pop %v3919
    %v4117 = vtanh.pop %v3960
    %v4118 = vtanh.pop %v4001
    %v4119 = vtanh.pop %v4042
    %v4120 = vtanh.pop %v3430
    %v4121 = vtanh.pop %v3471
    %v4122 = vtanh.pop %v3512
    %v4123 = vtanh.pop %v3553
    %v4124 = vtanh.pop %v3594
    %v4125 = vtanh.pop %v3635
    %v4126 = vtanh.pop %v3676
    %v4127 = vtanh.pop %v3717
    %v4128 = vtanh.pop %v3758
    %v4129 = vtanh.pop %v3799
    %v4130 = vtanh.pop %v3840
    %v4131 = vtanh.pop %v3881
    %v4132 = vtanh.pop %v3922
    %v4133 = vtanh.pop %v3963
    %v4134 = vtanh.pop %v4004
    %v4135 = vtanh.pop %v4045
    %v4136 = vtanh.pop %v3433
    %v4137 = vtanh.pop %v3474
    %v4138 = vtanh.pop %v3515
    %v4139 = vtanh.pop %v3556
    %v4140 = vtanh.pop %v3597
    %v4141 = vtanh.pop %v3638
    %v4142 = vtanh.pop %v3679
    %v4143 = vtanh.pop %v3720
    %v4144 = vtanh.pop %v3761
    %v4145 = vtanh.pop %v3802
    %v4146 = vtanh.pop %v3843
    %v4147 = vtanh.pop %v3884
    %v4148 = vtanh.pop %v3925
    %v4149 = vtanh.pop %v3966
    %v4150 = vtanh.pop %v4007
    %v4151 = vtanh.pop %v4048
    %v4152 = vtanh.pop %v3436
    %v4153 = vtanh.pop %v3477
    %v4154 = vtanh.pop %v3518
    %v4155 = vtanh.pop %v3559
    %v4156 = vtanh.pop %v3600
    %v4157 = vtanh.pop %v3641
    %v4158 = vtanh.pop %v3682
    %v4159 = vtanh.pop %v3723
    %v4160 = vtanh.pop %v3764
    %v4161 = vtanh.pop %v3805
    %v4162 = vtanh.pop %v3846
    %v4163 = vtanh.pop %v3887
    %v4164 = vtanh.pop %v3928
    %v4165 = vtanh.pop %v3969
    %v4166 = vtanh.pop %v4010
    %v4167 = vtanh.pop %v4051
    %v4168 = vtanh.pop %v3439
    %v4169 = vtanh.pop %v3480
    %v4170 = vtanh.pop %v3521
    %v4171 = vtanh.pop %v3562
    %v4172 = vtanh.pop %v3603
    %v4173 = vtanh.pop %v3644
    %v4174 = vtanh.pop %v3685
    %v4175 = vtanh.pop %v3726
    %v4176 = vtanh.pop %v3767
    %v4177 = vtanh.pop %v3808
    %v4178 = vtanh.pop %v3849
    %v4179 = vtanh.pop %v3890
    %v4180 = vtanh.pop %v3931
    %v4181 = vtanh.pop %v3972
    %v4182 = vtanh.pop %v4013
    %v4183 = vtanh.pop %v4054
    %v4184 = vld [vmem:[%s9] sm:$0x3]
    %v4185 = vld [vmem:[%s10] sm:$0x3]
    %4187 = vset.pattern.permute.xlu0 0
    %4188 = vperm.xlu0 %4187, %v4185
    %v4189 = vpop.permute.xlu0 %4188
    %v4192 = vsel %vm1647, %v4184, 0
    %4194 = vmatpush.msra.mxu0 0.0
    %4195 = vmatpush.msra.mxu0 0.0
    %4196 = vmatpush.msra.mxu0 0.0
    %4197 = vmatpush.msra.mxu0 0.0
    %4198 = vmatpush.msra.mxu0 0.0
    %4199 = vmatpush.msra.mxu0 0.0
    %4200 = vmatpush.msra.mxu0 0.0
    %4201 = vmatpush.msra.mxu0 0.0
    %4202 = vmatpush.msra.mxu0 %v4168
    %4203 = vmatpush.msra.mxu0 %v4152
    %4204 = vmatpush.msra.mxu0 %v4136
    %4205 = vmatpush.msra.mxu0 %v4120
    %4206 = vmatpush.msra.mxu0 %v4104
    %4207 = vmatpush.msra.mxu0 %v4088
    %4208 = vmatpush.msra.mxu0 %v4072
    %4209 = vmatpush.msra.mxu0 %v4056
    %4210 = vmatmul.f32.gmra.mxu0 %v4192
    %v4211 = vpop.f32.mrf.mxu0
    %v4212 = vadd.f32 %v4189, %v4211
    %4213 = vdwg.mxu0
    %4214 = vmatpush.msra.mxu0 0.0
    %4215 = vmatpush.msra.mxu0 0.0
    %4216 = vmatpush.msra.mxu0 0.0
    %4217 = vmatpush.msra.mxu0 0.0
    %4218 = vmatpush.msra.mxu0 0.0
    %4219 = vmatpush.msra.mxu0 0.0
    %4220 = vmatpush.msra.mxu0 0.0
    %4221 = vmatpush.msra.mxu0 0.0
    %4222 = vmatpush.msra.mxu0 %v4169
    %4223 = vmatpush.msra.mxu0 %v4153
    %4224 = vmatpush.msra.mxu0 %v4137
    %4225 = vmatpush.msra.mxu0 %v4121
    %4226 = vmatpush.msra.mxu0 %v4105
    %4227 = vmatpush.msra.mxu0 %v4089
    %4228 = vmatpush.msra.mxu0 %v4073
    %4229 = vmatpush.msra.mxu0 %v4057
    %4230 = vmatmul.f32.gmra.mxu0 %v4192
    %v4231 = vpop.f32.mrf.mxu0
    %v4232 = vadd.f32 %v4189, %v4231
    %4233 = vdwg.mxu0
    %4234 = vmatpush.msra.mxu0 0.0
    %4235 = vmatpush.msra.mxu0 0.0
    %4236 = vmatpush.msra.mxu0 0.0
    %4237 = vmatpush.msra.mxu0 0.0
    %4238 = vmatpush.msra.mxu0 0.0
    %4239 = vmatpush.msra.mxu0 0.0
    %4240 = vmatpush.msra.mxu0 0.0
    %4241 = vmatpush.msra.mxu0 0.0
    %4242 = vmatpush.msra.mxu0 %v4170
    %4243 = vmatpush.msra.mxu0 %v4154
    %4244 = vmatpush.msra.mxu0 %v4138
    %4245 = vmatpush.msra.mxu0 %v4122
    %4246 = vmatpush.msra.mxu0 %v4106
    %4247 = vmatpush.msra.mxu0 %v4090
    %4248 = vmatpush.msra.mxu0 %v4074
    %4249 = vmatpush.msra.mxu0 %v4058
    %4250 = vmatmul.f32.gmra.mxu0 %v4192
    %v4251 = vpop.f32.mrf.mxu0
    %v4252 = vadd.f32 %v4189, %v4251
    %4253 = vdwg.mxu0
    %4254 = vmatpush.msra.mxu0 0.0
    %4255 = vmatpush.msra.mxu0 0.0
    %4256 = vmatpush.msra.mxu0 0.0
    %4257 = vmatpush.msra.mxu0 0.0
    %4258 = vmatpush.msra.mxu0 0.0
    %4259 = vmatpush.msra.mxu0 0.0
    %4260 = vmatpush.msra.mxu0 0.0
    %4261 = vmatpush.msra.mxu0 0.0
    %4262 = vmatpush.msra.mxu0 %v4171
    %4263 = vmatpush.msra.mxu0 %v4155
    %4264 = vmatpush.msra.mxu0 %v4139
    %4265 = vmatpush.msra.mxu0 %v4123
    %4266 = vmatpush.msra.mxu0 %v4107
    %4267 = vmatpush.msra.mxu0 %v4091
    %4268 = vmatpush.msra.mxu0 %v4075
    %4269 = vmatpush.msra.mxu0 %v4059
    %4270 = vmatmul.f32.gmra.mxu0 %v4192
    %v4271 = vpop.f32.mrf.mxu0
    %v4272 = vadd.f32 %v4189, %v4271
    %4273 = vdwg.mxu0
    %4274 = vmatpush.msra.mxu0 0.0
    %4275 = vmatpush.msra.mxu0 0.0
    %4276 = vmatpush.msra.mxu0 0.0
    %4277 = vmatpush.msra.mxu0 0.0
    %4278 = vmatpush.msra.mxu0 0.0
    %4279 = vmatpush.msra.mxu0 0.0
    %4280 = vmatpush.msra.mxu0 0.0
    %4281 = vmatpush.msra.mxu0 0.0
    %4282 = vmatpush.msra.mxu0 %v4172
    %4283 = vmatpush.msra.mxu0 %v4156
    %4284 = vmatpush.msra.mxu0 %v4140
    %4285 = vmatpush.msra.mxu0 %v4124
    %4286 = vmatpush.msra.mxu0 %v4108
    %4287 = vmatpush.msra.mxu0 %v4092
    %4288 = vmatpush.msra.mxu0 %v4076
    %4289 = vmatpush.msra.mxu0 %v4060
    %4290 = vmatmul.f32.gmra.mxu0 %v4192
    %v4291 = vpop.f32.mrf.mxu0
    %v4292 = vadd.f32 %v4189, %v4291
    %4293 = vdwg.mxu0
    %4294 = vmatpush.msra.mxu0 0.0
    %4295 = vmatpush.msra.mxu0 0.0
    %4296 = vmatpush.msra.mxu0 0.0
    %4297 = vmatpush.msra.mxu0 0.0
    %4298 = vmatpush.msra.mxu0 0.0
    %4299 = vmatpush.msra.mxu0 0.0
    %4300 = vmatpush.msra.mxu0 0.0
    %4301 = vmatpush.msra.mxu0 0.0
    %4302 = vmatpush.msra.mxu0 %v4173
    %4303 = vmatpush.msra.mxu0 %v4157
    %4304 = vmatpush.msra.mxu0 %v4141
    %4305 = vmatpush.msra.mxu0 %v4125
    %4306 = vmatpush.msra.mxu0 %v4109
    %4307 = vmatpush.msra.mxu0 %v4093
    %4308 = vmatpush.msra.mxu0 %v4077
    %4309 = vmatpush.msra.mxu0 %v4061
    %4310 = vmatmul.f32.gmra.mxu0 %v4192
    %v4311 = vpop.f32.mrf.mxu0
    %v4312 = vadd.f32 %v4189, %v4311
    %4313 = vdwg.mxu0
    %4314 = vmatpush.msra.mxu0 0.0
    %4315 = vmatpush.msra.mxu0 0.0
    %4316 = vmatpush.msra.mxu0 0.0
    %4317 = vmatpush.msra.mxu0 0.0
    %4318 = vmatpush.msra.mxu0 0.0
    %4319 = vmatpush.msra.mxu0 0.0
    %4320 = vmatpush.msra.mxu0 0.0
    %4321 = vmatpush.msra.mxu0 0.0
    %4322 = vmatpush.msra.mxu0 %v4174
    %4323 = vmatpush.msra.mxu0 %v4158
    %4324 = vmatpush.msra.mxu0 %v4142
    %4325 = vmatpush.msra.mxu0 %v4126
    %4326 = vmatpush.msra.mxu0 %v4110
    %4327 = vmatpush.msra.mxu0 %v4094
    %4328 = vmatpush.msra.mxu0 %v4078
    %4329 = vmatpush.msra.mxu0 %v4062
    %4330 = vmatmul.f32.gmra.mxu0 %v4192
    %v4331 = vpop.f32.mrf.mxu0
    %v4332 = vadd.f32 %v4189, %v4331
    %4333 = vdwg.mxu0
    %4334 = vmatpush.msra.mxu0 0.0
    %4335 = vmatpush.msra.mxu0 0.0
    %4336 = vmatpush.msra.mxu0 0.0
    %4337 = vmatpush.msra.mxu0 0.0
    %4338 = vmatpush.msra.mxu0 0.0
    %4339 = vmatpush.msra.mxu0 0.0
    %4340 = vmatpush.msra.mxu0 0.0
    %4341 = vmatpush.msra.mxu0 0.0
    %4342 = vmatpush.msra.mxu0 %v4175
    %4343 = vmatpush.msra.mxu0 %v4159
    %4344 = vmatpush.msra.mxu0 %v4143
    %4345 = vmatpush.msra.mxu0 %v4127
    %4346 = vmatpush.msra.mxu0 %v4111
    %4347 = vmatpush.msra.mxu0 %v4095
    %4348 = vmatpush.msra.mxu0 %v4079
    %4349 = vmatpush.msra.mxu0 %v4063
    %4350 = vmatmul.f32.gmra.mxu0 %v4192
    %v4351 = vpop.f32.mrf.mxu0
    %v4352 = vadd.f32 %v4189, %v4351
    %4353 = vdwg.mxu0
    %4354 = vmatpush.msra.mxu0 0.0
    %4355 = vmatpush.msra.mxu0 0.0
    %4356 = vmatpush.msra.mxu0 0.0
    %4357 = vmatpush.msra.mxu0 0.0
    %4358 = vmatpush.msra.mxu0 0.0
    %4359 = vmatpush.msra.mxu0 0.0
    %4360 = vmatpush.msra.mxu0 0.0
    %4361 = vmatpush.msra.mxu0 0.0
    %4362 = vmatpush.msra.mxu0 %v4176
    %4363 = vmatpush.msra.mxu0 %v4160
    %4364 = vmatpush.msra.mxu0 %v4144
    %4365 = vmatpush.msra.mxu0 %v4128
    %4366 = vmatpush.msra.mxu0 %v4112
    %4367 = vmatpush.msra.mxu0 %v4096
    %4368 = vmatpush.msra.mxu0 %v4080
    %4369 = vmatpush.msra.mxu0 %v4064
    %4370 = vmatmul.f32.gmra.mxu0 %v4192
    %v4371 = vpop.f32.mrf.mxu0
    %v4372 = vadd.f32 %v4189, %v4371
    %4373 = vdwg.mxu0
    %4374 = vmatpush.msra.mxu0 0.0
    %4375 = vmatpush.msra.mxu0 0.0
    %4376 = vmatpush.msra.mxu0 0.0
    %4377 = vmatpush.msra.mxu0 0.0
    %4378 = vmatpush.msra.mxu0 0.0
    %4379 = vmatpush.msra.mxu0 0.0
    %4380 = vmatpush.msra.mxu0 0.0
    %4381 = vmatpush.msra.mxu0 0.0
    %4382 = vmatpush.msra.mxu0 %v4177
    %4383 = vmatpush.msra.mxu0 %v4161
    %4384 = vmatpush.msra.mxu0 %v4145
    %4385 = vmatpush.msra.mxu0 %v4129
    %4386 = vmatpush.msra.mxu0 %v4113
    %4387 = vmatpush.msra.mxu0 %v4097
    %4388 = vmatpush.msra.mxu0 %v4081
    %4389 = vmatpush.msra.mxu0 %v4065
    %4390 = vmatmul.f32.gmra.mxu0 %v4192
    %v4391 = vpop.f32.mrf.mxu0
    %v4392 = vadd.f32 %v4189, %v4391
    %4393 = vdwg.mxu0
    %4394 = vmatpush.msra.mxu0 0.0
    %4395 = vmatpush.msra.mxu0 0.0
    %4396 = vmatpush.msra.mxu0 0.0
    %4397 = vmatpush.msra.mxu0 0.0
    %4398 = vmatpush.msra.mxu0 0.0
    %4399 = vmatpush.msra.mxu0 0.0
    %4400 = vmatpush.msra.mxu0 0.0
    %4401 = vmatpush.msra.mxu0 0.0
    %4402 = vmatpush.msra.mxu0 %v4178
    %4403 = vmatpush.msra.mxu0 %v4162
    %4404 = vmatpush.msra.mxu0 %v4146
    %4405 = vmatpush.msra.mxu0 %v4130
    %4406 = vmatpush.msra.mxu0 %v4114
    %4407 = vmatpush.msra.mxu0 %v4098
    %4408 = vmatpush.msra.mxu0 %v4082
    %4409 = vmatpush.msra.mxu0 %v4066
    %4410 = vmatmul.f32.gmra.mxu0 %v4192
    %v4411 = vpop.f32.mrf.mxu0
    %v4412 = vadd.f32 %v4189, %v4411
    %4413 = vdwg.mxu0
    %4414 = vmatpush.msra.mxu0 0.0
    %4415 = vmatpush.msra.mxu0 0.0
    %4416 = vmatpush.msra.mxu0 0.0
    %4417 = vmatpush.msra.mxu0 0.0
    %4418 = vmatpush.msra.mxu0 0.0
    %4419 = vmatpush.msra.mxu0 0.0
    %4420 = vmatpush.msra.mxu0 0.0
    %4421 = vmatpush.msra.mxu0 0.0
    %4422 = vmatpush.msra.mxu0 %v4179
    %4423 = vmatpush.msra.mxu0 %v4163
    %4424 = vmatpush.msra.mxu0 %v4147
    %4425 = vmatpush.msra.mxu0 %v4131
    %4426 = vmatpush.msra.mxu0 %v4115
    %4427 = vmatpush.msra.mxu0 %v4099
    %4428 = vmatpush.msra.mxu0 %v4083
    %4429 = vmatpush.msra.mxu0 %v4067
    %4430 = vmatmul.f32.gmra.mxu0 %v4192
    %v4431 = vpop.f32.mrf.mxu0
    %v4432 = vadd.f32 %v4189, %v4431
    %4433 = vdwg.mxu0
    %4434 = vmatpush.msra.mxu0 0.0
    %4435 = vmatpush.msra.mxu0 0.0
    %4436 = vmatpush.msra.mxu0 0.0
    %4437 = vmatpush.msra.mxu0 0.0
    %4438 = vmatpush.msra.mxu0 0.0
    %4439 = vmatpush.msra.mxu0 0.0
    %4440 = vmatpush.msra.mxu0 0.0
    %4441 = vmatpush.msra.mxu0 0.0
    %4442 = vmatpush.msra.mxu0 %v4180
    %4443 = vmatpush.msra.mxu0 %v4164
    %4444 = vmatpush.msra.mxu0 %v4148
    %4445 = vmatpush.msra.mxu0 %v4132
    %4446 = vmatpush.msra.mxu0 %v4116
    %4447 = vmatpush.msra.mxu0 %v4100
    %4448 = vmatpush.msra.mxu0 %v4084
    %4449 = vmatpush.msra.mxu0 %v4068
    %4450 = vmatmul.f32.gmra.mxu0 %v4192
    %v4451 = vpop.f32.mrf.mxu0
    %v4452 = vadd.f32 %v4189, %v4451
    %4453 = vdwg.mxu0
    %4454 = vmatpush.msra.mxu0 0.0
    %4455 = vmatpush.msra.mxu0 0.0
    %4456 = vmatpush.msra.mxu0 0.0
    %4457 = vmatpush.msra.mxu0 0.0
    %4458 = vmatpush.msra.mxu0 0.0
    %4459 = vmatpush.msra.mxu0 0.0
    %4460 = vmatpush.msra.mxu0 0.0
    %4461 = vmatpush.msra.mxu0 0.0
    %4462 = vmatpush.msra.mxu0 %v4181
    %4463 = vmatpush.msra.mxu0 %v4165
    %4464 = vmatpush.msra.mxu0 %v4149
    %4465 = vmatpush.msra.mxu0 %v4133
    %4466 = vmatpush.msra.mxu0 %v4117
    %4467 = vmatpush.msra.mxu0 %v4101
    %4468 = vmatpush.msra.mxu0 %v4085
    %4469 = vmatpush.msra.mxu0 %v4069
    %4470 = vmatmul.f32.gmra.mxu0 %v4192
    %v4471 = vpop.f32.mrf.mxu0
    %v4472 = vadd.f32 %v4189, %v4471
    %4473 = vdwg.mxu0
    %4474 = vmatpush.msra.mxu0 0.0
    %4475 = vmatpush.msra.mxu0 0.0
    %4476 = vmatpush.msra.mxu0 0.0
    %4477 = vmatpush.msra.mxu0 0.0
    %4478 = vmatpush.msra.mxu0 0.0
    %4479 = vmatpush.msra.mxu0 0.0
    %4480 = vmatpush.msra.mxu0 0.0
    %4481 = vmatpush.msra.mxu0 0.0
    %4482 = vmatpush.msra.mxu0 %v4182
    %4483 = vmatpush.msra.mxu0 %v4166
    %4484 = vmatpush.msra.mxu0 %v4150
    %4485 = vmatpush.msra.mxu0 %v4134
    %4486 = vmatpush.msra.mxu0 %v4118
    %4487 = vmatpush.msra.mxu0 %v4102
    %4488 = vmatpush.msra.mxu0 %v4086
    %4489 = vmatpush.msra.mxu0 %v4070
    %4490 = vmatmul.f32.gmra.mxu0 %v4192
    %v4491 = vpop.f32.mrf.mxu0
    %v4492 = vadd.f32 %v4189, %v4491
    %4493 = vdwg.mxu0
    %4494 = vmatpush.msra.mxu0 0.0
    %4495 = vmatpush.msra.mxu0 0.0
    %4496 = vmatpush.msra.mxu0 0.0
    %4497 = vmatpush.msra.mxu0 0.0
    %4498 = vmatpush.msra.mxu0 0.0
    %4499 = vmatpush.msra.mxu0 0.0
    %4500 = vmatpush.msra.mxu0 0.0
    %4501 = vmatpush.msra.mxu0 0.0
    %4502 = vmatpush.msra.mxu0 %v4183
    %4503 = vmatpush.msra.mxu0 %v4167
    %4504 = vmatpush.msra.mxu0 %v4151
    %4505 = vmatpush.msra.mxu0 %v4135
    %4506 = vmatpush.msra.mxu0 %v4119
    %4507 = vmatpush.msra.mxu0 %v4103
    %4508 = vmatpush.msra.mxu0 %v4087
    %4509 = vmatpush.msra.mxu0 %v4071
    %4510 = vmatmul.f32.gmra.mxu0 %v4192
    %v4511 = vpop.f32.mrf.mxu0
    %v4512 = vadd.f32 %v4189, %v4511
    %4513 = vdwg.mxu0
    %v4530 = vrot.slane %v4232, 6
    %v4531 = vrot.slane %v4252, 4
    %v4532 = vrot.slane %v4272, 2
    %v4533 = vrot.slane %v4312, 6
    %v4534 = vrot.slane %v4332, 4
    %v4535 = vrot.slane %v4352, 2
    %v4536 = vrot.slane %v4392, 6
    %v4537 = vrot.slane %v4412, 4
    %v4538 = vrot.slane %v4432, 2
    %v4539 = vrot.slane %v4472, 6
    %v4540 = vrot.slane %v4492, 4
    %v4541 = vrot.slane %v4512, 2
    %vm4542 = vcmask 1041408
    %v4543 = vsel %vm4542, %v4212, %v4530
    %vm4544 = vcmask 1045508
    %v4545 = vsel %vm4544, %v4531, %v4532
    %vm4546 = vcmask 1043456
    %v4547 = vsel %vm4546, %v4543, %v4545
    %v4548 = vsel %vm4542, %v4292, %v4533
    %v4549 = vsel %vm4544, %v4534, %v4535
    %v4550 = vsel %vm4546, %v4548, %v4549
    %v4551 = vsel %vm4542, %v4372, %v4536
    %v4552 = vsel %vm4544, %v4537, %v4538
    %v4553 = vsel %vm4546, %v4551, %v4552
    %v4554 = vsel %vm4542, %v4452, %v4539
    %v4555 = vsel %vm4544, %v4540, %v4541
    %v4556 = vsel %vm4546, %v4554, %v4555
    %4561 = vst [vmem:[#allocation2] sm:$0xff] %v4547
    %4562 = vst [vmem:[#allocation2 + $0x8] sm:$0xff] %v4550
    %4563 = vst [vmem:[#allocation2 + $0x10] sm:$0xff] %v4553
    %4564 = vst [vmem:[#allocation2 + $0x18] sm:$0xff] %v4556
    // Predicated region
    $region46: #{mlp_forward.1} parent=1 // pred_check
      _
    $region47: #{mlp_forward.1} parent=1 // pred_check_branch
      %4566 = sbr.rel (0) target = $region49
    $region48: #{mlp_forward.1} parent=1 // pred_region
      %4568 = vsyncadd [#allocation3], 0
      %s4570 = sshll.u32 [#allocation2], 4
      %s4571 = int_to_ptr.vmem [resolvable:$true] %s4570
      %s4572 = sshll.u32 %s11, 4
      %s4573 = int_to_ptr.hbm [resolvable:$true] %s4572
      %4575 = dma.vmem_to_hbm [thread:$0]  %s4571, 512, %s4573, [#allocation3]
    $region49: #{mlp_forward.1} parent=1 // pred_fallthru
      _
    // Predicated region
    $region50: #{mlp_forward.1} parent=1 // pred_check
      _
    $region51: #{mlp_forward.1} parent=1 // pred_check_branch
      %4577 = sbr.rel (0) target = $region53
    $region52: #{mlp_forward.1} parent=1 // pred_region
      %4579 = dma.done [#allocation3], 512
    $region53: #{mlp_forward.1} parent=1 // pred_fallthru
      _
    %4580 = vsyncpa [#allocation3], 1

</llo_original>
